<compile_context>
chip_gen: v7x
topology: tpu7x:2x2x1
jax: 0.10.0
libtpu: 0.0.40
codegen_flags: <defaults>
</compile_context>

<pallas_src>
import math

import jax
import jax.numpy as jnp
from jax import lax
from jax.experimental import pallas as pl
from jax.experimental.pallas import tpu as pltpu


# ---------------------------------------------------------------------------
# Kernel 1: input projection  gi = x @ W_ih^T + (b_ih + b_hh[r,z] folded)
# ---------------------------------------------------------------------------
def input_proj_kernel(x_ref, w_ref, b_ref, o_ref):
    # x_ref: [tm, Hp] bf16, w_ref: [Hp, 3Hp] bf16, b_ref: [1, 3Hp] f32
    o_ref[...] = (
        jnp.dot(x_ref[...], w_ref[...], preferred_element_type=jnp.float32)
        + b_ref[...]
    )


def run_input_proj(x_tbh, wih_p, b_gi, Tc):
    Tp, Bp, Hp = x_tbh.shape
    M = Tp * Bp
    tm = Tc * Bp                      # divides M because Tp % Tc == 0
    x2 = x_tbh.reshape(M, Hp)
    gi2 = pl.pallas_call(
        input_proj_kernel,
        out_shape=jax.ShapeDtypeStruct((M, 3 * Hp), jnp.float32),
        grid=(M // tm,),
        in_specs=[
            pl.BlockSpec((tm, Hp), lambda i: (i, 0)),
            pl.BlockSpec((Hp, 3 * Hp), lambda i: (0, 0)),
            pl.BlockSpec((1, 3 * Hp), lambda i: (0, 0)),
        ],
        out_specs=pl.BlockSpec((tm, 3 * Hp), lambda i: (i, 0)),
        compiler_params=pltpu.CompilerParams(dimension_semantics=("parallel",)),
    )(x2, wih_p, b_gi)
    return gi2.reshape(Tp, Bp, 3 * Hp)


# ---------------------------------------------------------------------------
# Kernel 2: the recurrence.  h carried in VMEM scratch across T-chunks.
# ---------------------------------------------------------------------------
def _gru_chunk_steps(gi_ref, mask_ref, whh_b, bhn_b, h_scr, out_ref):
    Tc = gi_ref.shape[0]
    Hp = h_scr.shape[1]

    def step(t, carry):
        h = h_scr[...]                                  # [Bp, Hp] f32
        gi = gi_ref[t]                                  # [Bp, 3Hp] f32 (biases folded)
        gh = jnp.dot(h.astype(jnp.bfloat16), whh_b,
                     preferred_element_type=jnp.float32)  # [Bp, 3Hp] f32
        r = jax.nn.sigmoid(gi[:, :Hp] + gh[:, :Hp])
        z = jax.nn.sigmoid(gi[:, Hp:2 * Hp] + gh[:, Hp:2 * Hp])
        n = jnp.tanh(gi[:, 2 * Hp:] + r * (gh[:, 2 * Hp:] + bhn_b))
        h_new = n + z * (h - n)                         # (1-z)*n + z*h
        m = mask_ref[t]                                 # [Bp, 1] f32 (1 while t < len)
        h_upd = h + m * (h_new - h)                     # freeze past sequence end
        h_scr[...] = h_upd
        if out_ref is not None:
            out_ref[t] = h_upd.astype(out_ref.dtype)
        return carry

    lax.fori_loop(0, Tc, step, 0, unroll=True)


def gru_rec_seq_kernel(gi_ref, mask_ref, h0_ref, whh_ref, bhn_ref, out_ref, h_scr):
    @pl.when(pl.program_id(0) == 0)
    def _():
        h_scr[...] = h0_ref[...]

    whh_b = whh_ref[...]                                        # hoisted (bf16)
    bhn_b = jnp.broadcast_to(bhn_ref[...], h_scr.shape)         # hoisted broadcast
    _gru_chunk_steps(gi_ref, mask_ref, whh_b, bhn_b, h_scr, out_ref)


def gru_rec_last_kernel(gi_ref, mask_ref, h0_ref, whh_ref, bhn_ref, hlast_ref, h_scr):
    @pl.when(pl.program_id(0) == 0)
    def _():
        h_scr[...] = h0_ref[...]

    whh_b = whh_ref[...]
    bhn_b = jnp.broadcast_to(bhn_ref[...], h_scr.shape)
    _gru_chunk_steps(gi_ref, mask_ref, whh_b, bhn_b, h_scr, None)
    hlast_ref[...] = h_scr[...]     # constant block index -> written back once


def run_gru_recurrence(gi, mask, h0_p, whh_p, b_hn, Tc, last_only):
    Tp, Bp, threeHp = gi.shape
    Hp = threeHp // 3
    grid = (Tp // Tc,)
    in_specs = [
        pl.BlockSpec((Tc, Bp, 3 * Hp), lambda i: (i, 0, 0)),
        pl.BlockSpec((Tc, Bp, 1), lambda i: (i, 0, 0)),
        pl.BlockSpec((Bp, Hp), lambda i: (0, 0)),
        pl.BlockSpec((Hp, 3 * Hp), lambda i: (0, 0)),
        pl.BlockSpec((1, Hp), lambda i: (0, 0)),
    ]
    scratch = [pltpu.VMEM((Bp, Hp), jnp.float32)]
    cp = pltpu.CompilerParams(dimension_semantics=("arbitrary",))
    if last_only:
        return pl.pallas_call(
            gru_rec_last_kernel,
            out_shape=jax.ShapeDtypeStruct((Bp, Hp), jnp.float32),
            grid=grid, in_specs=in_specs,
            out_specs=pl.BlockSpec((Bp, Hp), lambda i: (0, 0)),
            scratch_shapes=scratch, compiler_params=cp,
        )(gi, mask, h0_p, whh_p, b_hn)
    return pl.pallas_call(
        gru_rec_seq_kernel,
        out_shape=jax.ShapeDtypeStruct((Tp, Bp, Hp), jnp.bfloat16),
        grid=grid, in_specs=in_specs,
        out_specs=pl.BlockSpec((Tc, Bp, Hp), lambda i: (i, 0, 0)),
        scratch_shapes=scratch, compiler_params=cp,
    )(gi, mask, h0_p, whh_p, b_hn)


# ---------------------------------------------------------------------------
# Parameter packing: pad each gate block to Hp so gate slices are lane-aligned.
# ---------------------------------------------------------------------------
def _prep_layer_params(w_ih, w_hh, b_ih, b_hh, H, Hp):
    def pad_w(w):  # [3H, H] (rows r|z|n) -> [Hp, 3Hp] transposed, gate-aligned
        out = jnp.zeros((Hp, 3 * Hp), jnp.float32)
        for g in range(3):
            out = out.at[:H, g * Hp:g * Hp + H].set(w[g * H:(g + 1) * H, :].T)
        return out

    def pad_b(b):  # [3H] -> [3Hp]
        out = jnp.zeros((3 * Hp,), jnp.float32)
        for g in range(3):
            out = out.at[g * Hp:g * Hp + H].set(b[g * H:(g + 1) * H])
        return out

    wih_p = pad_w(w_ih).astype(jnp.bfloat16)
    whh_p = pad_w(w_hh).astype(jnp.bfloat16)
    bih_p = pad_b(b_ih)
    bhh_p = pad_b(b_hh)
    # r,z biases combined into gi; n keeps only b_ih (b_hh_n must stay inside r*(.))
    b_gi = jnp.concatenate([
        bih_p[:Hp] + bhh_p[:Hp],
        bih_p[Hp:2 * Hp] + bhh_p[Hp:2 * Hp],
        bih_p[2 * Hp:],
    ]).reshape(1, 3 * Hp)
    b_hn = bhh_p[2 * Hp:].reshape(1, Hp)
    return wih_p, whh_p, b_gi, b_hn


# ---------------------------------------------------------------------------
# Wrapper: GRUWithPadding.forward
# ---------------------------------------------------------------------------
def gru_with_padding(inputs, params, h0, *, Tc=8):
    """inputs: list of [L_i, H]; params: per layer (W_ih[3H,H], W_hh[3H,H], b_ih, b_hh);
    h0: [num_layers, B, H].  Returns [B, H] = hidden state at each seq's last step."""
    B = len(inputs)
    H = inputs[0].shape[-1]
    lengths = [int(x.shape[0]) for x in inputs]
    T = max(lengths)

    Hp = max(128, ((H + 127) // 128) * 128)      # lane-aligned hidden size
    Bp = ((B + 7) // 8) * 8                      # sublane-aligned batch
    Tp = ((T + Tc - 1) // Tc) * Tc               # pad T to chunk multiple

    # pack time-major [Tp, Bp, Hp], zeros in all padding
    x = jnp.zeros((Tp, Bp, Hp), jnp.float32)
    for b, xb in enumerate(inputs):
        x = x.at[:xb.shape[0], b, :H].set(xb.astype(jnp.float32))
    x = x.astype(jnp.bfloat16)

    len_arr = jnp.zeros((Bp,), jnp.int32).at[:B].set(jnp.array(lengths, jnp.int32))
    mask = (jnp.arange(Tp, dtype=jnp.int32)[:, None] < len_arr[None, :])
    mask = mask.astype(jnp.float32)[:, :, None]                 # [Tp, Bp, 1]

    num_layers = len(params)
    layer_in = x
    h_last = None
    for l, (w_ih, w_hh, b_ih, b_hh) in enumerate(params):
        wih_p, whh_p, b_gi, b_hn = _prep_layer_params(w_ih, w_hh, b_ih, b_hh, H, Hp)
        h0_p = jnp.zeros((Bp, Hp), jnp.float32).at[:B, :H].set(h0[l].astype(jnp.float32))
        gi = run_input_proj(layer_in, wih_p, b_gi, Tc)          # [Tp, Bp, 3Hp] f32
        if l < num_layers - 1:
            layer_in = run_gru_recurrence(gi, mask, h0_p, whh_p, b_hn, Tc,
                                          last_only=False)      # bf16 [Tp, Bp, Hp]
        else:
            h_last = run_gru_recurrence(gi, mask, h0_p, whh_p, b_hn, Tc,
                                        last_only=True)         # f32 [Bp, Hp]
    return h_last[:B, :H]


# ---------------------------------------------------------------------------
# Pure-JAX reference (mirrors kernel numerics: bf16 matmul operands, f32 math)
# ---------------------------------------------------------------------------
def gru_with_padding_ref(inputs, params, h0):
    B = len(inputs)
    H = inputs[0].shape[-1]
    lengths = jnp.array([x.shape[0] for x in inputs], jnp.int32)
    T = int(lengths.max())
    padded = jnp.stack(
        [jnp.pad(x, ((0, T - x.shape[0]), (0, 0))) for x in inputs], axis=0
    ).astype(jnp.float32)

    def mm(a, w):
        return jnp.dot(a.astype(jnp.bfloat16), w.astype(jnp.bfloat16).T,
                       preferred_element_type=jnp.float32)

    layer_in = padded
    for l, (w_ih, w_hh, b_ih, b_hh) in enumerate(params):
        h = h0[l].astype(jnp.float32)
        outs = []
        for t in range(T):
            xt = layer_in[:, t, :]
            gi = mm(xt, w_ih) + b_ih
            gh = mm(h, w_hh) + b_hh
            i_r, i_z, i_n = gi[:, :H], gi[:, H:2 * H], gi[:, 2 * H:]
            h_r, h_z, h_n = gh[:, :H], gh[:, H:2 * H], gh[:, 2 * H:]
            r = jax.nn.sigmoid(i_r + h_r)
            z = jax.nn.sigmoid(i_z + h_z)
            n = jnp.tanh(i_n + r * h_n)
            h_new = (1.0 - z) * n + z * h
            h = jnp.where((t < lengths)[:, None], h_new, h)
            outs.append(h)
        layer_in = jnp.stack(outs, axis=1)

    idx = jnp.broadcast_to((lengths - 1)[:, None, None], (B, 1, H))
    return jnp.take_along_axis(layer_in, idx, axis=1)[:, 0, :]


if __name__ == "__main__":
    hidden_size = 32
    num_rnn = 2                      # exercises both the seq and last-only kernels
    batch = 4
    seq_lens = [5, 8, 3, 8]          # variable-length sequences, max T = 8

    key = jax.random.PRNGKey(0)
    keys = jax.random.split(key, 16)

    inputs = [
        jax.random.normal(keys[i], (seq_lens[i], hidden_size), dtype=jnp.float32)
        for i in range(batch)
    ]

    # PyTorch-style init U(-1/sqrt(H), 1/sqrt(H))
    k = 1.0 / math.sqrt(hidden_size)
    params = []
    for l in range(num_rnn):
        pk = jax.random.split(keys[8 + l], 4)
        w_ih = jax.random.uniform(pk[0], (3 * hidden_size, hidden_size), minval=-k, maxval=k)
        w_hh = jax.random.uniform(pk[1], (3 * hidden_size, hidden_size), minval=-k, maxval=k)
        b_ih = jax.random.uniform(pk[2], (3 * hidden_size,), minval=-k, maxval=k)
        b_hh = jax.random.uniform(pk[3], (3 * hidden_size,), minval=-k, maxval=k)
        params.append((w_ih, w_hh, b_ih, b_hh))

    # h0 = torch.rand(num_layers, B, H) -> deterministic uniform [0, 1)
    h0 = jax.random.uniform(keys[12], (num_rnn, batch, hidden_size), dtype=jnp.float32)

    fn = jax.jit(gru_with_padding)
    out = jax.block_until_ready(fn(inputs, params, h0))

    ref = gru_with_padding_ref(inputs, params, h0)
    assert out.shape == (batch, hidden_size)
    max_err = float(jnp.max(jnp.abs(out - ref)))
    assert jnp.allclose(out, ref, atol=1e-2, rtol=1e-2), f"mismatch vs reference (max err {max_err})"

    print("KERNEL_OK")
</pallas_src>

<mosaic_0001>
module attributes {stable_mosaic.version = 11 : i64} {
  func.func @input_proj_kernel(%arg0: i32, %arg1: memref<64x128xbf16, #tpu.memory_space<vmem>>, %arg2: memref<128x384xbf16, #tpu.memory_space<vmem>>, %arg3: memref<1x384xf32, #tpu.memory_space<vmem>>, %arg4: memref<64x384xf32, #tpu.memory_space<vmem>>) attributes {dimension_semantics = [#tpu.dimension_semantics<parallel>], iteration_bounds = array<i64: 1>, scalar_prefetch = 0 : i64, scratch_operands = 0 : i64, tpu.core_type = #tpu.core_type<tc>, window_params = [{transform_indices = @transform_0, window_bounds = array<i64: 64, 128>}, {pipeline_mode = #tpu.pipeline_mode<synchronous>, transform_indices = @transform_1, window_bounds = array<i64: 128, 384>}, {pipeline_mode = #tpu.pipeline_mode<synchronous>, transform_indices = @transform_2, window_bounds = array<i64: 1, 384>}, {transform_indices = @transform_3, window_bounds = array<i64: 64, 384>}]} {
    %c0 = arith.constant 0 : index
    %c0_0 = arith.constant 0 : index
    %0 = vector.load %arg1[%c0, %c0_0] : memref<64x128xbf16, #tpu.memory_space<vmem>>, vector<64x128xbf16>
    %c0_1 = arith.constant 0 : index
    %c0_2 = arith.constant 0 : index
    %1 = vector.load %arg2[%c0_1, %c0_2] : memref<128x384xbf16, #tpu.memory_space<vmem>>, vector<128x384xbf16>
    %cst = arith.constant dense<0.000000e+00> : vector<64x384xf32>
    %2 = tpu.matmul %0, %1, %cst {dimension_numbers = #tpu.dot_dimension_numbers<[1], [0], [0], [1], [0, 0, 1, 1], [], []>} : vector<64x128xbf16>, vector<128x384xbf16>, vector<64x384xf32> -> vector<64x384xf32>
    %c0_3 = arith.constant 0 : index
    %c0_4 = arith.constant 0 : index
    %3 = vector.load %arg3[%c0_3, %c0_4] : memref<1x384xf32, #tpu.memory_space<vmem>>, vector<1x384xf32>
    %4 = vector.broadcast %3 : vector<1x384xf32> to vector<64x384xf32>
    %5 = arith.addf %2, %4 : vector<64x384xf32>
    %c0_5 = arith.constant 0 : index
    %c0_6 = arith.constant 0 : index
    %6 = vector.load %arg4[%c0_5, %c0_6] : memref<64x384xf32, #tpu.memory_space<vmem>>, vector<64x384xf32>
    tpu.vector_store %arg4[%c0_5, %c0_6], %5 {strides = array<i32>} : memref<64x384xf32, #tpu.memory_space<vmem>>, vector<64x384xf32>,
    return
  }
  func.func @transform_0(%arg0: i32) -> (i32, i32) {
    %c0_i32 = arith.constant 0 : i32
    %c0_i32_0 = arith.constant 0 : i32
    return %arg0, %c0_i32 : i32, i32
  }
  func.func @transform_1(%arg0: i32) -> (i32, i32) {
    %c0_i32 = arith.constant 0 : i32
    %c0_i32_0 = arith.constant 0 : i32
    %c0_i32_1 = arith.constant 0 : i32
    return %c0_i32, %c0_i32_0 : i32, i32
  }
  func.func @transform_2(%arg0: i32) -> (i32, i32) {
    %c0_i32 = arith.constant 0 : i32
    %c0_i32_0 = arith.constant 0 : i32
    %c0_i32_1 = arith.constant 0 : i32
    return %c0_i32, %c0_i32_0 : i32, i32
  }
  func.func @transform_3(%arg0: i32) -> (i32, i32) {
    %c0_i32 = arith.constant 0 : i32
    %c0_i32_0 = arith.constant 0 : i32
    return %arg0, %c0_i32 : i32, i32
  }
}

module attributes {stable_mosaic.version = 11 : i64} {
  func.func @gru_rec_last_kernel(%arg0: i32, %arg1: memref<8x8x384xf32, #tpu.memory_space<vmem>>, %arg2: memref<8x8x1xf32, #tpu.memory_space<vmem>>, %arg3: memref<8x128xf32, #tpu.memory_space<vmem>>, %arg4: memref<128x384xbf16, #tpu.memory_space<vmem>>, %arg5: memref<1x128xf32, #tpu.memory_space<vmem>>, %arg6: memref<8x128xf32, #tpu.memory_space<vmem>>, %arg7: memref<8x128xf32, #tpu.memory_space<vmem>>) attributes {dimension_semantics = [#tpu.dimension_semantics<arbitrary>], iteration_bounds = array<i64: 1>, scalar_prefetch = 0 : i64, scratch_operands = 1 : i64, tpu.core_type = #tpu.core_type<tc>, window_params = [{transform_indices = @transform_0, window_bounds = array<i64: 8, 8, 384>}, {transform_indices = @transform_1, window_bounds = array<i64: 8, 8, 1>}, {pipeline_mode = #tpu.pipeline_mode<synchronous>, transform_indices = @transform_2, window_bounds = array<i64: 8, 128>}, {pipeline_mode = #tpu.pipeline_mode<synchronous>, transform_indices = @transform_3, window_bounds = array<i64: 128, 384>}, {pipeline_mode = #tpu.pipeline_mode<synchronous>, transform_indices = @transform_4, window_bounds = array<i64: 1, 128>}, {pipeline_mode = #tpu.pipeline_mode<synchronous>, transform_indices = @transform_5, window_bounds = array<i64: 8, 128>}]} {
    %c0_i32 = arith.constant 0 : i32
    %0 = arith.cmpi eq, %arg0, %c0_i32 : i32
    %1 = arith.extui %0 : i1 to i32
    %c0_i32_0 = arith.constant 0 : i32
    %2 = arith.cmpi ne, %1, %c0_i32_0 : i32
    scf.if %2 {
      %c0_96 = arith.constant 0 : index
      %c0_97 = arith.constant 0 : index
      %321 = vector.load %arg3[%c0_96, %c0_97] : memref<8x128xf32, #tpu.memory_space<vmem>>, vector<8x128xf32>
      %c0_98 = arith.constant 0 : index
      %c0_99 = arith.constant 0 : index
      %322 = vector.load %arg7[%c0_98, %c0_99] : memref<8x128xf32, #tpu.memory_space<vmem>>, vector<8x128xf32>
      tpu.vector_store %arg7[%c0_98, %c0_99], %321 {strides = array<i32>} : memref<8x128xf32, #tpu.memory_space<vmem>>, vector<8x128xf32>,
    } else {
    }
    %c0 = arith.constant 0 : index
    %c0_1 = arith.constant 0 : index
    %3 = vector.load %arg4[%c0, %c0_1] : memref<128x384xbf16, #tpu.memory_space<vmem>>, vector<128x384xbf16>
    %c0_2 = arith.constant 0 : index
    %c0_3 = arith.constant 0 : index
    %4 = vector.load %arg5[%c0_2, %c0_3] : memref<1x128xf32, #tpu.memory_space<vmem>>, vector<1x128xf32>
    %5 = vector.shape_cast %4 : vector<1x128xf32> to vector<1x128xf32>
    %6 = vector.broadcast %5 : vector<1x128xf32> to vector<8x128xf32>
    %c0_i32_4 = arith.constant 0 : i32
    %c0_5 = arith.constant 0 : index
    %c0_6 = arith.constant 0 : index
    %7 = vector.load %arg7[%c0_5, %c0_6] : memref<8x128xf32, #tpu.memory_space<vmem>>, vector<8x128xf32>
    %8 = arith.index_cast %c0_i32_4 : i32 to index
    %c0_7 = arith.constant 0 : index
    %c0_8 = arith.constant 0 : index
    %9 = vector.load %arg1[%8, %c0_7, %c0_8] : memref<8x8x384xf32, #tpu.memory_space<vmem>>, vector<1x8x384xf32>
    %10 = vector.shape_cast %9 : vector<1x8x384xf32> to vector<8x384xf32>
    %11 = arith.truncf %7 : vector<8x128xf32> to vector<8x128xbf16>
    %cst = arith.constant dense<0.000000e+00> : vector<8x384xf32>
    %12 = tpu.matmul %11, %3, %cst {dimension_numbers = #tpu.dot_dimension_numbers<[1], [0], [0], [1], [0, 0, 1, 1], [], []>} : vector<8x128xbf16>, vector<128x384xbf16>, vector<8x384xf32> -> vector<8x384xf32>
    %13 = vector.extract_strided_slice %10 {offsets = [0, 0], sizes = [8, 128], strides = [1, 1]} : vector<8x384xf32> to vector<8x128xf32>
    %14 = vector.extract_strided_slice %12 {offsets = [0, 0], sizes = [8, 128], strides = [1, 1]} : vector<8x384xf32> to vector<8x128xf32>
    %15 = arith.addf %13, %14 : vector<8x128xf32>
    %16 = arith.negf %15 : vector<8x128xf32>
    %17 = math.exp %16 : vector<8x128xf32>
    %cst_9 = arith.constant 1.000000e+00 : f32
    %18 = vector.broadcast %cst_9 : f32 to vector<8x128xf32>
    %19 = arith.addf %18, %17 : vector<8x128xf32>
    %20 = arith.divf %18, %19 : vector<8x128xf32>
    %21 = vector.extract_strided_slice %10 {offsets = [0, 128], sizes = [8, 128], strides = [1, 1]} : vector<8x384xf32> to vector<8x128xf32>
    %22 = vector.extract_strided_slice %12 {offsets = [0, 128], sizes = [8, 128], strides = [1, 1]} : vector<8x384xf32> to vector<8x128xf32>
    %23 = arith.addf %21, %22 : vector<8x128xf32>
    %24 = arith.negf %23 : vector<8x128xf32>
    %25 = math.exp %24 : vector<8x128xf32>
    %cst_10 = arith.constant 1.000000e+00 : f32
    %26 = vector.broadcast %cst_10 : f32 to vector<8x128xf32>
    %27 = arith.addf %26, %25 : vector<8x128xf32>
    %28 = arith.divf %26, %27 : vector<8x128xf32>
    %29 = vector.extract_strided_slice %10 {offsets = [0, 256], sizes = [8, 128], strides = [1, 1]} : vector<8x384xf32> to vector<8x128xf32>
    %30 = vector.extract_strided_slice %12 {offsets = [0, 256], sizes = [8, 128], strides = [1, 1]} : vector<8x384xf32> to vector<8x128xf32>
    %31 = arith.addf %30, %6 : vector<8x128xf32>
    %32 = arith.mulf %20, %31 : vector<8x128xf32>
    %33 = arith.addf %29, %32 : vector<8x128xf32>
    %34 = math.tanh %33 : vector<8x128xf32>
    %35 = arith.subf %7, %34 : vector<8x128xf32>
    %36 = arith.mulf %28, %35 : vector<8x128xf32>
    %37 = arith.addf %34, %36 : vector<8x128xf32>
    %38 = arith.index_cast %c0_i32_4 : i32 to index
    %c0_11 = arith.constant 0 : index
    %c0_12 = arith.constant 0 : index
    %39 = vector.load %arg2[%38, %c0_11, %c0_12] : memref<8x8x1xf32, #tpu.memory_space<vmem>>, vector<1x8x1xf32>
    %40 = vector.shape_cast %39 : vector<1x8x1xf32> to vector<8x1xf32>
    %41 = arith.subf %37, %7 : vector<8x128xf32>
    %42 = vector.broadcast %40 : vector<8x1xf32> to vector<8x128xf32>
    %43 = arith.mulf %42, %41 : vector<8x128xf32>
    %44 = arith.addf %7, %43 : vector<8x128xf32>
    %c0_13 = arith.constant 0 : index
    %c0_14 = arith.constant 0 : index
    %45 = vector.load %arg7[%c0_13, %c0_14] : memref<8x128xf32, #tpu.memory_space<vmem>>, vector<8x128xf32>
    tpu.vector_store %arg7[%c0_13, %c0_14], %44 {strides = array<i32>} : memref<8x128xf32, #tpu.memory_space<vmem>>, vector<8x128xf32>,
    %c1_i32 = arith.constant 1 : i32
    %c0_15 = arith.constant 0 : index
    %c0_16 = arith.constant 0 : index
    %46 = vector.load %arg7[%c0_15, %c0_16] : memref<8x128xf32, #tpu.memory_space<vmem>>, vector<8x128xf32>
    %47 = arith.index_cast %c1_i32 : i32 to index
    %c0_17 = arith.constant 0 : index
    %c0_18 = arith.constant 0 : index
    %48 = vector.load %arg1[%47, %c0_17, %c0_18] : memref<8x8x384xf32, #tpu.memory_space<vmem>>, vector<1x8x384xf32>
    %49 = vector.shape_cast %48 : vector<1x8x384xf32> to vector<8x384xf32>
    %50 = arith.truncf %46 : vector<8x128xf32> to vector<8x128xbf16>
    %cst_19 = arith.constant dense<0.000000e+00> : vector<8x384xf32>
    %51 = tpu.matmul %50, %3, %cst_19 {dimension_numbers = #tpu.dot_dimension_numbers<[1], [0], [0], [1], [0, 0, 1, 1], [], []>} : vector<8x128xbf16>, vector<128x384xbf16>, vector<8x384xf32> -> vector<8x384xf32>
    %52 = vector.extract_strided_slice %49 {offsets = [0, 0], sizes = [8, 128], strides = [1, 1]} : vector<8x384xf32> to vector<8x128xf32>
    %53 = vector.extract_strided_slice %51 {offsets = [0, 0], sizes = [8, 128], strides = [1, 1]} : vector<8x384xf32> to vector<8x128xf32>
    %54 = arith.addf %52, %53 : vector<8x128xf32>
    %55 = arith.negf %54 : vector<8x128xf32>
    %56 = math.exp %55 : vector<8x128xf32>
    %cst_20 = arith.constant 1.000000e+00 : f32
    %57 = vector.broadcast %cst_20 : f32 to vector<8x128xf32>
    %58 = arith.addf %57, %56 : vector<8x128xf32>
    %59 = arith.divf %57, %58 : vector<8x128xf32>
    %60 = vector.extract_strided_slice %49 {offsets = [0, 128], sizes = [8, 128], strides = [1, 1]} : vector<8x384xf32> to vector<8x128xf32>
    %61 = vector.extract_strided_slice %51 {offsets = [0, 128], sizes = [8, 128], strides = [1, 1]} : vector<8x384xf32> to vector<8x128xf32>
    %62 = arith.addf %60, %61 : vector<8x128xf32>
    %63 = arith.negf %62 : vector<8x128xf32>
    %64 = math.exp %63 : vector<8x128xf32>
    %cst_21 = arith.constant 1.000000e+00 : f32
    %65 = vector.broadcast %cst_21 : f32 to vector<8x128xf32>
    %66 = arith.addf %65, %64 : vector<8x128xf32>
    %67 = arith.divf %65, %66 : vector<8x128xf32>
    %68 = vector.extract_strided_slice %49 {offsets = [0, 256], sizes = [8, 128], strides = [1, 1]} : vector<8x384xf32> to vector<8x128xf32>
    %69 = vector.extract_strided_slice %51 {offsets = [0, 256], sizes = [8, 128], strides = [1, 1]} : vector<8x384xf32> to vector<8x128xf32>
    %70 = arith.addf %69, %6 : vector<8x128xf32>
    %71 = arith.mulf %59, %70 : vector<8x128xf32>
    %72 = arith.addf %68, %71 : vector<8x128xf32>
    %73 = math.tanh %72 : vector<8x128xf32>
    %74 = arith.subf %46, %73 : vector<8x128xf32>
    %75 = arith.mulf %67, %74 : vector<8x128xf32>
    %76 = arith.addf %73, %75 : vector<8x128xf32>
    %77 = arith.index_cast %c1_i32 : i32 to index
    %c0_22 = arith.constant 0 : index
    %c0_23 = arith.constant 0 : index
    %78 = vector.load %arg2[%77, %c0_22, %c0_23] : memref<8x8x1xf32, #tpu.memory_space<vmem>>, vector<1x8x1xf32>
    %79 = vector.shape_cast %78 : vector<1x8x1xf32> to vector<8x1xf32>
    %80 = arith.subf %76, %46 : vector<8x128xf32>
    %81 = vector.broadcast %79 : vector<8x1xf32> to vector<8x128xf32>
    %82 = arith.mulf %81, %80 : vector<8x128xf32>
    %83 = arith.addf %46, %82 : vector<8x128xf32>
    %c0_24 = arith.constant 0 : index
    %c0_25 = arith.constant 0 : index
    %84 = vector.load %arg7[%c0_24, %c0_25] : memref<8x128xf32, #tpu.memory_space<vmem>>, vector<8x128xf32>
    tpu.vector_store %arg7[%c0_24, %c0_25], %83 {strides = array<i32>} : memref<8x128xf32, #tpu.memory_space<vmem>>, vector<8x128xf32>,
    %c2_i32 = arith.constant 2 : i32
    %c0_26 = arith.constant 0 : index
    %c0_27 = arith.constant 0 : index
    %85 = vector.load %arg7[%c0_26, %c0_27] : memref<8x128xf32, #tpu.memory_space<vmem>>, vector<8x128xf32>
    %86 = arith.index_cast %c2_i32 : i32 to index
    %c0_28 = arith.constant 0 : index
    %c0_29 = arith.constant 0 : index
    %87 = vector.load %arg1[%86, %c0_28, %c0_29] : memref<8x8x384xf32, #tpu.memory_space<vmem>>, vector<1x8x384xf32>
    %88 = vector.shape_cast %87 : vector<1x8x384xf32> to vector<8x384xf32>
    %89 = arith.truncf %85 : vector<8x128xf32> to vector<8x128xbf16>
    %cst_30 = arith.constant dense<0.000000e+00> : vector<8x384xf32>
    %90 = tpu.matmul %89, %3, %cst_30 {dimension_numbers = #tpu.dot_dimension_numbers<[1], [0], [0], [1], [0, 0, 1, 1], [], []>} : vector<8x128xbf16>, vector<128x384xbf16>, vector<8x384xf32> -> vector<8x384xf32>
    %91 = vector.extract_strided_slice %88 {offsets = [0, 0], sizes = [8, 128], strides = [1, 1]} : vector<8x384xf32> to vector<8x128xf32>
    %92 = vector.extract_strided_slice %90 {offsets = [0, 0], sizes = [8, 128], strides = [1, 1]} : vector<8x384xf32> to vector<8x128xf32>
    %93 = arith.addf %91, %92 : vector<8x128xf32>
    %94 = arith.negf %93 : vector<8x128xf32>
    %95 = math.exp %94 : vector<8x128xf32>
    %cst_31 = arith.constant 1.000000e+00 : f32
    %96 = vector.broadcast %cst_31 : f32 to vector<8x128xf32>
    %97 = arith.addf %96, %95 : vector<8x128xf32>
    %98 = arith.divf %96, %97 : vector<8x128xf32>
    %99 = vector.extract_strided_slice %88 {offsets = [0, 128], sizes = [8, 128], strides = [1, 1]} : vector<8x384xf32> to vector<8x128xf32>
    %100 = vector.extract_strided_slice %90 {offsets = [0, 128], sizes = [8, 128], strides = [1, 1]} : vector<8x384xf32> to vector<8x128xf32>
    %101 = arith.addf %99, %100 : vector<8x128xf32>
    %102 = arith.negf %101 : vector<8x128xf32>
    %103 = math.exp %102 : vector<8x128xf32>
    %cst_32 = arith.constant 1.000000e+00 : f32
    %104 = vector.broadcast %cst_32 : f32 to vector<8x128xf32>
    %105 = arith.addf %104, %103 : vector<8x128xf32>
    %106 = arith.divf %104, %105 : vector<8x128xf32>
    %107 = vector.extract_strided_slice %88 {offsets = [0, 256], sizes = [8, 128], strides = [1, 1]} : vector<8x384xf32> to vector<8x128xf32>
    %108 = vector.extract_strided_slice %90 {offsets = [0, 256], sizes = [8, 128], strides = [1, 1]} : vector<8x384xf32> to vector<8x128xf32>
    %109 = arith.addf %108, %6 : vector<8x128xf32>
    %110 = arith.mulf %98, %109 : vector<8x128xf32>
    %111 = arith.addf %107, %110 : vector<8x128xf32>
    %112 = math.tanh %111 : vector<8x128xf32>
    %113 = arith.subf %85, %112 : vector<8x128xf32>
    %114 = arith.mulf %106, %113 : vector<8x128xf32>
    %115 = arith.addf %112, %114 : vector<8x128xf32>
    %116 = arith.index_cast %c2_i32 : i32 to index
    %c0_33 = arith.constant 0 : index
    %c0_34 = arith.constant 0 : index
    %117 = vector.load %arg2[%116, %c0_33, %c0_34] : memref<8x8x1xf32, #tpu.memory_space<vmem>>, vector<1x8x1xf32>
    %118 = vector.shape_cast %117 : vector<1x8x1xf32> to vector<8x1xf32>
    %119 = arith.subf %115, %85 : vector<8x128xf32>
    %120 = vector.broadcast %118 : vector<8x1xf32> to vector<8x128xf32>
    %121 = arith.mulf %120, %119 : vector<8x128xf32>
    %122 = arith.addf %85, %121 : vector<8x128xf32>
    %c0_35 = arith.constant 0 : index
    %c0_36 = arith.constant 0 : index
    %123 = vector.load %arg7[%c0_35, %c0_36] : memref<8x128xf32, #tpu.memory_space<vmem>>, vector<8x128xf32>
    tpu.vector_store %arg7[%c0_35, %c0_36], %122 {strides = array<i32>} : memref<8x128xf32, #tpu.memory_space<vmem>>, vector<8x128xf32>,
    %c3_i32 = arith.constant 3 : i32
    %c0_37 = arith.constant 0 : index
    %c0_38 = arith.constant 0 : index
    %124 = vector.load %arg7[%c0_37, %c0_38] : memref<8x128xf32, #tpu.memory_space<vmem>>, vector<8x128xf32>
    %125 = arith.index_cast %c3_i32 : i32 to index
    %c0_39 = arith.constant 0 : index
    %c0_40 = arith.constant 0 : index
    %126 = vector.load %arg1[%125, %c0_39, %c0_40] : memref<8x8x384xf32, #tpu.memory_space<vmem>>, vector<1x8x384xf32>
    %127 = vector.shape_cast %126 : vector<1x8x384xf32> to vector<8x384xf32>
    %128 = arith.truncf %124 : vector<8x128xf32> to vector<8x128xbf16>
    %cst_41 = arith.constant dense<0.000000e+00> : vector<8x384xf32>
    %129 = tpu.matmul %128, %3, %cst_41 {dimension_numbers = #tpu.dot_dimension_numbers<[1], [0], [0], [1], [0, 0, 1, 1], [], []>} : vector<8x128xbf16>, vector<128x384xbf16>, vector<8x384xf32> -> vector<8x384xf32>
    %130 = vector.extract_strided_slice %127 {offsets = [0, 0], sizes = [8, 128], strides = [1, 1]} : vector<8x384xf32> to vector<8x128xf32>
    %131 = vector.extract_strided_slice %129 {offsets = [0, 0], sizes = [8, 128], strides = [1, 1]} : vector<8x384xf32> to vector<8x128xf32>
    %132 = arith.addf %130, %131 : vector<8x128xf32>
    %133 = arith.negf %132 : vector<8x128xf32>
    %134 = math.exp %133 : vector<8x128xf32>
    %cst_42 = arith.constant 1.000000e+00 : f32
    %135 = vector.broadcast %cst_42 : f32 to vector<8x128xf32>
    %136 = arith.addf %135, %134 : vector<8x128xf32>
    %137 = arith.divf %135, %136 : vector<8x128xf32>
    %138 = vector.extract_strided_slice %127 {offsets = [0, 128], sizes = [8, 128], strides = [1, 1]} : vector<8x384xf32> to vector<8x128xf32>
    %139 = vector.extract_strided_slice %129 {offsets = [0, 128], sizes = [8, 128], strides = [1, 1]} : vector<8x384xf32> to vector<8x128xf32>
    %140 = arith.addf %138, %139 : vector<8x128xf32>
    %141 = arith.negf %140 : vector<8x128xf32>
    %142 = math.exp %141 : vector<8x128xf32>
    %cst_43 = arith.constant 1.000000e+00 : f32
    %143 = vector.broadcast %cst_43 : f32 to vector<8x128xf32>
    %144 = arith.addf %143, %142 : vector<8x128xf32>
    %145 = arith.divf %143, %144 : vector<8x128xf32>
    %146 = vector.extract_strided_slice %127 {offsets = [0, 256], sizes = [8, 128], strides = [1, 1]} : vector<8x384xf32> to vector<8x128xf32>
    %147 = vector.extract_strided_slice %129 {offsets = [0, 256], sizes = [8, 128], strides = [1, 1]} : vector<8x384xf32> to vector<8x128xf32>
    %148 = arith.addf %147, %6 : vector<8x128xf32>
    %149 = arith.mulf %137, %148 : vector<8x128xf32>
    %150 = arith.addf %146, %149 : vector<8x128xf32>
    %151 = math.tanh %150 : vector<8x128xf32>
    %152 = arith.subf %124, %151 : vector<8x128xf32>
    %153 = arith.mulf %145, %152 : vector<8x128xf32>
    %154 = arith.addf %151, %153 : vector<8x128xf32>
    %155 = arith.index_cast %c3_i32 : i32 to index
    %c0_44 = arith.constant 0 : index
    %c0_45 = arith.constant 0 : index
    %156 = vector.load %arg2[%155, %c0_44, %c0_45] : memref<8x8x1xf32, #tpu.memory_space<vmem>>, vector<1x8x1xf32>
    %157 = vector.shape_cast %156 : vector<1x8x1xf32> to vector<8x1xf32>
    %158 = arith.subf %154, %124 : vector<8x128xf32>
    %159 = vector.broadcast %157 : vector<8x1xf32> to vector<8x128xf32>
    %160 = arith.mulf %159, %158 : vector<8x128xf32>
    %161 = arith.addf %124, %160 : vector<8x128xf32>
    %c0_46 = arith.constant 0 : index
    %c0_47 = arith.constant 0 : index
    %162 = vector.load %arg7[%c0_46, %c0_47] : memref<8x128xf32, #tpu.memory_space<vmem>>, vector<8x128xf32>
    tpu.vector_store %arg7[%c0_46, %c0_47], %161 {strides = array<i32>} : memref<8x128xf32, #tpu.memory_space<vmem>>, vector<8x128xf32>,
    %c4_i32 = arith.constant 4 : i32
    %c0_48 = arith.constant 0 : index
    %c0_49 = arith.constant 0 : index
    %163 = vector.load %arg7[%c0_48, %c0_49] : memref<8x128xf32, #tpu.memory_space<vmem>>, vector<8x128xf32>
    %164 = arith.index_cast %c4_i32 : i32 to index
    %c0_50 = arith.constant 0 : index
    %c0_51 = arith.constant 0 : index
    %165 = vector.load %arg1[%164, %c0_50, %c0_51] : memref<8x8x384xf32, #tpu.memory_space<vmem>>, vector<1x8x384xf32>
    %166 = vector.shape_cast %165 : vector<1x8x384xf32> to vector<8x384xf32>
    %167 = arith.truncf %163 : vector<8x128xf32> to vector<8x128xbf16>
    %cst_52 = arith.constant dense<0.000000e+00> : vector<8x384xf32>
    %168 = tpu.matmul %167, %3, %cst_52 {dimension_numbers = #tpu.dot_dimension_numbers<[1], [0], [0], [1], [0, 0, 1, 1], [], []>} : vector<8x128xbf16>, vector<128x384xbf16>, vector<8x384xf32> -> vector<8x384xf32>
    %169 = vector.extract_strided_slice %166 {offsets = [0, 0], sizes = [8, 128], strides = [1, 1]} : vector<8x384xf32> to vector<8x128xf32>
    %170 = vector.extract_strided_slice %168 {offsets = [0, 0], sizes = [8, 128], strides = [1, 1]} : vector<8x384xf32> to vector<8x128xf32>
    %171 = arith.addf %169, %170 : vector<8x128xf32>
    %172 = arith.negf %171 : vector<8x128xf32>
    %173 = math.exp %172 : vector<8x128xf32>
    %cst_53 = arith.constant 1.000000e+00 : f32
    %174 = vector.broadcast %cst_53 : f32 to vector<8x128xf32>
    %175 = arith.addf %174, %173 : vector<8x128xf32>
    %176 = arith.divf %174, %175 : vector<8x128xf32>
    %177 = vector.extract_strided_slice %166 {offsets = [0, 128], sizes = [8, 128], strides = [1, 1]} : vector<8x384xf32> to vector<8x128xf32>
    %178 = vector.extract_strided_slice %168 {offsets = [0, 128], sizes = [8, 128], strides = [1, 1]} : vector<8x384xf32> to vector<8x128xf32>
    %179 = arith.addf %177, %178 : vector<8x128xf32>
    %180 = arith.negf %179 : vector<8x128xf32>
    %181 = math.exp %180 : vector<8x128xf32>
    %cst_54 = arith.constant 1.000000e+00 : f32
    %182 = vector.broadcast %cst_54 : f32 to vector<8x128xf32>
    %183 = arith.addf %182, %181 : vector<8x128xf32>
    %184 = arith.divf %182, %183 : vector<8x128xf32>
    %185 = vector.extract_strided_slice %166 {offsets = [0, 256], sizes = [8, 128], strides = [1, 1]} : vector<8x384xf32> to vector<8x128xf32>
    %186 = vector.extract_strided_slice %168 {offsets = [0, 256], sizes = [8, 128], strides = [1, 1]} : vector<8x384xf32> to vector<8x128xf32>
    %187 = arith.addf %186, %6 : vector<8x128xf32>
    %188 = arith.mulf %176, %187 : vector<8x128xf32>
    %189 = arith.addf %185, %188 : vector<8x128xf32>
    %190 = math.tanh %189 : vector<8x128xf32>
    %191 = arith.subf %163, %190 : vector<8x128xf32>
    %192 = arith.mulf %184, %191 : vector<8x128xf32>
    %193 = arith.addf %190, %192 : vector<8x128xf32>
    %194 = arith.index_cast %c4_i32 : i32 to index
    %c0_55 = arith.constant 0 : index
    %c0_56 = arith.constant 0 : index
    %195 = vector.load %arg2[%194, %c0_55, %c0_56] : memref<8x8x1xf32, #tpu.memory_space<vmem>>, vector<1x8x1xf32>
    %196 = vector.shape_cast %195 : vector<1x8x1xf32> to vector<8x1xf32>
    %197 = arith.subf %193, %163 : vector<8x128xf32>
    %198 = vector.broadcast %196 : vector<8x1xf32> to vector<8x128xf32>
    %199 = arith.mulf %198, %197 : vector<8x128xf32>
    %200 = arith.addf %163, %199 : vector<8x128xf32>
    %c0_57 = arith.constant 0 : index
    %c0_58 = arith.constant 0 : index
    %201 = vector.load %arg7[%c0_57, %c0_58] : memref<8x128xf32, #tpu.memory_space<vmem>>, vector<8x128xf32>
    tpu.vector_store %arg7[%c0_57, %c0_58], %200 {strides = array<i32>} : memref<8x128xf32, #tpu.memory_space<vmem>>, vector<8x128xf32>,
    %c5_i32 = arith.constant 5 : i32
    %c0_59 = arith.constant 0 : index
    %c0_60 = arith.constant 0 : index
    %202 = vector.load %arg7[%c0_59, %c0_60] : memref<8x128xf32, #tpu.memory_space<vmem>>, vector<8x128xf32>
    %203 = arith.index_cast %c5_i32 : i32 to index
    %c0_61 = arith.constant 0 : index
    %c0_62 = arith.constant 0 : index
    %204 = vector.load %arg1[%203, %c0_61, %c0_62] : memref<8x8x384xf32, #tpu.memory_space<vmem>>, vector<1x8x384xf32>
    %205 = vector.shape_cast %204 : vector<1x8x384xf32> to vector<8x384xf32>
    %206 = arith.truncf %202 : vector<8x128xf32> to vector<8x128xbf16>
    %cst_63 = arith.constant dense<0.000000e+00> : vector<8x384xf32>
    %207 = tpu.matmul %206, %3, %cst_63 {dimension_numbers = #tpu.dot_dimension_numbers<[1], [0], [0], [1], [0, 0, 1, 1], [], []>} : vector<8x128xbf16>, vector<128x384xbf16>, vector<8x384xf32> -> vector<8x384xf32>
    %208 = vector.extract_strided_slice %205 {offsets = [0, 0], sizes = [8, 128], strides = [1, 1]} : vector<8x384xf32> to vector<8x128xf32>
    %209 = vector.extract_strided_slice %207 {offsets = [0, 0], sizes = [8, 128], strides = [1, 1]} : vector<8x384xf32> to vector<8x128xf32>
    %210 = arith.addf %208, %209 : vector<8x128xf32>
    %211 = arith.negf %210 : vector<8x128xf32>
    %212 = math.exp %211 : vector<8x128xf32>
    %cst_64 = arith.constant 1.000000e+00 : f32
    %213 = vector.broadcast %cst_64 : f32 to vector<8x128xf32>
    %214 = arith.addf %213, %212 : vector<8x128xf32>
    %215 = arith.divf %213, %214 : vector<8x128xf32>
    %216 = vector.extract_strided_slice %205 {offsets = [0, 128], sizes = [8, 128], strides = [1, 1]} : vector<8x384xf32> to vector<8x128xf32>
    %217 = vector.extract_strided_slice %207 {offsets = [0, 128], sizes = [8, 128], strides = [1, 1]} : vector<8x384xf32> to vector<8x128xf32>
    %218 = arith.addf %216, %217 : vector<8x128xf32>
    %219 = arith.negf %218 : vector<8x128xf32>
    %220 = math.exp %219 : vector<8x128xf32>
    %cst_65 = arith.constant 1.000000e+00 : f32
    %221 = vector.broadcast %cst_65 : f32 to vector<8x128xf32>
    %222 = arith.addf %221, %220 : vector<8x128xf32>
    %223 = arith.divf %221, %222 : vector<8x128xf32>
    %224 = vector.extract_strided_slice %205 {offsets = [0, 256], sizes = [8, 128], strides = [1, 1]} : vector<8x384xf32> to vector<8x128xf32>
    %225 = vector.extract_strided_slice %207 {offsets = [0, 256], sizes = [8, 128], strides = [1, 1]} : vector<8x384xf32> to vector<8x128xf32>
    %226 = arith.addf %225, %6 : vector<8x128xf32>
    %227 = arith.mulf %215, %226 : vector<8x128xf32>
    %228 = arith.addf %224, %227 : vector<8x128xf32>
    %229 = math.tanh %228 : vector<8x128xf32>
    %230 = arith.subf %202, %229 : vector<8x128xf32>
    %231 = arith.mulf %223, %230 : vector<8x128xf32>
    %232 = arith.addf %229, %231 : vector<8x128xf32>
    %233 = arith.index_cast %c5_i32 : i32 to index
    %c0_66 = arith.constant 0 : index
    %c0_67 = arith.constant 0 : index
    %234 = vector.load %arg2[%233, %c0_66, %c0_67] : memref<8x8x1xf32, #tpu.memory_space<vmem>>, vector<1x8x1xf32>
    %235 = vector.shape_cast %234 : vector<1x8x1xf32> to vector<8x1xf32>
    %236 = arith.subf %232, %202 : vector<8x128xf32>
    %237 = vector.broadcast %235 : vector<8x1xf32> to vector<8x128xf32>
    %238 = arith.mulf %237, %236 : vector<8x128xf32>
    %239 = arith.addf %202, %238 : vector<8x128xf32>
    %c0_68 = arith.constant 0 : index
    %c0_69 = arith.constant 0 : index
    %240 = vector.load %arg7[%c0_68, %c0_69] : memref<8x128xf32, #tpu.memory_space<vmem>>, vector<8x128xf32>
    tpu.vector_store %arg7[%c0_68, %c0_69], %239 {strides = array<i32>} : memref<8x128xf32, #tpu.memory_space<vmem>>, vector<8x128xf32>,
    %c6_i32 = arith.constant 6 : i32
    %c0_70 = arith.constant 0 : index
    %c0_71 = arith.constant 0 : index
    %241 = vector.load %arg7[%c0_70, %c0_71] : memref<8x128xf32, #tpu.memory_space<vmem>>, vector<8x128xf32>
    %242 = arith.index_cast %c6_i32 : i32 to index
    %c0_72 = arith.constant 0 : index
    %c0_73 = arith.constant 0 : index
    %243 = vector.load %arg1[%242, %c0_72, %c0_73] : memref<8x8x384xf32, #tpu.memory_space<vmem>>, vector<1x8x384xf32>
    %244 = vector.shape_cast %243 : vector<1x8x384xf32> to vector<8x384xf32>
    %245 = arith.truncf %241 : vector<8x128xf32> to vector<8x128xbf16>
    %cst_74 = arith.constant dense<0.000000e+00> : vector<8x384xf32>
    %246 = tpu.matmul %245, %3, %cst_74 {dimension_numbers = #tpu.dot_dimension_numbers<[1], [0], [0], [1], [0, 0, 1, 1], [], []>} : vector<8x128xbf16>, vector<128x384xbf16>, vector<8x384xf32> -> vector<8x384xf32>
    %247 = vector.extract_strided_slice %244 {offsets = [0, 0], sizes = [8, 128], strides = [1, 1]} : vector<8x384xf32> to vector<8x128xf32>
    %248 = vector.extract_strided_slice %246 {offsets = [0, 0], sizes = [8, 128], strides = [1, 1]} : vector<8x384xf32> to vector<8x128xf32>
    %249 = arith.addf %247, %248 : vector<8x128xf32>
    %250 = arith.negf %249 : vector<8x128xf32>
    %251 = math.exp %250 : vector<8x128xf32>
    %cst_75 = arith.constant 1.000000e+00 : f32
    %252 = vector.broadcast %cst_75 : f32 to vector<8x128xf32>
    %253 = arith.addf %252, %251 : vector<8x128xf32>
    %254 = arith.divf %252, %253 : vector<8x128xf32>
    %255 = vector.extract_strided_slice %244 {offsets = [0, 128], sizes = [8, 128], strides = [1, 1]} : vector<8x384xf32> to vector<8x128xf32>
    %256 = vector.extract_strided_slice %246 {offsets = [0, 128], sizes = [8, 128], strides = [1, 1]} : vector<8x384xf32> to vector<8x128xf32>
    %257 = arith.addf %255, %256 : vector<8x128xf32>
    %258 = arith.negf %257 : vector<8x128xf32>
    %259 = math.exp %258 : vector<8x128xf32>
    %cst_76 = arith.constant 1.000000e+00 : f32
    %260 = vector.broadcast %cst_76 : f32 to vector<8x128xf32>
    %261 = arith.addf %260, %259 : vector<8x128xf32>
    %262 = arith.divf %260, %261 : vector<8x128xf32>
    %263 = vector.extract_strided_slice %244 {offsets = [0, 256], sizes = [8, 128], strides = [1, 1]} : vector<8x384xf32> to vector<8x128xf32>
    %264 = vector.extract_strided_slice %246 {offsets = [0, 256], sizes = [8, 128], strides = [1, 1]} : vector<8x384xf32> to vector<8x128xf32>
    %265 = arith.addf %264, %6 : vector<8x128xf32>
    %266 = arith.mulf %254, %265 : vector<8x128xf32>
    %267 = arith.addf %263, %266 : vector<8x128xf32>
    %268 = math.tanh %267 : vector<8x128xf32>
    %269 = arith.subf %241, %268 : vector<8x128xf32>
    %270 = arith.mulf %262, %269 : vector<8x128xf32>
    %271 = arith.addf %268, %270 : vector<8x128xf32>
    %272 = arith.index_cast %c6_i32 : i32 to index
    %c0_77 = arith.constant 0 : index
    %c0_78 = arith.constant 0 : index
    %273 = vector.load %arg2[%272, %c0_77, %c0_78] : memref<8x8x1xf32, #tpu.memory_space<vmem>>, vector<1x8x1xf32>
    %274 = vector.shape_cast %273 : vector<1x8x1xf32> to vector<8x1xf32>
    %275 = arith.subf %271, %241 : vector<8x128xf32>
    %276 = vector.broadcast %274 : vector<8x1xf32> to vector<8x128xf32>
    %277 = arith.mulf %276, %275 : vector<8x128xf32>
    %278 = arith.addf %241, %277 : vector<8x128xf32>
    %c0_79 = arith.constant 0 : index
    %c0_80 = arith.constant 0 : index
    %279 = vector.load %arg7[%c0_79, %c0_80] : memref<8x128xf32, #tpu.memory_space<vmem>>, vector<8x128xf32>
    tpu.vector_store %arg7[%c0_79, %c0_80], %278 {strides = array<i32>} : memref<8x128xf32, #tpu.memory_space<vmem>>, vector<8x128xf32>,
    %c7_i32 = arith.constant 7 : i32
    %c0_81 = arith.constant 0 : index
    %c0_82 = arith.constant 0 : index
    %280 = vector.load %arg7[%c0_81, %c0_82] : memref<8x128xf32, #tpu.memory_space<vmem>>, vector<8x128xf32>
    %281 = arith.index_cast %c7_i32 : i32 to index
    %c0_83 = arith.constant 0 : index
    %c0_84 = arith.constant 0 : index
    %282 = vector.load %arg1[%281, %c0_83, %c0_84] : memref<8x8x384xf32, #tpu.memory_space<vmem>>, vector<1x8x384xf32>
    %283 = vector.shape_cast %282 : vector<1x8x384xf32> to vector<8x384xf32>
    %284 = arith.truncf %280 : vector<8x128xf32> to vector<8x128xbf16>
    %cst_85 = arith.constant dense<0.000000e+00> : vector<8x384xf32>
    %285 = tpu.matmul %284, %3, %cst_85 {dimension_numbers = #tpu.dot_dimension_numbers<[1], [0], [0], [1], [0, 0, 1, 1], [], []>} : vector<8x128xbf16>, vector<128x384xbf16>, vector<8x384xf32> -> vector<8x384xf32>
    %286 = vector.extract_strided_slice %283 {offsets = [0, 0], sizes = [8, 128], strides = [1, 1]} : vector<8x384xf32> to vector<8x128xf32>
    %287 = vector.extract_strided_slice %285 {offsets = [0, 0], sizes = [8, 128], strides = [1, 1]} : vector<8x384xf32> to vector<8x128xf32>
    %288 = arith.addf %286, %287 : vector<8x128xf32>
    %289 = arith.negf %288 : vector<8x128xf32>
    %290 = math.exp %289 : vector<8x128xf32>
    %cst_86 = arith.constant 1.000000e+00 : f32
    %291 = vector.broadcast %cst_86 : f32 to vector<8x128xf32>
    %292 = arith.addf %291, %290 : vector<8x128xf32>
    %293 = arith.divf %291, %292 : vector<8x128xf32>
    %294 = vector.extract_strided_slice %283 {offsets = [0, 128], sizes = [8, 128], strides = [1, 1]} : vector<8x384xf32> to vector<8x128xf32>
    %295 = vector.extract_strided_slice %285 {offsets = [0, 128], sizes = [8, 128], strides = [1, 1]} : vector<8x384xf32> to vector<8x128xf32>
    %296 = arith.addf %294, %295 : vector<8x128xf32>
    %297 = arith.negf %296 : vector<8x128xf32>
    %298 = math.exp %297 : vector<8x128xf32>
    %cst_87 = arith.constant 1.000000e+00 : f32
    %299 = vector.broadcast %cst_87 : f32 to vector<8x128xf32>
    %300 = arith.addf %299, %298 : vector<8x128xf32>
    %301 = arith.divf %299, %300 : vector<8x128xf32>
    %302 = vector.extract_strided_slice %283 {offsets = [0, 256], sizes = [8, 128], strides = [1, 1]} : vector<8x384xf32> to vector<8x128xf32>
    %303 = vector.extract_strided_slice %285 {offsets = [0, 256], sizes = [8, 128], strides = [1, 1]} : vector<8x384xf32> to vector<8x128xf32>
    %304 = arith.addf %303, %6 : vector<8x128xf32>
    %305 = arith.mulf %293, %304 : vector<8x128xf32>
    %306 = arith.addf %302, %305 : vector<8x128xf32>
    %307 = math.tanh %306 : vector<8x128xf32>
    %308 = arith.subf %280, %307 : vector<8x128xf32>
    %309 = arith.mulf %301, %308 : vector<8x128xf32>
    %310 = arith.addf %307, %309 : vector<8x128xf32>
    %311 = arith.index_cast %c7_i32 : i32 to index
    %c0_88 = arith.constant 0 : index
    %c0_89 = arith.constant 0 : index
    %312 = vector.load %arg2[%311, %c0_88, %c0_89] : memref<8x8x1xf32, #tpu.memory_space<vmem>>, vector<1x8x1xf32>
    %313 = vector.shape_cast %312 : vector<1x8x1xf32> to vector<8x1xf32>
    %314 = arith.subf %310, %280 : vector<8x128xf32>
    %315 = vector.broadcast %313 : vector<8x1xf32> to vector<8x128xf32>
    %316 = arith.mulf %315, %314 : vector<8x128xf32>
    %317 = arith.addf %280, %316 : vector<8x128xf32>
    %c0_90 = arith.constant 0 : index
    %c0_91 = arith.constant 0 : index
    %318 = vector.load %arg7[%c0_90, %c0_91] : memref<8x128xf32, #tpu.memory_space<vmem>>, vector<8x128xf32>
    tpu.vector_store %arg7[%c0_90, %c0_91], %317 {strides = array<i32>} : memref<8x128xf32, #tpu.memory_space<vmem>>, vector<8x128xf32>,
    %c8_i32 = arith.constant 8 : i32
    %c0_92 = arith.constant 0 : index
    %c0_93 = arith.constant 0 : index
    %319 = vector.load %arg7[%c0_92, %c0_93] : memref<8x128xf32, #tpu.memory_space<vmem>>, vector<8x128xf32>
    %c0_94 = arith.constant 0 : index
    %c0_95 = arith.constant 0 : index
    %320 = vector.load %arg6[%c0_94, %c0_95] : memref<8x128xf32, #tpu.memory_space<vmem>>, vector<8x128xf32>
    tpu.vector_store %arg6[%c0_94, %c0_95], %319 {strides = array<i32>} : memref<8x128xf32, #tpu.memory_space<vmem>>, vector<8x128xf32>,
    return
  }
  func.func @transform_0(%arg0: i32) -> (i32, i32, i32) {
    %c0_i32 = arith.constant 0 : i32
    %c0_i32_0 = arith.constant 0 : i32
    %c0_i32_1 = arith.constant 0 : i32
    return %arg0, %c0_i32, %c0_i32_0 : i32, i32, i32
  }
  func.func @transform_1(%arg0: i32) -> (i32, i32, i32) {
    %c0_i32 = arith.constant 0 : i32
    %c0_i32_0 = arith.constant 0 : i32
    %c0_i32_1 = arith.constant 0 : i32
    return %arg0, %c0_i32, %c0_i32_0 : i32, i32, i32
  }
  func.func @transform_2(%arg0: i32) -> (i32, i32) {
    %c0_i32 = arith.constant 0 : i32
    %c0_i32_0 = arith.constant 0 : i32
    %c0_i32_1 = arith.constant 0 : i32
    return %c0_i32, %c0_i32_0 : i32, i32
  }
  func.func @transform_3(%arg0: i32) -> (i32, i32) {
    %c0_i32 = arith.constant 0 : i32
    %c0_i32_0 = arith.constant 0 : i32
    %c0_i32_1 = arith.constant 0 : i32
    return %c0_i32, %c0_i32_0 : i32, i32
  }
  func.func @transform_4(%arg0: i32) -> (i32, i32) {
    %c0_i32 = arith.constant 0 : i32
    %c0_i32_0 = arith.constant 0 : i32
    %c0_i32_1 = arith.constant 0 : i32
    return %c0_i32, %c0_i32_0 : i32, i32
  }
  func.func @transform_5(%arg0: i32) -> (i32, i32) {
    %c0_i32 = arith.constant 0 : i32
    %c0_i32_0 = arith.constant 0 : i32
    %c0_i32_1 = arith.constant 0 : i32
    return %c0_i32, %c0_i32_0 : i32, i32
  }
}

module attributes {stable_mosaic.version = 11 : i64} {
  func.func @gru_rec_seq_kernel(%arg0: i32, %arg1: memref<8x8x384xf32, #tpu.memory_space<vmem>>, %arg2: memref<8x8x1xf32, #tpu.memory_space<vmem>>, %arg3: memref<8x128xf32, #tpu.memory_space<vmem>>, %arg4: memref<128x384xbf16, #tpu.memory_space<vmem>>, %arg5: memref<1x128xf32, #tpu.memory_space<vmem>>, %arg6: memref<8x8x128xbf16, #tpu.memory_space<vmem>>, %arg7: memref<8x128xf32, #tpu.memory_space<vmem>>) attributes {dimension_semantics = [#tpu.dimension_semantics<arbitrary>], iteration_bounds = array<i64: 1>, scalar_prefetch = 0 : i64, scratch_operands = 1 : i64, tpu.core_type = #tpu.core_type<tc>, window_params = [{transform_indices = @transform_0, window_bounds = array<i64: 8, 8, 384>}, {transform_indices = @transform_1, window_bounds = array<i64: 8, 8, 1>}, {pipeline_mode = #tpu.pipeline_mode<synchronous>, transform_indices = @transform_2, window_bounds = array<i64: 8, 128>}, {pipeline_mode = #tpu.pipeline_mode<synchronous>, transform_indices = @transform_3, window_bounds = array<i64: 128, 384>}, {pipeline_mode = #tpu.pipeline_mode<synchronous>, transform_indices = @transform_4, window_bounds = array<i64: 1, 128>}, {transform_indices = @transform_5, window_bounds = array<i64: 8, 8, 128>}]} {
    %c0_i32 = arith.constant 0 : i32
    %0 = arith.cmpi eq, %arg0, %c0_i32 : i32
    %1 = arith.extui %0 : i1 to i32
    %c0_i32_0 = arith.constant 0 : i32
    %2 = arith.cmpi ne, %1, %c0_i32_0 : i32
    scf.if %2 {
      %c0_108 = arith.constant 0 : index
      %c0_109 = arith.constant 0 : index
      %359 = vector.load %arg3[%c0_108, %c0_109] : memref<8x128xf32, #tpu.memory_space<vmem>>, vector<8x128xf32>
      %c0_110 = arith.constant 0 : index
      %c0_111 = arith.constant 0 : index
      %360 = vector.load %arg7[%c0_110, %c0_111] : memref<8x128xf32, #tpu.memory_space<vmem>>, vector<8x128xf32>
      tpu.vector_store %arg7[%c0_110, %c0_111], %359 {strides = array<i32>} : memref<8x128xf32, #tpu.memory_space<vmem>>, vector<8x128xf32>,
    } else {
    }
    %c0 = arith.constant 0 : index
    %c0_1 = arith.constant 0 : index
    %3 = vector.load %arg4[%c0, %c0_1] : memref<128x384xbf16, #tpu.memory_space<vmem>>, vector<128x384xbf16>
    %c0_2 = arith.constant 0 : index
    %c0_3 = arith.constant 0 : index
    %4 = vector.load %arg5[%c0_2, %c0_3] : memref<1x128xf32, #tpu.memory_space<vmem>>, vector<1x128xf32>
    %5 = vector.shape_cast %4 : vector<1x128xf32> to vector<1x128xf32>
    %6 = vector.broadcast %5 : vector<1x128xf32> to vector<8x128xf32>
    %c0_i32_4 = arith.constant 0 : i32
    %c0_5 = arith.constant 0 : index
    %c0_6 = arith.constant 0 : index
    %7 = vector.load %arg7[%c0_5, %c0_6] : memref<8x128xf32, #tpu.memory_space<vmem>>, vector<8x128xf32>
    %8 = arith.index_cast %c0_i32_4 : i32 to index
    %c0_7 = arith.constant 0 : index
    %c0_8 = arith.constant 0 : index
    %9 = vector.load %arg1[%8, %c0_7, %c0_8] : memref<8x8x384xf32, #tpu.memory_space<vmem>>, vector<1x8x384xf32>
    %10 = vector.shape_cast %9 : vector<1x8x384xf32> to vector<8x384xf32>
    %11 = arith.truncf %7 : vector<8x128xf32> to vector<8x128xbf16>
    %cst = arith.constant dense<0.000000e+00> : vector<8x384xf32>
    %12 = tpu.matmul %11, %3, %cst {dimension_numbers = #tpu.dot_dimension_numbers<[1], [0], [0], [1], [0, 0, 1, 1], [], []>} : vector<8x128xbf16>, vector<128x384xbf16>, vector<8x384xf32> -> vector<8x384xf32>
    %13 = vector.extract_strided_slice %10 {offsets = [0, 0], sizes = [8, 128], strides = [1, 1]} : vector<8x384xf32> to vector<8x128xf32>
    %14 = vector.extract_strided_slice %12 {offsets = [0, 0], sizes = [8, 128], strides = [1, 1]} : vector<8x384xf32> to vector<8x128xf32>
    %15 = arith.addf %13, %14 : vector<8x128xf32>
    %16 = arith.negf %15 : vector<8x128xf32>
    %17 = math.exp %16 : vector<8x128xf32>
    %cst_9 = arith.constant 1.000000e+00 : f32
    %18 = vector.broadcast %cst_9 : f32 to vector<8x128xf32>
    %19 = arith.addf %18, %17 : vector<8x128xf32>
    %20 = arith.divf %18, %19 : vector<8x128xf32>
    %21 = vector.extract_strided_slice %10 {offsets = [0, 128], sizes = [8, 128], strides = [1, 1]} : vector<8x384xf32> to vector<8x128xf32>
    %22 = vector.extract_strided_slice %12 {offsets = [0, 128], sizes = [8, 128], strides = [1, 1]} : vector<8x384xf32> to vector<8x128xf32>
    %23 = arith.addf %21, %22 : vector<8x128xf32>
    %24 = arith.negf %23 : vector<8x128xf32>
    %25 = math.exp %24 : vector<8x128xf32>
    %cst_10 = arith.constant 1.000000e+00 : f32
    %26 = vector.broadcast %cst_10 : f32 to vector<8x128xf32>
    %27 = arith.addf %26, %25 : vector<8x128xf32>
    %28 = arith.divf %26, %27 : vector<8x128xf32>
    %29 = vector.extract_strided_slice %10 {offsets = [0, 256], sizes = [8, 128], strides = [1, 1]} : vector<8x384xf32> to vector<8x128xf32>
    %30 = vector.extract_strided_slice %12 {offsets = [0, 256], sizes = [8, 128], strides = [1, 1]} : vector<8x384xf32> to vector<8x128xf32>
    %31 = arith.addf %30, %6 : vector<8x128xf32>
    %32 = arith.mulf %20, %31 : vector<8x128xf32>
    %33 = arith.addf %29, %32 : vector<8x128xf32>
    %34 = math.tanh %33 : vector<8x128xf32>
    %35 = arith.subf %7, %34 : vector<8x128xf32>
    %36 = arith.mulf %28, %35 : vector<8x128xf32>
    %37 = arith.addf %34, %36 : vector<8x128xf32>
    %38 = arith.index_cast %c0_i32_4 : i32 to index
    %c0_11 = arith.constant 0 : index
    %c0_12 = arith.constant 0 : index
    %39 = vector.load %arg2[%38, %c0_11, %c0_12] : memref<8x8x1xf32, #tpu.memory_space<vmem>>, vector<1x8x1xf32>
    %40 = vector.shape_cast %39 : vector<1x8x1xf32> to vector<8x1xf32>
    %41 = arith.subf %37, %7 : vector<8x128xf32>
    %42 = vector.broadcast %40 : vector<8x1xf32> to vector<8x128xf32>
    %43 = arith.mulf %42, %41 : vector<8x128xf32>
    %44 = arith.addf %7, %43 : vector<8x128xf32>
    %c0_13 = arith.constant 0 : index
    %c0_14 = arith.constant 0 : index
    %45 = vector.load %arg7[%c0_13, %c0_14] : memref<8x128xf32, #tpu.memory_space<vmem>>, vector<8x128xf32>
    tpu.vector_store %arg7[%c0_13, %c0_14], %44 {strides = array<i32>} : memref<8x128xf32, #tpu.memory_space<vmem>>, vector<8x128xf32>,
    %46 = arith.truncf %44 : vector<8x128xf32> to vector<8x128xbf16>
    %47 = arith.index_cast %c0_i32_4 : i32 to index
    %c0_15 = arith.constant 0 : index
    %c0_16 = arith.constant 0 : index
    %48 = vector.load %arg6[%47, %c0_15, %c0_16] : memref<8x8x128xbf16, #tpu.memory_space<vmem>>, vector<1x8x128xbf16>
    %49 = vector.shape_cast %48 : vector<1x8x128xbf16> to vector<8x128xbf16>
    %50 = vector.shape_cast %46 : vector<8x128xbf16> to vector<1x8x128xbf16>
    tpu.vector_store %arg6[%47, %c0_15, %c0_16], %50 {strides = array<i32>} : memref<8x8x128xbf16, #tpu.memory_space<vmem>>, vector<1x8x128xbf16>,
    %c1_i32 = arith.constant 1 : i32
    %c0_17 = arith.constant 0 : index
    %c0_18 = arith.constant 0 : index
    %51 = vector.load %arg7[%c0_17, %c0_18] : memref<8x128xf32, #tpu.memory_space<vmem>>, vector<8x128xf32>
    %52 = arith.index_cast %c1_i32 : i32 to index
    %c0_19 = arith.constant 0 : index
    %c0_20 = arith.constant 0 : index
    %53 = vector.load %arg1[%52, %c0_19, %c0_20] : memref<8x8x384xf32, #tpu.memory_space<vmem>>, vector<1x8x384xf32>
    %54 = vector.shape_cast %53 : vector<1x8x384xf32> to vector<8x384xf32>
    %55 = arith.truncf %51 : vector<8x128xf32> to vector<8x128xbf16>
    %cst_21 = arith.constant dense<0.000000e+00> : vector<8x384xf32>
    %56 = tpu.matmul %55, %3, %cst_21 {dimension_numbers = #tpu.dot_dimension_numbers<[1], [0], [0], [1], [0, 0, 1, 1], [], []>} : vector<8x128xbf16>, vector<128x384xbf16>, vector<8x384xf32> -> vector<8x384xf32>
    %57 = vector.extract_strided_slice %54 {offsets = [0, 0], sizes = [8, 128], strides = [1, 1]} : vector<8x384xf32> to vector<8x128xf32>
    %58 = vector.extract_strided_slice %56 {offsets = [0, 0], sizes = [8, 128], strides = [1, 1]} : vector<8x384xf32> to vector<8x128xf32>
    %59 = arith.addf %57, %58 : vector<8x128xf32>
    %60 = arith.negf %59 : vector<8x128xf32>
    %61 = math.exp %60 : vector<8x128xf32>
    %cst_22 = arith.constant 1.000000e+00 : f32
    %62 = vector.broadcast %cst_22 : f32 to vector<8x128xf32>
    %63 = arith.addf %62, %61 : vector<8x128xf32>
    %64 = arith.divf %62, %63 : vector<8x128xf32>
    %65 = vector.extract_strided_slice %54 {offsets = [0, 128], sizes = [8, 128], strides = [1, 1]} : vector<8x384xf32> to vector<8x128xf32>
    %66 = vector.extract_strided_slice %56 {offsets = [0, 128], sizes = [8, 128], strides = [1, 1]} : vector<8x384xf32> to vector<8x128xf32>
    %67 = arith.addf %65, %66 : vector<8x128xf32>
    %68 = arith.negf %67 : vector<8x128xf32>
    %69 = math.exp %68 : vector<8x128xf32>
    %cst_23 = arith.constant 1.000000e+00 : f32
    %70 = vector.broadcast %cst_23 : f32 to vector<8x128xf32>
    %71 = arith.addf %70, %69 : vector<8x128xf32>
    %72 = arith.divf %70, %71 : vector<8x128xf32>
    %73 = vector.extract_strided_slice %54 {offsets = [0, 256], sizes = [8, 128], strides = [1, 1]} : vector<8x384xf32> to vector<8x128xf32>
    %74 = vector.extract_strided_slice %56 {offsets = [0, 256], sizes = [8, 128], strides = [1, 1]} : vector<8x384xf32> to vector<8x128xf32>
    %75 = arith.addf %74, %6 : vector<8x128xf32>
    %76 = arith.mulf %64, %75 : vector<8x128xf32>
    %77 = arith.addf %73, %76 : vector<8x128xf32>
    %78 = math.tanh %77 : vector<8x128xf32>
    %79 = arith.subf %51, %78 : vector<8x128xf32>
    %80 = arith.mulf %72, %79 : vector<8x128xf32>
    %81 = arith.addf %78, %80 : vector<8x128xf32>
    %82 = arith.index_cast %c1_i32 : i32 to index
    %c0_24 = arith.constant 0 : index
    %c0_25 = arith.constant 0 : index
    %83 = vector.load %arg2[%82, %c0_24, %c0_25] : memref<8x8x1xf32, #tpu.memory_space<vmem>>, vector<1x8x1xf32>
    %84 = vector.shape_cast %83 : vector<1x8x1xf32> to vector<8x1xf32>
    %85 = arith.subf %81, %51 : vector<8x128xf32>
    %86 = vector.broadcast %84 : vector<8x1xf32> to vector<8x128xf32>
    %87 = arith.mulf %86, %85 : vector<8x128xf32>
    %88 = arith.addf %51, %87 : vector<8x128xf32>
    %c0_26 = arith.constant 0 : index
    %c0_27 = arith.constant 0 : index
    %89 = vector.load %arg7[%c0_26, %c0_27] : memref<8x128xf32, #tpu.memory_space<vmem>>, vector<8x128xf32>
    tpu.vector_store %arg7[%c0_26, %c0_27], %88 {strides = array<i32>} : memref<8x128xf32, #tpu.memory_space<vmem>>, vector<8x128xf32>,
    %90 = arith.truncf %88 : vector<8x128xf32> to vector<8x128xbf16>
    %91 = arith.index_cast %c1_i32 : i32 to index
    %c0_28 = arith.constant 0 : index
    %c0_29 = arith.constant 0 : index
    %92 = vector.load %arg6[%91, %c0_28, %c0_29] : memref<8x8x128xbf16, #tpu.memory_space<vmem>>, vector<1x8x128xbf16>
    %93 = vector.shape_cast %92 : vector<1x8x128xbf16> to vector<8x128xbf16>
    %94 = vector.shape_cast %90 : vector<8x128xbf16> to vector<1x8x128xbf16>
    tpu.vector_store %arg6[%91, %c0_28, %c0_29], %94 {strides = array<i32>} : memref<8x8x128xbf16, #tpu.memory_space<vmem>>, vector<1x8x128xbf16>,
    %c2_i32 = arith.constant 2 : i32
    %c0_30 = arith.constant 0 : index
    %c0_31 = arith.constant 0 : index
    %95 = vector.load %arg7[%c0_30, %c0_31] : memref<8x128xf32, #tpu.memory_space<vmem>>, vector<8x128xf32>
    %96 = arith.index_cast %c2_i32 : i32 to index
    %c0_32 = arith.constant 0 : index
    %c0_33 = arith.constant 0 : index
    %97 = vector.load %arg1[%96, %c0_32, %c0_33] : memref<8x8x384xf32, #tpu.memory_space<vmem>>, vector<1x8x384xf32>
    %98 = vector.shape_cast %97 : vector<1x8x384xf32> to vector<8x384xf32>
    %99 = arith.truncf %95 : vector<8x128xf32> to vector<8x128xbf16>
    %cst_34 = arith.constant dense<0.000000e+00> : vector<8x384xf32>
    %100 = tpu.matmul %99, %3, %cst_34 {dimension_numbers = #tpu.dot_dimension_numbers<[1], [0], [0], [1], [0, 0, 1, 1], [], []>} : vector<8x128xbf16>, vector<128x384xbf16>, vector<8x384xf32> -> vector<8x384xf32>
    %101 = vector.extract_strided_slice %98 {offsets = [0, 0], sizes = [8, 128], strides = [1, 1]} : vector<8x384xf32> to vector<8x128xf32>
    %102 = vector.extract_strided_slice %100 {offsets = [0, 0], sizes = [8, 128], strides = [1, 1]} : vector<8x384xf32> to vector<8x128xf32>
    %103 = arith.addf %101, %102 : vector<8x128xf32>
    %104 = arith.negf %103 : vector<8x128xf32>
    %105 = math.exp %104 : vector<8x128xf32>
    %cst_35 = arith.constant 1.000000e+00 : f32
    %106 = vector.broadcast %cst_35 : f32 to vector<8x128xf32>
    %107 = arith.addf %106, %105 : vector<8x128xf32>
    %108 = arith.divf %106, %107 : vector<8x128xf32>
    %109 = vector.extract_strided_slice %98 {offsets = [0, 128], sizes = [8, 128], strides = [1, 1]} : vector<8x384xf32> to vector<8x128xf32>
    %110 = vector.extract_strided_slice %100 {offsets = [0, 128], sizes = [8, 128], strides = [1, 1]} : vector<8x384xf32> to vector<8x128xf32>
    %111 = arith.addf %109, %110 : vector<8x128xf32>
    %112 = arith.negf %111 : vector<8x128xf32>
    %113 = math.exp %112 : vector<8x128xf32>
    %cst_36 = arith.constant 1.000000e+00 : f32
    %114 = vector.broadcast %cst_36 : f32 to vector<8x128xf32>
    %115 = arith.addf %114, %113 : vector<8x128xf32>
    %116 = arith.divf %114, %115 : vector<8x128xf32>
    %117 = vector.extract_strided_slice %98 {offsets = [0, 256], sizes = [8, 128], strides = [1, 1]} : vector<8x384xf32> to vector<8x128xf32>
    %118 = vector.extract_strided_slice %100 {offsets = [0, 256], sizes = [8, 128], strides = [1, 1]} : vector<8x384xf32> to vector<8x128xf32>
    %119 = arith.addf %118, %6 : vector<8x128xf32>
    %120 = arith.mulf %108, %119 : vector<8x128xf32>
    %121 = arith.addf %117, %120 : vector<8x128xf32>
    %122 = math.tanh %121 : vector<8x128xf32>
    %123 = arith.subf %95, %122 : vector<8x128xf32>
    %124 = arith.mulf %116, %123 : vector<8x128xf32>
    %125 = arith.addf %122, %124 : vector<8x128xf32>
    %126 = arith.index_cast %c2_i32 : i32 to index
    %c0_37 = arith.constant 0 : index
    %c0_38 = arith.constant 0 : index
    %127 = vector.load %arg2[%126, %c0_37, %c0_38] : memref<8x8x1xf32, #tpu.memory_space<vmem>>, vector<1x8x1xf32>
    %128 = vector.shape_cast %127 : vector<1x8x1xf32> to vector<8x1xf32>
    %129 = arith.subf %125, %95 : vector<8x128xf32>
    %130 = vector.broadcast %128 : vector<8x1xf32> to vector<8x128xf32>
    %131 = arith.mulf %130, %129 : vector<8x128xf32>
    %132 = arith.addf %95, %131 : vector<8x128xf32>
    %c0_39 = arith.constant 0 : index
    %c0_40 = arith.constant 0 : index
    %133 = vector.load %arg7[%c0_39, %c0_40] : memref<8x128xf32, #tpu.memory_space<vmem>>, vector<8x128xf32>
    tpu.vector_store %arg7[%c0_39, %c0_40], %132 {strides = array<i32>} : memref<8x128xf32, #tpu.memory_space<vmem>>, vector<8x128xf32>,
    %134 = arith.truncf %132 : vector<8x128xf32> to vector<8x128xbf16>
    %135 = arith.index_cast %c2_i32 : i32 to index
    %c0_41 = arith.constant 0 : index
    %c0_42 = arith.constant 0 : index
    %136 = vector.load %arg6[%135, %c0_41, %c0_42] : memref<8x8x128xbf16, #tpu.memory_space<vmem>>, vector<1x8x128xbf16>
    %137 = vector.shape_cast %136 : vector<1x8x128xbf16> to vector<8x128xbf16>
    %138 = vector.shape_cast %134 : vector<8x128xbf16> to vector<1x8x128xbf16>
    tpu.vector_store %arg6[%135, %c0_41, %c0_42], %138 {strides = array<i32>} : memref<8x8x128xbf16, #tpu.memory_space<vmem>>, vector<1x8x128xbf16>,
    %c3_i32 = arith.constant 3 : i32
    %c0_43 = arith.constant 0 : index
    %c0_44 = arith.constant 0 : index
    %139 = vector.load %arg7[%c0_43, %c0_44] : memref<8x128xf32, #tpu.memory_space<vmem>>, vector<8x128xf32>
    %140 = arith.index_cast %c3_i32 : i32 to index
    %c0_45 = arith.constant 0 : index
    %c0_46 = arith.constant 0 : index
    %141 = vector.load %arg1[%140, %c0_45, %c0_46] : memref<8x8x384xf32, #tpu.memory_space<vmem>>, vector<1x8x384xf32>
    %142 = vector.shape_cast %141 : vector<1x8x384xf32> to vector<8x384xf32>
    %143 = arith.truncf %139 : vector<8x128xf32> to vector<8x128xbf16>
    %cst_47 = arith.constant dense<0.000000e+00> : vector<8x384xf32>
    %144 = tpu.matmul %143, %3, %cst_47 {dimension_numbers = #tpu.dot_dimension_numbers<[1], [0], [0], [1], [0, 0, 1, 1], [], []>} : vector<8x128xbf16>, vector<128x384xbf16>, vector<8x384xf32> -> vector<8x384xf32>
    %145 = vector.extract_strided_slice %142 {offsets = [0, 0], sizes = [8, 128], strides = [1, 1]} : vector<8x384xf32> to vector<8x128xf32>
    %146 = vector.extract_strided_slice %144 {offsets = [0, 0], sizes = [8, 128], strides = [1, 1]} : vector<8x384xf32> to vector<8x128xf32>
    %147 = arith.addf %145, %146 : vector<8x128xf32>
    %148 = arith.negf %147 : vector<8x128xf32>
    %149 = math.exp %148 : vector<8x128xf32>
    %cst_48 = arith.constant 1.000000e+00 : f32
    %150 = vector.broadcast %cst_48 : f32 to vector<8x128xf32>
    %151 = arith.addf %150, %149 : vector<8x128xf32>
    %152 = arith.divf %150, %151 : vector<8x128xf32>
    %153 = vector.extract_strided_slice %142 {offsets = [0, 128], sizes = [8, 128], strides = [1, 1]} : vector<8x384xf32> to vector<8x128xf32>
    %154 = vector.extract_strided_slice %144 {offsets = [0, 128], sizes = [8, 128], strides = [1, 1]} : vector<8x384xf32> to vector<8x128xf32>
    %155 = arith.addf %153, %154 : vector<8x128xf32>
    %156 = arith.negf %155 : vector<8x128xf32>
    %157 = math.exp %156 : vector<8x128xf32>
    %cst_49 = arith.constant 1.000000e+00 : f32
    %158 = vector.broadcast %cst_49 : f32 to vector<8x128xf32>
    %159 = arith.addf %158, %157 : vector<8x128xf32>
    %160 = arith.divf %158, %159 : vector<8x128xf32>
    %161 = vector.extract_strided_slice %142 {offsets = [0, 256], sizes = [8, 128], strides = [1, 1]} : vector<8x384xf32> to vector<8x128xf32>
    %162 = vector.extract_strided_slice %144 {offsets = [0, 256], sizes = [8, 128], strides = [1, 1]} : vector<8x384xf32> to vector<8x128xf32>
    %163 = arith.addf %162, %6 : vector<8x128xf32>
    %164 = arith.mulf %152, %163 : vector<8x128xf32>
    %165 = arith.addf %161, %164 : vector<8x128xf32>
    %166 = math.tanh %165 : vector<8x128xf32>
    %167 = arith.subf %139, %166 : vector<8x128xf32>
    %168 = arith.mulf %160, %167 : vector<8x128xf32>
    %169 = arith.addf %166, %168 : vector<8x128xf32>
    %170 = arith.index_cast %c3_i32 : i32 to index
    %c0_50 = arith.constant 0 : index
    %c0_51 = arith.constant 0 : index
    %171 = vector.load %arg2[%170, %c0_50, %c0_51] : memref<8x8x1xf32, #tpu.memory_space<vmem>>, vector<1x8x1xf32>
    %172 = vector.shape_cast %171 : vector<1x8x1xf32> to vector<8x1xf32>
    %173 = arith.subf %169, %139 : vector<8x128xf32>
    %174 = vector.broadcast %172 : vector<8x1xf32> to vector<8x128xf32>
    %175 = arith.mulf %174, %173 : vector<8x128xf32>
    %176 = arith.addf %139, %175 : vector<8x128xf32>
    %c0_52 = arith.constant 0 : index
    %c0_53 = arith.constant 0 : index
    %177 = vector.load %arg7[%c0_52, %c0_53] : memref<8x128xf32, #tpu.memory_space<vmem>>, vector<8x128xf32>
    tpu.vector_store %arg7[%c0_52, %c0_53], %176 {strides = array<i32>} : memref<8x128xf32, #tpu.memory_space<vmem>>, vector<8x128xf32>,
    %178 = arith.truncf %176 : vector<8x128xf32> to vector<8x128xbf16>
    %179 = arith.index_cast %c3_i32 : i32 to index
    %c0_54 = arith.constant 0 : index
    %c0_55 = arith.constant 0 : index
    %180 = vector.load %arg6[%179, %c0_54, %c0_55] : memref<8x8x128xbf16, #tpu.memory_space<vmem>>, vector<1x8x128xbf16>
    %181 = vector.shape_cast %180 : vector<1x8x128xbf16> to vector<8x128xbf16>
    %182 = vector.shape_cast %178 : vector<8x128xbf16> to vector<1x8x128xbf16>
    tpu.vector_store %arg6[%179, %c0_54, %c0_55], %182 {strides = array<i32>} : memref<8x8x128xbf16, #tpu.memory_space<vmem>>, vector<1x8x128xbf16>,
    %c4_i32 = arith.constant 4 : i32
    %c0_56 = arith.constant 0 : index
    %c0_57 = arith.constant 0 : index
    %183 = vector.load %arg7[%c0_56, %c0_57] : memref<8x128xf32, #tpu.memory_space<vmem>>, vector<8x128xf32>
    %184 = arith.index_cast %c4_i32 : i32 to index
    %c0_58 = arith.constant 0 : index
    %c0_59 = arith.constant 0 : index
    %185 = vector.load %arg1[%184, %c0_58, %c0_59] : memref<8x8x384xf32, #tpu.memory_space<vmem>>, vector<1x8x384xf32>
    %186 = vector.shape_cast %185 : vector<1x8x384xf32> to vector<8x384xf32>
    %187 = arith.truncf %183 : vector<8x128xf32> to vector<8x128xbf16>
    %cst_60 = arith.constant dense<0.000000e+00> : vector<8x384xf32>
    %188 = tpu.matmul %187, %3, %cst_60 {dimension_numbers = #tpu.dot_dimension_numbers<[1], [0], [0], [1], [0, 0, 1, 1], [], []>} : vector<8x128xbf16>, vector<128x384xbf16>, vector<8x384xf32> -> vector<8x384xf32>
    %189 = vector.extract_strided_slice %186 {offsets = [0, 0], sizes = [8, 128], strides = [1, 1]} : vector<8x384xf32> to vector<8x128xf32>
    %190 = vector.extract_strided_slice %188 {offsets = [0, 0], sizes = [8, 128], strides = [1, 1]} : vector<8x384xf32> to vector<8x128xf32>
    %191 = arith.addf %189, %190 : vector<8x128xf32>
    %192 = arith.negf %191 : vector<8x128xf32>
    %193 = math.exp %192 : vector<8x128xf32>
    %cst_61 = arith.constant 1.000000e+00 : f32
    %194 = vector.broadcast %cst_61 : f32 to vector<8x128xf32>
    %195 = arith.addf %194, %193 : vector<8x128xf32>
    %196 = arith.divf %194, %195 : vector<8x128xf32>
    %197 = vector.extract_strided_slice %186 {offsets = [0, 128], sizes = [8, 128], strides = [1, 1]} : vector<8x384xf32> to vector<8x128xf32>
    %198 = vector.extract_strided_slice %188 {offsets = [0, 128], sizes = [8, 128], strides = [1, 1]} : vector<8x384xf32> to vector<8x128xf32>
    %199 = arith.addf %197, %198 : vector<8x128xf32>
    %200 = arith.negf %199 : vector<8x128xf32>
    %201 = math.exp %200 : vector<8x128xf32>
    %cst_62 = arith.constant 1.000000e+00 : f32
    %202 = vector.broadcast %cst_62 : f32 to vector<8x128xf32>
    %203 = arith.addf %202, %201 : vector<8x128xf32>
    %204 = arith.divf %202, %203 : vector<8x128xf32>
    %205 = vector.extract_strided_slice %186 {offsets = [0, 256], sizes = [8, 128], strides = [1, 1]} : vector<8x384xf32> to vector<8x128xf32>
    %206 = vector.extract_strided_slice %188 {offsets = [0, 256], sizes = [8, 128], strides = [1, 1]} : vector<8x384xf32> to vector<8x128xf32>
    %207 = arith.addf %206, %6 : vector<8x128xf32>
    %208 = arith.mulf %196, %207 : vector<8x128xf32>
    %209 = arith.addf %205, %208 : vector<8x128xf32>
    %210 = math.tanh %209 : vector<8x128xf32>
    %211 = arith.subf %183, %210 : vector<8x128xf32>
    %212 = arith.mulf %204, %211 : vector<8x128xf32>
    %213 = arith.addf %210, %212 : vector<8x128xf32>
    %214 = arith.index_cast %c4_i32 : i32 to index
    %c0_63 = arith.constant 0 : index
    %c0_64 = arith.constant 0 : index
    %215 = vector.load %arg2[%214, %c0_63, %c0_64] : memref<8x8x1xf32, #tpu.memory_space<vmem>>, vector<1x8x1xf32>
    %216 = vector.shape_cast %215 : vector<1x8x1xf32> to vector<8x1xf32>
    %217 = arith.subf %213, %183 : vector<8x128xf32>
    %218 = vector.broadcast %216 : vector<8x1xf32> to vector<8x128xf32>
    %219 = arith.mulf %218, %217 : vector<8x128xf32>
    %220 = arith.addf %183, %219 : vector<8x128xf32>
    %c0_65 = arith.constant 0 : index
    %c0_66 = arith.constant 0 : index
    %221 = vector.load %arg7[%c0_65, %c0_66] : memref<8x128xf32, #tpu.memory_space<vmem>>, vector<8x128xf32>
    tpu.vector_store %arg7[%c0_65, %c0_66], %220 {strides = array<i32>} : memref<8x128xf32, #tpu.memory_space<vmem>>, vector<8x128xf32>,
    %222 = arith.truncf %220 : vector<8x128xf32> to vector<8x128xbf16>
    %223 = arith.index_cast %c4_i32 : i32 to index
    %c0_67 = arith.constant 0 : index
    %c0_68 = arith.constant 0 : index
    %224 = vector.load %arg6[%223, %c0_67, %c0_68] : memref<8x8x128xbf16, #tpu.memory_space<vmem>>, vector<1x8x128xbf16>
    %225 = vector.shape_cast %224 : vector<1x8x128xbf16> to vector<8x128xbf16>
    %226 = vector.shape_cast %222 : vector<8x128xbf16> to vector<1x8x128xbf16>
    tpu.vector_store %arg6[%223, %c0_67, %c0_68], %226 {strides = array<i32>} : memref<8x8x128xbf16, #tpu.memory_space<vmem>>, vector<1x8x128xbf16>,
    %c5_i32 = arith.constant 5 : i32
    %c0_69 = arith.constant 0 : index
    %c0_70 = arith.constant 0 : index
    %227 = vector.load %arg7[%c0_69, %c0_70] : memref<8x128xf32, #tpu.memory_space<vmem>>, vector<8x128xf32>
    %228 = arith.index_cast %c5_i32 : i32 to index
    %c0_71 = arith.constant 0 : index
    %c0_72 = arith.constant 0 : index
    %229 = vector.load %arg1[%228, %c0_71, %c0_72] : memref<8x8x384xf32, #tpu.memory_space<vmem>>, vector<1x8x384xf32>
    %230 = vector.shape_cast %229 : vector<1x8x384xf32> to vector<8x384xf32>
    %231 = arith.truncf %227 : vector<8x128xf32> to vector<8x128xbf16>
    %cst_73 = arith.constant dense<0.000000e+00> : vector<8x384xf32>
    %232 = tpu.matmul %231, %3, %cst_73 {dimension_numbers = #tpu.dot_dimension_numbers<[1], [0], [0], [1], [0, 0, 1, 1], [], []>} : vector<8x128xbf16>, vector<128x384xbf16>, vector<8x384xf32> -> vector<8x384xf32>
    %233 = vector.extract_strided_slice %230 {offsets = [0, 0], sizes = [8, 128], strides = [1, 1]} : vector<8x384xf32> to vector<8x128xf32>
    %234 = vector.extract_strided_slice %232 {offsets = [0, 0], sizes = [8, 128], strides = [1, 1]} : vector<8x384xf32> to vector<8x128xf32>
    %235 = arith.addf %233, %234 : vector<8x128xf32>
    %236 = arith.negf %235 : vector<8x128xf32>
    %237 = math.exp %236 : vector<8x128xf32>
    %cst_74 = arith.constant 1.000000e+00 : f32
    %238 = vector.broadcast %cst_74 : f32 to vector<8x128xf32>
    %239 = arith.addf %238, %237 : vector<8x128xf32>
    %240 = arith.divf %238, %239 : vector<8x128xf32>
    %241 = vector.extract_strided_slice %230 {offsets = [0, 128], sizes = [8, 128], strides = [1, 1]} : vector<8x384xf32> to vector<8x128xf32>
    %242 = vector.extract_strided_slice %232 {offsets = [0, 128], sizes = [8, 128], strides = [1, 1]} : vector<8x384xf32> to vector<8x128xf32>
    %243 = arith.addf %241, %242 : vector<8x128xf32>
    %244 = arith.negf %243 : vector<8x128xf32>
    %245 = math.exp %244 : vector<8x128xf32>
    %cst_75 = arith.constant 1.000000e+00 : f32
    %246 = vector.broadcast %cst_75 : f32 to vector<8x128xf32>
    %247 = arith.addf %246, %245 : vector<8x128xf32>
    %248 = arith.divf %246, %247 : vector<8x128xf32>
    %249 = vector.extract_strided_slice %230 {offsets = [0, 256], sizes = [8, 128], strides = [1, 1]} : vector<8x384xf32> to vector<8x128xf32>
    %250 = vector.extract_strided_slice %232 {offsets = [0, 256], sizes = [8, 128], strides = [1, 1]} : vector<8x384xf32> to vector<8x128xf32>
    %251 = arith.addf %250, %6 : vector<8x128xf32>
    %252 = arith.mulf %240, %251 : vector<8x128xf32>
    %253 = arith.addf %249, %252 : vector<8x128xf32>
    %254 = math.tanh %253 : vector<8x128xf32>
    %255 = arith.subf %227, %254 : vector<8x128xf32>
    %256 = arith.mulf %248, %255 : vector<8x128xf32>
    %257 = arith.addf %254, %256 : vector<8x128xf32>
    %258 = arith.index_cast %c5_i32 : i32 to index
    %c0_76 = arith.constant 0 : index
    %c0_77 = arith.constant 0 : index
    %259 = vector.load %arg2[%258, %c0_76, %c0_77] : memref<8x8x1xf32, #tpu.memory_space<vmem>>, vector<1x8x1xf32>
    %260 = vector.shape_cast %259 : vector<1x8x1xf32> to vector<8x1xf32>
    %261 = arith.subf %257, %227 : vector<8x128xf32>
    %262 = vector.broadcast %260 : vector<8x1xf32> to vector<8x128xf32>
    %263 = arith.mulf %262, %261 : vector<8x128xf32>
    %264 = arith.addf %227, %263 : vector<8x128xf32>
    %c0_78 = arith.constant 0 : index
    %c0_79 = arith.constant 0 : index
    %265 = vector.load %arg7[%c0_78, %c0_79] : memref<8x128xf32, #tpu.memory_space<vmem>>, vector<8x128xf32>
    tpu.vector_store %arg7[%c0_78, %c0_79], %264 {strides = array<i32>} : memref<8x128xf32, #tpu.memory_space<vmem>>, vector<8x128xf32>,
    %266 = arith.truncf %264 : vector<8x128xf32> to vector<8x128xbf16>
    %267 = arith.index_cast %c5_i32 : i32 to index
    %c0_80 = arith.constant 0 : index
    %c0_81 = arith.constant 0 : index
    %268 = vector.load %arg6[%267, %c0_80, %c0_81] : memref<8x8x128xbf16, #tpu.memory_space<vmem>>, vector<1x8x128xbf16>
    %269 = vector.shape_cast %268 : vector<1x8x128xbf16> to vector<8x128xbf16>
    %270 = vector.shape_cast %266 : vector<8x128xbf16> to vector<1x8x128xbf16>
    tpu.vector_store %arg6[%267, %c0_80, %c0_81], %270 {strides = array<i32>} : memref<8x8x128xbf16, #tpu.memory_space<vmem>>, vector<1x8x128xbf16>,
    %c6_i32 = arith.constant 6 : i32
    %c0_82 = arith.constant 0 : index
    %c0_83 = arith.constant 0 : index
    %271 = vector.load %arg7[%c0_82, %c0_83] : memref<8x128xf32, #tpu.memory_space<vmem>>, vector<8x128xf32>
    %272 = arith.index_cast %c6_i32 : i32 to index
    %c0_84 = arith.constant 0 : index
    %c0_85 = arith.constant 0 : index
    %273 = vector.load %arg1[%272, %c0_84, %c0_85] : memref<8x8x384xf32, #tpu.memory_space<vmem>>, vector<1x8x384xf32>
    %274 = vector.shape_cast %273 : vector<1x8x384xf32> to vector<8x384xf32>
    %275 = arith.truncf %271 : vector<8x128xf32> to vector<8x128xbf16>
    %cst_86 = arith.constant dense<0.000000e+00> : vector<8x384xf32>
    %276 = tpu.matmul %275, %3, %cst_86 {dimension_numbers = #tpu.dot_dimension_numbers<[1], [0], [0], [1], [0, 0, 1, 1], [], []>} : vector<8x128xbf16>, vector<128x384xbf16>, vector<8x384xf32> -> vector<8x384xf32>
    %277 = vector.extract_strided_slice %274 {offsets = [0, 0], sizes = [8, 128], strides = [1, 1]} : vector<8x384xf32> to vector<8x128xf32>
    %278 = vector.extract_strided_slice %276 {offsets = [0, 0], sizes = [8, 128], strides = [1, 1]} : vector<8x384xf32> to vector<8x128xf32>
    %279 = arith.addf %277, %278 : vector<8x128xf32>
    %280 = arith.negf %279 : vector<8x128xf32>
    %281 = math.exp %280 : vector<8x128xf32>
    %cst_87 = arith.constant 1.000000e+00 : f32
    %282 = vector.broadcast %cst_87 : f32 to vector<8x128xf32>
    %283 = arith.addf %282, %281 : vector<8x128xf32>
    %284 = arith.divf %282, %283 : vector<8x128xf32>
    %285 = vector.extract_strided_slice %274 {offsets = [0, 128], sizes = [8, 128], strides = [1, 1]} : vector<8x384xf32> to vector<8x128xf32>
    %286 = vector.extract_strided_slice %276 {offsets = [0, 128], sizes = [8, 128], strides = [1, 1]} : vector<8x384xf32> to vector<8x128xf32>
    %287 = arith.addf %285, %286 : vector<8x128xf32>
    %288 = arith.negf %287 : vector<8x128xf32>
    %289 = math.exp %288 : vector<8x128xf32>
    %cst_88 = arith.constant 1.000000e+00 : f32
    %290 = vector.broadcast %cst_88 : f32 to vector<8x128xf32>
    %291 = arith.addf %290, %289 : vector<8x128xf32>
    %292 = arith.divf %290, %291 : vector<8x128xf32>
    %293 = vector.extract_strided_slice %274 {offsets = [0, 256], sizes = [8, 128], strides = [1, 1]} : vector<8x384xf32> to vector<8x128xf32>
    %294 = vector.extract_strided_slice %276 {offsets = [0, 256], sizes = [8, 128], strides = [1, 1]} : vector<8x384xf32> to vector<8x128xf32>
    %295 = arith.addf %294, %6 : vector<8x128xf32>
    %296 = arith.mulf %284, %295 : vector<8x128xf32>
    %297 = arith.addf %293, %296 : vector<8x128xf32>
    %298 = math.tanh %297 : vector<8x128xf32>
    %299 = arith.subf %271, %298 : vector<8x128xf32>
    %300 = arith.mulf %292, %299 : vector<8x128xf32>
    %301 = arith.addf %298, %300 : vector<8x128xf32>
    %302 = arith.index_cast %c6_i32 : i32 to index
    %c0_89 = arith.constant 0 : index
    %c0_90 = arith.constant 0 : index
    %303 = vector.load %arg2[%302, %c0_89, %c0_90] : memref<8x8x1xf32, #tpu.memory_space<vmem>>, vector<1x8x1xf32>
    %304 = vector.shape_cast %303 : vector<1x8x1xf32> to vector<8x1xf32>
    %305 = arith.subf %301, %271 : vector<8x128xf32>
    %306 = vector.broadcast %304 : vector<8x1xf32> to vector<8x128xf32>
    %307 = arith.mulf %306, %305 : vector<8x128xf32>
    %308 = arith.addf %271, %307 : vector<8x128xf32>
    %c0_91 = arith.constant 0 : index
    %c0_92 = arith.constant 0 : index
    %309 = vector.load %arg7[%c0_91, %c0_92] : memref<8x128xf32, #tpu.memory_space<vmem>>, vector<8x128xf32>
    tpu.vector_store %arg7[%c0_91, %c0_92], %308 {strides = array<i32>} : memref<8x128xf32, #tpu.memory_space<vmem>>, vector<8x128xf32>,
    %310 = arith.truncf %308 : vector<8x128xf32> to vector<8x128xbf16>
    %311 = arith.index_cast %c6_i32 : i32 to index
    %c0_93 = arith.constant 0 : index
    %c0_94 = arith.constant 0 : index
    %312 = vector.load %arg6[%311, %c0_93, %c0_94] : memref<8x8x128xbf16, #tpu.memory_space<vmem>>, vector<1x8x128xbf16>
    %313 = vector.shape_cast %312 : vector<1x8x128xbf16> to vector<8x128xbf16>
    %314 = vector.shape_cast %310 : vector<8x128xbf16> to vector<1x8x128xbf16>
    tpu.vector_store %arg6[%311, %c0_93, %c0_94], %314 {strides = array<i32>} : memref<8x8x128xbf16, #tpu.memory_space<vmem>>, vector<1x8x128xbf16>,
    %c7_i32 = arith.constant 7 : i32
    %c0_95 = arith.constant 0 : index
    %c0_96 = arith.constant 0 : index
    %315 = vector.load %arg7[%c0_95, %c0_96] : memref<8x128xf32, #tpu.memory_space<vmem>>, vector<8x128xf32>
    %316 = arith.index_cast %c7_i32 : i32 to index
    %c0_97 = arith.constant 0 : index
    %c0_98 = arith.constant 0 : index
    %317 = vector.load %arg1[%316, %c0_97, %c0_98] : memref<8x8x384xf32, #tpu.memory_space<vmem>>, vector<1x8x384xf32>
    %318 = vector.shape_cast %317 : vector<1x8x384xf32> to vector<8x384xf32>
    %319 = arith.truncf %315 : vector<8x128xf32> to vector<8x128xbf16>
    %cst_99 = arith.constant dense<0.000000e+00> : vector<8x384xf32>
    %320 = tpu.matmul %319, %3, %cst_99 {dimension_numbers = #tpu.dot_dimension_numbers<[1], [0], [0], [1], [0, 0, 1, 1], [], []>} : vector<8x128xbf16>, vector<128x384xbf16>, vector<8x384xf32> -> vector<8x384xf32>
    %321 = vector.extract_strided_slice %318 {offsets = [0, 0], sizes = [8, 128], strides = [1, 1]} : vector<8x384xf32> to vector<8x128xf32>
    %322 = vector.extract_strided_slice %320 {offsets = [0, 0], sizes = [8, 128], strides = [1, 1]} : vector<8x384xf32> to vector<8x128xf32>
    %323 = arith.addf %321, %322 : vector<8x128xf32>
    %324 = arith.negf %323 : vector<8x128xf32>
    %325 = math.exp %324 : vector<8x128xf32>
    %cst_100 = arith.constant 1.000000e+00 : f32
    %326 = vector.broadcast %cst_100 : f32 to vector<8x128xf32>
    %327 = arith.addf %326, %325 : vector<8x128xf32>
    %328 = arith.divf %326, %327 : vector<8x128xf32>
    %329 = vector.extract_strided_slice %318 {offsets = [0, 128], sizes = [8, 128], strides = [1, 1]} : vector<8x384xf32> to vector<8x128xf32>
    %330 = vector.extract_strided_slice %320 {offsets = [0, 128], sizes = [8, 128], strides = [1, 1]} : vector<8x384xf32> to vector<8x128xf32>
    %331 = arith.addf %329, %330 : vector<8x128xf32>
    %332 = arith.negf %331 : vector<8x128xf32>
    %333 = math.exp %332 : vector<8x128xf32>
    %cst_101 = arith.constant 1.000000e+00 : f32
    %334 = vector.broadcast %cst_101 : f32 to vector<8x128xf32>
    %335 = arith.addf %334, %333 : vector<8x128xf32>
    %336 = arith.divf %334, %335 : vector<8x128xf32>
    %337 = vector.extract_strided_slice %318 {offsets = [0, 256], sizes = [8, 128], strides = [1, 1]} : vector<8x384xf32> to vector<8x128xf32>
    %338 = vector.extract_strided_slice %320 {offsets = [0, 256], sizes = [8, 128], strides = [1, 1]} : vector<8x384xf32> to vector<8x128xf32>
    %339 = arith.addf %338, %6 : vector<8x128xf32>
    %340 = arith.mulf %328, %339 : vector<8x128xf32>
    %341 = arith.addf %337, %340 : vector<8x128xf32>
    %342 = math.tanh %341 : vector<8x128xf32>
    %343 = arith.subf %315, %342 : vector<8x128xf32>
    %344 = arith.mulf %336, %343 : vector<8x128xf32>
    %345 = arith.addf %342, %344 : vector<8x128xf32>
    %346 = arith.index_cast %c7_i32 : i32 to index
    %c0_102 = arith.constant 0 : index
    %c0_103 = arith.constant 0 : index
    %347 = vector.load %arg2[%346, %c0_102, %c0_103] : memref<8x8x1xf32, #tpu.memory_space<vmem>>, vector<1x8x1xf32>
    %348 = vector.shape_cast %347 : vector<1x8x1xf32> to vector<8x1xf32>
    %349 = arith.subf %345, %315 : vector<8x128xf32>
    %350 = vector.broadcast %348 : vector<8x1xf32> to vector<8x128xf32>
    %351 = arith.mulf %350, %349 : vector<8x128xf32>
    %352 = arith.addf %315, %351 : vector<8x128xf32>
    %c0_104 = arith.constant 0 : index
    %c0_105 = arith.constant 0 : index
    %353 = vector.load %arg7[%c0_104, %c0_105] : memref<8x128xf32, #tpu.memory_space<vmem>>, vector<8x128xf32>
    tpu.vector_store %arg7[%c0_104, %c0_105], %352 {strides = array<i32>} : memref<8x128xf32, #tpu.memory_space<vmem>>, vector<8x128xf32>,
    %354 = arith.truncf %352 : vector<8x128xf32> to vector<8x128xbf16>
    %355 = arith.index_cast %c7_i32 : i32 to index
    %c0_106 = arith.constant 0 : index
    %c0_107 = arith.constant 0 : index
    %356 = vector.load %arg6[%355, %c0_106, %c0_107] : memref<8x8x128xbf16, #tpu.memory_space<vmem>>, vector<1x8x128xbf16>
    %357 = vector.shape_cast %356 : vector<1x8x128xbf16> to vector<8x128xbf16>
    %358 = vector.shape_cast %354 : vector<8x128xbf16> to vector<1x8x128xbf16>
    tpu.vector_store %arg6[%355, %c0_106, %c0_107], %358 {strides = array<i32>} : memref<8x8x128xbf16, #tpu.memory_space<vmem>>, vector<1x8x128xbf16>,
    %c8_i32 = arith.constant 8 : i32
    return
  }
  func.func @transform_0(%arg0: i32) -> (i32, i32, i32) {
    %c0_i32 = arith.constant 0 : i32
    %c0_i32_0 = arith.constant 0 : i32
    %c0_i32_1 = arith.constant 0 : i32
    return %arg0, %c0_i32, %c0_i32_0 : i32, i32, i32
  }
  func.func @transform_1(%arg0: i32) -> (i32, i32, i32) {
    %c0_i32 = arith.constant 0 : i32
    %c0_i32_0 = arith.constant 0 : i32
    %c0_i32_1 = arith.constant 0 : i32
    return %arg0, %c0_i32, %c0_i32_0 : i32, i32, i32
  }
  func.func @transform_2(%arg0: i32) -> (i32, i32) {
    %c0_i32 = arith.constant 0 : i32
    %c0_i32_0 = arith.constant 0 : i32
    %c0_i32_1 = arith.constant 0 : i32
    return %c0_i32, %c0_i32_0 : i32, i32
  }
  func.func @transform_3(%arg0: i32) -> (i32, i32) {
    %c0_i32 = arith.constant 0 : i32
    %c0_i32_0 = arith.constant 0 : i32
    %c0_i32_1 = arith.constant 0 : i32
    return %c0_i32, %c0_i32_0 : i32, i32
  }
  func.func @transform_4(%arg0: i32) -> (i32, i32) {
    %c0_i32 = arith.constant 0 : i32
    %c0_i32_0 = arith.constant 0 : i32
    %c0_i32_1 = arith.constant 0 : i32
    return %c0_i32, %c0_i32_0 : i32, i32
  }
  func.func @transform_5(%arg0: i32) -> (i32, i32, i32) {
    %c0_i32 = arith.constant 0 : i32
    %c0_i32_0 = arith.constant 0 : i32
    %c0_i32_1 = arith.constant 0 : i32
    return %arg0, %c0_i32, %c0_i32_0 : i32, i32, i32
  }
}

</mosaic_0001>

<llo_original>
// kernel: gru_with_padding.4
$region0: #{gru_with_padding.4}
  #allocation0 [shape = 'u32[]', space=smem, size = 0x4, offset = 0x4, fixed_abs, tag = 'smem constant byte address 0x4 - core index']
  #allocation1 [shape = 'u32[144,128]{1,0:T(1,128)}', space=vmem, size = 0x12000, scoped, tag = 'internal scratch']
  %s0 = inlined_call_operand.vmem [shape: bf16[64,128], index: 0, kind: input, shape index: {}]
  %s1 = inlined_call_operand.vmem [shape: bf16[128,384], index: 1, kind: input, shape index: {}]
  %s2 = inlined_call_operand.vmem [shape: f32[1,384], index: 2, kind: input, shape index: {}]
  %s3 = inlined_call_operand.vmem [shape: f32[64,384], index: 3, kind: output, shape index: {}]
  %s4 = sld [smem:[#allocation0]]
  $region22: #{gru_with_padding.4} parent=0
    _
  %s6 = ssub.s32 1, %s4
  %s7 = scalar_select 0, %s6, %s4
  // Predicated region
  $region2: #{gru_with_padding.4} parent=0 // pred_check
    _
  $region3: #{gru_with_padding.4} parent=0 // pred_check_branch
    %9 = sbr.rel (0) target = $region5
  $region4: #{gru_with_padding.4} parent=0 // pred_region
    _
  $region5: #{gru_with_padding.4} parent=0 // pred_fallthru
    _
  // Predicated region
  $region6: #{gru_with_padding.4} parent=0 // pred_check
    _
  $region7: #{gru_with_padding.4} parent=0 // pred_check_branch
    %11 = sbr.rel (0) target = $region9
  $region8: #{gru_with_padding.4} parent=0 // pred_region
    _
  $region9: #{gru_with_padding.4} parent=0 // pred_fallthru
    _
  // Predicated region
  $region10: #{gru_with_padding.4} parent=0 // pred_check
    _
  $region11: #{gru_with_padding.4} parent=0 // pred_check_branch
    %13 = sbr.rel (0) target = $region13
  $region12: #{gru_with_padding.4} parent=0 // pred_region
    _
  $region13: #{gru_with_padding.4} parent=0 // pred_fallthru
    _
  %v15 = vld [vmem:[%s0] sm:$0xf]
  %v16 = vld [vmem:[%s0 + $0x4] sm:$0xf]
  %v17 = vld [vmem:[%s0 + $0x8] sm:$0xf]
  %v18 = vld [vmem:[%s0 + $0xc] sm:$0xf]
  %v19 = vld [vmem:[%s0 + $0x10] sm:$0xf]
  %v20 = vld [vmem:[%s0 + $0x14] sm:$0xf]
  %v21 = vld [vmem:[%s0 + $0x18] sm:$0xf]
  %v22 = vld [vmem:[%s0 + $0x1c] sm:$0xf]
  %v23 = vld [vmem:[%s1] sm:$0xff]
  %v24 = vld [vmem:[%s1 + $0x8] sm:$0xf]
  %v25 = vld [vmem:[%s1 + $0xc] sm:$0xff]
  %v26 = vld [vmem:[%s1 + $0x14] sm:$0xf]
  %v27 = vld [vmem:[%s1 + $0x18] sm:$0xff]
  %v28 = vld [vmem:[%s1 + $0x20] sm:$0xf]
  %v29 = vld [vmem:[%s1 + $0x24] sm:$0xff]
  %v30 = vld [vmem:[%s1 + $0x2c] sm:$0xf]
  %v31 = vld [vmem:[%s1 + $0x30] sm:$0xff]
  %v32 = vld [vmem:[%s1 + $0x38] sm:$0xf]
  %v33 = vld [vmem:[%s1 + $0x3c] sm:$0xff]
  %v34 = vld [vmem:[%s1 + $0x44] sm:$0xf]
  %v35 = vld [vmem:[%s1 + $0x48] sm:$0xff]
  %v36 = vld [vmem:[%s1 + $0x50] sm:$0xf]
  %v37 = vld [vmem:[%s1 + $0x54] sm:$0xff]
  %v38 = vld [vmem:[%s1 + $0x5c] sm:$0xf]
  %v39 = vld [vmem:[%s1 + $0x60] sm:$0xff]
  %v40 = vld [vmem:[%s1 + $0x68] sm:$0xf]
  %v41 = vld [vmem:[%s1 + $0x6c] sm:$0xff]
  %v42 = vld [vmem:[%s1 + $0x74] sm:$0xf]
  %v43 = vld [vmem:[%s1 + $0x78] sm:$0xff]
  %v44 = vld [vmem:[%s1 + $0x80] sm:$0xf]
  %v45 = vld [vmem:[%s1 + $0x84] sm:$0xff]
  %v46 = vld [vmem:[%s1 + $0x8c] sm:$0xf]
  %v47 = vld [vmem:[%s1 + $0x90] sm:$0xff]
  %v48 = vld [vmem:[%s1 + $0x98] sm:$0xf]
  %v49 = vld [vmem:[%s1 + $0x9c] sm:$0xff]
  %v50 = vld [vmem:[%s1 + $0xa4] sm:$0xf]
  %v51 = vld [vmem:[%s1 + $0xa8] sm:$0xff]
  %v52 = vld [vmem:[%s1 + $0xb0] sm:$0xf]
  %v53 = vld [vmem:[%s1 + $0xb4] sm:$0xff]
  %v54 = vld [vmem:[%s1 + $0xbc] sm:$0xf]
  %v55 = vld [vmem:[%s2] sm:$0x7]
  %v57 = vlaneseq
  %v58 = vshrl.u32 %v57, 7
  %v59 = vsub.s32 0, %v58
  %v60 = vrot.slane %v55, %v59
  %v61 = vlaneseq
  %v62 = vshrl.u32 %v61, 7
  %v63 = vsub.s32 1, %v62
  %v64 = vrot.slane %v55, %v63
  %v65 = vlaneseq
  %v66 = vshrl.u32 %v65, 7
  %v67 = vsub.s32 2, %v66
  %v68 = vrot.slane %v55, %v67
  %v80 = vunpack.c.l.b16 %v15
  %v81 = vunpack.c.l.b16 %v16
  %v82 = vunpack.c.l.b16 %v17
  %v83 = vunpack.c.l.b16 %v18
  %v84 = vunpack.c.l.b16 %v19
  %v85 = vunpack.c.l.b16 %v20
  %v86 = vunpack.c.l.b16 %v21
  %v87 = vunpack.c.l.b16 %v22
  %v88 = vpack.c.b16 %v81, %v80
  %v89 = vpack.c.b16 %v83, %v82
  %v90 = vpack.c.b16 %v85, %v84
  %v91 = vpack.c.b16 %v87, %v86
  %v128 = vunpack.c.l.b16 %v23
  %v129 = vunpack.c.h.b16 %v23
  %v130 = vunpack.c.l.b16 %v24
  %v131 = vunpack.c.l.b16 %v25
  %v132 = vunpack.c.h.b16 %v25
  %v133 = vunpack.c.l.b16 %v26
  %v134 = vunpack.c.l.b16 %v27
  %v135 = vunpack.c.h.b16 %v27
  %v136 = vunpack.c.l.b16 %v28
  %v137 = vunpack.c.l.b16 %v29
  %v138 = vunpack.c.h.b16 %v29
  %v139 = vunpack.c.l.b16 %v30
  %v140 = vunpack.c.l.b16 %v31
  %v141 = vunpack.c.h.b16 %v31
  %v142 = vunpack.c.l.b16 %v32
  %v143 = vunpack.c.l.b16 %v33
  %v144 = vunpack.c.h.b16 %v33
  %v145 = vunpack.c.l.b16 %v34
  %v146 = vunpack.c.l.b16 %v35
  %v147 = vunpack.c.h.b16 %v35
  %v148 = vunpack.c.l.b16 %v36
  %v149 = vunpack.c.l.b16 %v37
  %v150 = vunpack.c.h.b16 %v37
  %v151 = vunpack.c.l.b16 %v38
  %v152 = vunpack.c.l.b16 %v39
  %v153 = vunpack.c.h.b16 %v39
  %v154 = vunpack.c.l.b16 %v40
  %v155 = vunpack.c.l.b16 %v41
  %v156 = vunpack.c.h.b16 %v41
  %v157 = vunpack.c.l.b16 %v42
  %v158 = vunpack.c.l.b16 %v43
  %v159 = vunpack.c.h.b16 %v43
  %v160 = vunpack.c.l.b16 %v44
  %v161 = vunpack.c.l.b16 %v45
  %v162 = vunpack.c.h.b16 %v45
  %v163 = vunpack.c.l.b16 %v46
  %v164 = vunpack.c.l.b16 %v47
  %v165 = vunpack.c.h.b16 %v47
  %v166 = vunpack.c.l.b16 %v48
  %v167 = vunpack.c.l.b16 %v49
  %v168 = vunpack.c.h.b16 %v49
  %v169 = vunpack.c.l.b16 %v50
  %v170 = vunpack.c.l.b16 %v51
  %v171 = vunpack.c.h.b16 %v51
  %v172 = vunpack.c.l.b16 %v52
  %v173 = vunpack.c.l.b16 %v53
  %v174 = vunpack.c.h.b16 %v53
  %v175 = vunpack.c.l.b16 %v54
  %v176 = vpack.c.b16 %v131, %v128
  %v177 = vpack.c.b16 %v132, %v129
  %v178 = vpack.c.b16 %v133, %v130
  %v179 = vpack.c.b16 %v137, %v134
  %v180 = vpack.c.b16 %v138, %v135
  %v181 = vpack.c.b16 %v139, %v136
  %v182 = vpack.c.b16 %v143, %v140
  %v183 = vpack.c.b16 %v144, %v141
  %v184 = vpack.c.b16 %v145, %v142
  %v185 = vpack.c.b16 %v149, %v146
  %v186 = vpack.c.b16 %v150, %v147
  %v187 = vpack.c.b16 %v151, %v148
  %v188 = vpack.c.b16 %v155, %v152
  %v189 = vpack.c.b16 %v156, %v153
  %v190 = vpack.c.b16 %v157, %v154
  %v191 = vpack.c.b16 %v161, %v158
  %v192 = vpack.c.b16 %v162, %v159
  %v193 = vpack.c.b16 %v163, %v160
  %v194 = vpack.c.b16 %v167, %v164
  %v195 = vpack.c.b16 %v168, %v165
  %v196 = vpack.c.b16 %v169, %v166
  %v197 = vpack.c.b16 %v173, %v170
  %v198 = vpack.c.b16 %v174, %v171
  %v199 = vpack.c.b16 %v175, %v172
  %224 = vmatprep.subr.bf16.mxu0 %v177
  %225 = vmatpush1.bf16.msra.mxu0 %v176
  %226 = vmatprep.subr.bf16.mxu0 %v180
  %227 = vmatpush1.bf16.msra.mxu0 %v179
  %228 = vmatprep.subr.bf16.mxu0 %v183
  %229 = vmatpush1.bf16.msra.mxu0 %v182
  %230 = vmatprep.subr.bf16.mxu0 %v186
  %231 = vmatpush1.bf16.msra.mxu0 %v185
  %232 = vmatprep.subr.bf16.mxu0 %v189
  %233 = vmatpush1.bf16.msra.mxu0 %v188
  %234 = vmatprep.subr.bf16.mxu0 %v192
  %235 = vmatpush1.bf16.msra.mxu0 %v191
  %236 = vmatprep.subr.bf16.mxu0 %v195
  %237 = vmatpush1.bf16.msra.mxu0 %v194
  %238 = vmatprep.subr.bf16.mxu0 %v198
  %239 = vmatpush1.bf16.msra.mxu0 %v197
  %240 = vmatprep.subr.bf16.mxu0 0
  %241 = vmatpush1.bf16.msra.mxu0 0
  %242 = vmatprep.subr.bf16.mxu0 0
  %243 = vmatpush1.bf16.msra.mxu0 0
  %244 = vmatprep.subr.bf16.mxu0 0
  %245 = vmatpush1.bf16.msra.mxu0 0
  %246 = vmatprep.subr.bf16.mxu0 0
  %247 = vmatpush1.bf16.msra.mxu0 0
  %248 = vmatprep.subr.bf16.mxu0 0
  %249 = vmatpush1.bf16.msra.mxu0 0
  %250 = vmatprep.subr.bf16.mxu0 0
  %251 = vmatpush1.bf16.msra.mxu0 0
  %252 = vmatprep.subr.bf16.mxu0 0
  %253 = vmatpush1.bf16.msra.mxu0 0
  %254 = vmatprep.subr.bf16.mxu0 0
  %255 = vmatpush1.bf16.msra.mxu0 0
  %256 = vmatprep.mubr.bf16.mxu0 0
  %257 = vmatmul.mubr.bf16.gmra.mrb[0].mxu0 %v88
  %v258 = vpop.f32.mrb[0].mxu0
  %v259 = vadd.f32 %v60, %v258
  %v260 = vpop.f32.mrb[0].mxu0
  %v261 = vadd.f32 %v64, %v260
  %v262 = vpop.f32.mrb[0].mxu0
  %v263 = vadd.f32 %v60, %v262
  %v264 = vpop.f32.mrb[0].mxu0
  %v265 = vadd.f32 %v64, %v264
  %266 = vmatprep.mubr.bf16.mxu0 0
  %267 = vmatmul.mubr.bf16.gmra.mrb[0].mxu0 %v89
  %v268 = vpop.f32.mrb[0].mxu0
  %v269 = vadd.f32 %v60, %v268
  %v270 = vpop.f32.mrb[0].mxu0
  %v271 = vadd.f32 %v64, %v270
  %v272 = vpop.f32.mrb[0].mxu0
  %v273 = vadd.f32 %v60, %v272
  %v274 = vpop.f32.mrb[0].mxu0
  %v275 = vadd.f32 %v64, %v274
  %276 = vmatprep.mubr.bf16.mxu0 0
  %277 = vmatmul.mubr.bf16.gmra.mrb[0].mxu0 %v90
  %v278 = vpop.f32.mrb[0].mxu0
  %v279 = vadd.f32 %v60, %v278
  %v280 = vpop.f32.mrb[0].mxu0
  %v281 = vadd.f32 %v64, %v280
  %v282 = vpop.f32.mrb[0].mxu0
  %v283 = vadd.f32 %v60, %v282
  %v284 = vpop.f32.mrb[0].mxu0
  %v285 = vadd.f32 %v64, %v284
  %286 = vmatprep.mubr.bf16.mxu0 0
  %287 = vmatmul.mubr.bf16.gmra.mrb[0].mxu0 %v91
  %v288 = vpop.f32.mrb[0].mxu0
  %v289 = vadd.f32 %v60, %v288
  %v290 = vpop.f32.mrb[0].mxu0
  %v291 = vadd.f32 %v64, %v290
  %v292 = vpop.f32.mrb[0].mxu0
  %v293 = vadd.f32 %v60, %v292
  %v294 = vpop.f32.mrb[0].mxu0
  %v295 = vadd.f32 %v64, %v294
  %296 = vdwg.mxu0
  %297 = vmatprep.subr.bf16.mxu0 0
  %298 = vmatpush1.bf16.msra.mxu0 %v178
  %299 = vmatprep.subr.bf16.mxu0 0
  %300 = vmatpush1.bf16.msra.mxu0 %v181
  %301 = vmatprep.subr.bf16.mxu0 0
  %302 = vmatpush1.bf16.msra.mxu0 %v184
  %303 = vmatprep.subr.bf16.mxu0 0
  %304 = vmatpush1.bf16.msra.mxu0 %v187
  %305 = vmatprep.subr.bf16.mxu0 0
  %306 = vmatpush1.bf16.msra.mxu0 %v190
  %307 = vmatprep.subr.bf16.mxu0 0
  %308 = vmatpush1.bf16.msra.mxu0 %v193
  %309 = vmatprep.subr.bf16.mxu0 0
  %310 = vmatpush1.bf16.msra.mxu0 %v196
  %311 = vmatprep.subr.bf16.mxu0 0
  %312 = vmatpush1.bf16.msra.mxu0 %v199
  %313 = vmatprep.subr.bf16.mxu0 0
  %314 = vmatpush1.bf16.msra.mxu0 0
  %315 = vmatprep.subr.bf16.mxu0 0
  %316 = vmatpush1.bf16.msra.mxu0 0
  %317 = vmatprep.subr.bf16.mxu0 0
  %318 = vmatpush1.bf16.msra.mxu0 0
  %319 = vmatprep.subr.bf16.mxu0 0
  %320 = vmatpush1.bf16.msra.mxu0 0
  %321 = vmatprep.subr.bf16.mxu0 0
  %322 = vmatpush1.bf16.msra.mxu0 0
  %323 = vmatprep.subr.bf16.mxu0 0
  %324 = vmatpush1.bf16.msra.mxu0 0
  %325 = vmatprep.subr.bf16.mxu0 0
  %326 = vmatpush1.bf16.msra.mxu0 0
  %327 = vmatprep.subr.bf16.mxu0 0
  %328 = vmatpush1.bf16.msra.mxu0 0
  %329 = vmatprep.mubr.bf16.mxu0 0
  %330 = vmatmul.mubr.bf16.gmra.mrb[0].mxu0 %v88
  %v331 = vpop.f32.mrb[0].mxu0
  %v332 = vadd.f32 %v68, %v331
  %v333 = vpop.f32.mrb[0].mxu0
  %v334 = vpop.f32.mrb[0].mxu0
  %v335 = vadd.f32 %v68, %v334
  %v336 = vpop.f32.mrb[0].mxu0
  %337 = vmatprep.mubr.bf16.mxu0 0
  %338 = vmatmul.mubr.bf16.gmra.mrb[0].mxu0 %v89
  %v339 = vpop.f32.mrb[0].mxu0
  %v340 = vadd.f32 %v68, %v339
  %v341 = vpop.f32.mrb[0].mxu0
  %v342 = vpop.f32.mrb[0].mxu0
  %v343 = vadd.f32 %v68, %v342
  %v344 = vpop.f32.mrb[0].mxu0
  %345 = vmatprep.mubr.bf16.mxu0 0
  %346 = vmatmul.mubr.bf16.gmra.mrb[0].mxu0 %v90
  %v347 = vpop.f32.mrb[0].mxu0
  %v348 = vadd.f32 %v68, %v347
  %v349 = vpop.f32.mrb[0].mxu0
  %v350 = vpop.f32.mrb[0].mxu0
  %v351 = vadd.f32 %v68, %v350
  %v352 = vpop.f32.mrb[0].mxu0
  %353 = vmatprep.mubr.bf16.mxu0 0
  %354 = vmatmul.mubr.bf16.gmra.mrb[0].mxu0 %v91
  %v355 = vpop.f32.mrb[0].mxu0
  %v356 = vadd.f32 %v68, %v355
  %v357 = vpop.f32.mrb[0].mxu0
  %v358 = vpop.f32.mrb[0].mxu0
  %v359 = vadd.f32 %v68, %v358
  %v360 = vpop.f32.mrb[0].mxu0
  %361 = vdwg.mxu0
  %362 = vst [vmem:[%s3] sm:$0xff] %v259
  %363 = vst [vmem:[%s3 + $0x8] sm:$0xff] %v261
  %364 = vst [vmem:[%s3 + $0x10] sm:$0xff] %v332
  %365 = vst [vmem:[%s3 + $0x18] sm:$0xff] %v263
  %366 = vst [vmem:[%s3 + $0x20] sm:$0xff] %v265
  %367 = vst [vmem:[%s3 + $0x28] sm:$0xff] %v335
  %368 = vst [vmem:[%s3 + $0x30] sm:$0xff] %v269
  %369 = vst [vmem:[%s3 + $0x38] sm:$0xff] %v271
  %370 = vst [vmem:[%s3 + $0x40] sm:$0xff] %v340
  %371 = vst [vmem:[%s3 + $0x48] sm:$0xff] %v273
  %372 = vst [vmem:[%s3 + $0x50] sm:$0xff] %v275
  %373 = vst [vmem:[%s3 + $0x58] sm:$0xff] %v343
  %374 = vst [vmem:[%s3 + $0x60] sm:$0xff] %v279
  %375 = vst [vmem:[%s3 + $0x68] sm:$0xff] %v281
  %376 = vst [vmem:[%s3 + $0x70] sm:$0xff] %v348
  %377 = vst [vmem:[%s3 + $0x78] sm:$0xff] %v283
  %378 = vst [vmem:[%s3 + $0x80] sm:$0xff] %v285
  %379 = vst [vmem:[%s3 + $0x88] sm:$0xff] %v351
  %380 = vst [vmem:[%s3 + $0x90] sm:$0xff] %v289
  %381 = vst [vmem:[%s3 + $0x98] sm:$0xff] %v291
  %382 = vst [vmem:[%s3 + $0xa0] sm:$0xff] %v356
  %383 = vst [vmem:[%s3 + $0xa8] sm:$0xff] %v293
  %384 = vst [vmem:[%s3 + $0xb0] sm:$0xff] %v295
  %385 = vst [vmem:[%s3 + $0xb8] sm:$0xff] %v359
  // Predicated region
  $region14: #{gru_with_padding.4} parent=0 // pred_check
    _
  $region15: #{gru_with_padding.4} parent=0 // pred_check_branch
    %387 = sbr.rel (0) target = $region17
  $region16: #{gru_with_padding.4} parent=0 // pred_region
    _
  $region17: #{gru_with_padding.4} parent=0 // pred_fallthru
    _
  // Predicated region
  $region18: #{gru_with_padding.4} parent=0 // pred_check
    _
  $region19: #{gru_with_padding.4} parent=0 // pred_check_branch
    %389 = sbr.rel (0) target = $region21
  $region20: #{gru_with_padding.4} parent=0 // pred_region
    _
  $region21: #{gru_with_padding.4} parent=0 // pred_fallthru
    _

// kernel: gru_with_padding.7
$region0: #{gru_with_padding.7}
  #allocation0 [shape = 'u32[]', space=smem, size = 0x4, offset = 0x4, fixed_abs, tag = 'smem constant byte address 0x4 - core index']
  #allocation1 [shape = 'u32[144,128]{1,0:T(1,128)}', space=vmem, size = 0x12000, scoped, tag = 'internal scratch']
  #allocation2 [shape = 'f32[8,128]{1,0:T(8,128)}', space=vmem, size = 0x1000, scoped, tag = 'scratch operand']
  %s0 = inlined_call_operand.vmem [shape: f32[8,8,384], index: 0, kind: input, shape index: {}]
  %s1 = inlined_call_operand.vmem [shape: f32[8,8,1], index: 1, kind: input, shape index: {}]
  %s2 = inlined_call_operand.vmem [shape: f32[8,128], index: 2, kind: input, shape index: {}]
  %s3 = inlined_call_operand.vmem [shape: bf16[128,384], index: 3, kind: input, shape index: {}]
  %s4 = inlined_call_operand.vmem [shape: f32[1,128], index: 4, kind: input, shape index: {}]
  %s5 = inlined_call_operand.vmem [shape: f32[8,128], index: 5, kind: output, shape index: {}]
  %s6 = sld [smem:[#allocation0]]
  $region34: #{gru_with_padding.7} parent=0
    _
  %s8 = ssub.s32 1, %s6
  %s9 = scalar_select 0, %s8, %s6
  // Predicated region
  $region2: #{gru_with_padding.7} parent=0 // pred_check
    _
  $region3: #{gru_with_padding.7} parent=0 // pred_check_branch
    %11 = sbr.rel (0) target = $region5
  $region4: #{gru_with_padding.7} parent=0 // pred_region
    _
  $region5: #{gru_with_padding.7} parent=0 // pred_fallthru
    _
  // Predicated region
  $region6: #{gru_with_padding.7} parent=0 // pred_check
    _
  $region7: #{gru_with_padding.7} parent=0 // pred_check_branch
    %13 = sbr.rel (0) target = $region9
  $region8: #{gru_with_padding.7} parent=0 // pred_region
    _
  $region9: #{gru_with_padding.7} parent=0 // pred_fallthru
    _
  // Predicated region
  $region10: #{gru_with_padding.7} parent=0 // pred_check
    _
  $region11: #{gru_with_padding.7} parent=0 // pred_check_branch
    %15 = sbr.rel (0) target = $region13
  $region12: #{gru_with_padding.7} parent=0 // pred_region
    _
  $region13: #{gru_with_padding.7} parent=0 // pred_fallthru
    _
  // Predicated region
  $region14: #{gru_with_padding.7} parent=0 // pred_check
    _
  $region15: #{gru_with_padding.7} parent=0 // pred_check_branch
    %17 = sbr.rel (0) target = $region17
  $region16: #{gru_with_padding.7} parent=0 // pred_region
    _
  $region17: #{gru_with_padding.7} parent=0 // pred_fallthru
    _
  // Predicated region
  $region18: #{gru_with_padding.7} parent=0 // pred_check
    _
  $region19: #{gru_with_padding.7} parent=0 // pred_check_branch
    %19 = sbr.rel (0) target = $region21
  $region20: #{gru_with_padding.7} parent=0 // pred_region
    _
  $region21: #{gru_with_padding.7} parent=0 // pred_fallthru
    _
  %p21 = scmp.eq.s32.totalorder 0, 0
  // Predicated region
  $region22: #{gru_with_padding.7} parent=0 // pred_check
    %p22 = pneg %p21
  $region23: #{gru_with_padding.7} parent=0 // pred_check_branch
    %24 = sbr.rel (%p22) target = $region25
  $region24: #{gru_with_padding.7} parent=0 // pred_region
    %v25 = vld [vmem:[%s2] sm:$0xff]
    %26 = vst [vmem:[#allocation2] sm:$0xff] %v25
  $region25: #{gru_with_padding.7} parent=0 // pred_fallthru
    _
  %v27 = vld [vmem:[%s3] sm:$0xff]
  %v28 = vld [vmem:[%s3 + $0x8] sm:$0xf]
  %v29 = vld [vmem:[%s3 + $0xc] sm:$0xff]
  %v30 = vld [vmem:[%s3 + $0x14] sm:$0xf]
  %v31 = vld [vmem:[%s3 + $0x18] sm:$0xff]
  %v32 = vld [vmem:[%s3 + $0x20] sm:$0xf]
  %v33 = vld [vmem:[%s3 + $0x24] sm:$0xff]
  %v34 = vld [vmem:[%s3 + $0x2c] sm:$0xf]
  %v35 = vld [vmem:[%s3 + $0x30] sm:$0xff]
  %v36 = vld [vmem:[%s3 + $0x38] sm:$0xf]
  %v37 = vld [vmem:[%s3 + $0x3c] sm:$0xff]
  %v38 = vld [vmem:[%s3 + $0x44] sm:$0xf]
  %v39 = vld [vmem:[%s3 + $0x48] sm:$0xff]
  %v40 = vld [vmem:[%s3 + $0x50] sm:$0xf]
  %v41 = vld [vmem:[%s3 + $0x54] sm:$0xff]
  %v42 = vld [vmem:[%s3 + $0x5c] sm:$0xf]
  %v43 = vld [vmem:[%s3 + $0x60] sm:$0xff]
  %v44 = vld [vmem:[%s3 + $0x68] sm:$0xf]
  %v45 = vld [vmem:[%s3 + $0x6c] sm:$0xff]
  %v46 = vld [vmem:[%s3 + $0x74] sm:$0xf]
  %v47 = vld [vmem:[%s3 + $0x78] sm:$0xff]
  %v48 = vld [vmem:[%s3 + $0x80] sm:$0xf]
  %v49 = vld [vmem:[%s3 + $0x84] sm:$0xff]
  %v50 = vld [vmem:[%s3 + $0x8c] sm:$0xf]
  %v51 = vld [vmem:[%s3 + $0x90] sm:$0xff]
  %v52 = vld [vmem:[%s3 + $0x98] sm:$0xf]
  %v53 = vld [vmem:[%s3 + $0x9c] sm:$0xff]
  %v54 = vld [vmem:[%s3 + $0xa4] sm:$0xf]
  %v55 = vld [vmem:[%s3 + $0xa8] sm:$0xff]
  %v56 = vld [vmem:[%s3 + $0xb0] sm:$0xf]
  %v57 = vld [vmem:[%s3 + $0xb4] sm:$0xff]
  %v58 = vld [vmem:[%s3 + $0xbc] sm:$0xf]
  %v59 = vld [vmem:[%s4] sm:$0x1]
  %v61 = vlaneseq
  %v62 = vshrl.u32 %v61, 7
  %v63 = vsub.s32 0, %v62
  %v64 = vrot.slane %v59, %v63
  %v66 = vld [vmem:[#allocation2] sm:$0xff]
  %v67 = vld [vmem:[%s0] sm:$0xff]
  %v68 = vld [vmem:[%s0 + $0x8] sm:$0xff]
  %v69 = vld [vmem:[%s0 + $0x10] sm:$0xff]
  %v70 = vpack.c.bf16 %v66, %v66
  %v103 = vunpack.c.l.b16 %v27
  %v104 = vunpack.c.h.b16 %v27
  %v105 = vunpack.c.l.b16 %v28
  %v106 = vunpack.c.l.b16 %v29
  %v107 = vunpack.c.h.b16 %v29
  %v108 = vunpack.c.l.b16 %v30
  %v109 = vunpack.c.l.b16 %v31
  %v110 = vunpack.c.h.b16 %v31
  %v111 = vunpack.c.l.b16 %v32
  %v112 = vunpack.c.l.b16 %v33
  %v113 = vunpack.c.h.b16 %v33
  %v114 = vunpack.c.l.b16 %v34
  %v115 = vunpack.c.l.b16 %v35
  %v116 = vunpack.c.h.b16 %v35
  %v117 = vunpack.c.l.b16 %v36
  %v118 = vunpack.c.l.b16 %v37
  %v119 = vunpack.c.h.b16 %v37
  %v120 = vunpack.c.l.b16 %v38
  %v121 = vunpack.c.l.b16 %v39
  %v122 = vunpack.c.h.b16 %v39
  %v123 = vunpack.c.l.b16 %v40
  %v124 = vunpack.c.l.b16 %v41
  %v125 = vunpack.c.h.b16 %v41
  %v126 = vunpack.c.l.b16 %v42
  %v127 = vunpack.c.l.b16 %v43
  %v128 = vunpack.c.h.b16 %v43
  %v129 = vunpack.c.l.b16 %v44
  %v130 = vunpack.c.l.b16 %v45
  %v131 = vunpack.c.h.b16 %v45
  %v132 = vunpack.c.l.b16 %v46
  %v133 = vunpack.c.l.b16 %v47
  %v134 = vunpack.c.h.b16 %v47
  %v135 = vunpack.c.l.b16 %v48
  %v136 = vunpack.c.l.b16 %v49
  %v137 = vunpack.c.h.b16 %v49
  %v138 = vunpack.c.l.b16 %v50
  %v139 = vunpack.c.l.b16 %v51
  %v140 = vunpack.c.h.b16 %v51
  %v141 = vunpack.c.l.b16 %v52
  %v142 = vunpack.c.l.b16 %v53
  %v143 = vunpack.c.h.b16 %v53
  %v144 = vunpack.c.l.b16 %v54
  %v145 = vunpack.c.l.b16 %v55
  %v146 = vunpack.c.h.b16 %v55
  %v147 = vunpack.c.l.b16 %v56
  %v148 = vunpack.c.l.b16 %v57
  %v149 = vunpack.c.h.b16 %v57
  %v150 = vunpack.c.l.b16 %v58
  %v151 = vpack.c.b16 %v106, %v103
  %v152 = vpack.c.b16 %v107, %v104
  %v153 = vpack.c.b16 %v108, %v105
  %v154 = vpack.c.b16 %v112, %v109
  %v155 = vpack.c.b16 %v113, %v110
  %v156 = vpack.c.b16 %v114, %v111
  %v157 = vpack.c.b16 %v118, %v115
  %v158 = vpack.c.b16 %v119, %v116
  %v159 = vpack.c.b16 %v120, %v117
  %v160 = vpack.c.b16 %v124, %v121
  %v161 = vpack.c.b16 %v125, %v122
  %v162 = vpack.c.b16 %v126, %v123
  %v163 = vpack.c.b16 %v130, %v127
  %v164 = vpack.c.b16 %v131, %v128
  %v165 = vpack.c.b16 %v132, %v129
  %v166 = vpack.c.b16 %v136, %v133
  %v167 = vpack.c.b16 %v137, %v134
  %v168 = vpack.c.b16 %v138, %v135
  %v169 = vpack.c.b16 %v142, %v139
  %v170 = vpack.c.b16 %v143, %v140
  %v171 = vpack.c.b16 %v144, %v141
  %v172 = vpack.c.b16 %v148, %v145
  %v173 = vpack.c.b16 %v149, %v146
  %v174 = vpack.c.b16 %v150, %v147
  %199 = vmatprep.subr.bf16.mxu0 %v152
  %200 = vmatpush1.bf16.msra.mxu0 %v151
  %201 = vmatprep.subr.bf16.mxu0 %v155
  %202 = vmatpush1.bf16.msra.mxu0 %v154
  %203 = vmatprep.subr.bf16.mxu0 %v158
  %204 = vmatpush1.bf16.msra.mxu0 %v157
  %205 = vmatprep.subr.bf16.mxu0 %v161
  %206 = vmatpush1.bf16.msra.mxu0 %v160
  %207 = vmatprep.subr.bf16.mxu0 %v164
  %208 = vmatpush1.bf16.msra.mxu0 %v163
  %209 = vmatprep.subr.bf16.mxu0 %v167
  %210 = vmatpush1.bf16.msra.mxu0 %v166
  %211 = vmatprep.subr.bf16.mxu0 %v170
  %212 = vmatpush1.bf16.msra.mxu0 %v169
  %213 = vmatprep.subr.bf16.mxu0 %v173
  %214 = vmatpush1.bf16.msra.mxu0 %v172
  %215 = vmatprep.subr.bf16.mxu0 0
  %216 = vmatpush1.bf16.msra.mxu0 0
  %217 = vmatprep.subr.bf16.mxu0 0
  %218 = vmatpush1.bf16.msra.mxu0 0
  %219 = vmatprep.subr.bf16.mxu0 0
  %220 = vmatpush1.bf16.msra.mxu0 0
  %221 = vmatprep.subr.bf16.mxu0 0
  %222 = vmatpush1.bf16.msra.mxu0 0
  %223 = vmatprep.subr.bf16.mxu0 0
  %224 = vmatpush1.bf16.msra.mxu0 0
  %225 = vmatprep.subr.bf16.mxu0 0
  %226 = vmatpush1.bf16.msra.mxu0 0
  %227 = vmatprep.subr.bf16.mxu0 0
  %228 = vmatpush1.bf16.msra.mxu0 0
  %229 = vmatprep.subr.bf16.mxu0 0
  %230 = vmatpush1.bf16.msra.mxu0 0
  %231 = vmatprep.mubr.bf16.mxu0 0
  %232 = vmatmul.mubr.bf16.gmra.mrb[0].mxu0 %v70
  %v233 = vpop.f32.mrb[0].mxu0
  %v234 = vadd.f32 0.0, %v233
  %v235 = vpop.f32.mrb[0].mxu0
  %v236 = vadd.f32 0.0, %v235
  %v237 = vpop.f32.mrb[0].mxu0
  %v238 = vpop.f32.mrb[0].mxu0
  %239 = vdwg.mxu0
  %240 = vmatprep.subr.bf16.mxu0 0
  %241 = vmatpush1.bf16.msra.mxu0 %v153
  %242 = vmatprep.subr.bf16.mxu0 0
  %243 = vmatpush1.bf16.msra.mxu0 %v156
  %244 = vmatprep.subr.bf16.mxu0 0
  %245 = vmatpush1.bf16.msra.mxu0 %v159
  %246 = vmatprep.subr.bf16.mxu0 0
  %247 = vmatpush1.bf16.msra.mxu0 %v162
  %248 = vmatprep.subr.bf16.mxu0 0
  %249 = vmatpush1.bf16.msra.mxu0 %v165
  %250 = vmatprep.subr.bf16.mxu0 0
  %251 = vmatpush1.bf16.msra.mxu0 %v168
  %252 = vmatprep.subr.bf16.mxu0 0
  %253 = vmatpush1.bf16.msra.mxu0 %v171
  %254 = vmatprep.subr.bf16.mxu0 0
  %255 = vmatpush1.bf16.msra.mxu0 %v174
  %256 = vmatprep.subr.bf16.mxu0 0
  %257 = vmatpush1.bf16.msra.mxu0 0
  %258 = vmatprep.subr.bf16.mxu0 0
  %259 = vmatpush1.bf16.msra.mxu0 0
  %260 = vmatprep.subr.bf16.mxu0 0
  %261 = vmatpush1.bf16.msra.mxu0 0
  %262 = vmatprep.subr.bf16.mxu0 0
  %263 = vmatpush1.bf16.msra.mxu0 0
  %264 = vmatprep.subr.bf16.mxu0 0
  %265 = vmatpush1.bf16.msra.mxu0 0
  %266 = vmatprep.subr.bf16.mxu0 0
  %267 = vmatpush1.bf16.msra.mxu0 0
  %268 = vmatprep.subr.bf16.mxu0 0
  %269 = vmatpush1.bf16.msra.mxu0 0
  %270 = vmatprep.subr.bf16.mxu0 0
  %271 = vmatpush1.bf16.msra.mxu0 0
  %272 = vmatprep.mubr.bf16.mxu0 0
  %273 = vmatmul.mubr.bf16.gmra.mrb[0].mxu0 %v70
  %v274 = vpop.f32.mrb[0].mxu0
  %v275 = vadd.f32 0.0, %v274
  %v276 = vpop.f32.mrb[0].mxu0
  %v277 = vpop.f32.mrb[0].mxu0
  %v278 = vpop.f32.mrb[0].mxu0
  %279 = vdwg.mxu0
  %v280 = vadd.f32 %v67, %v234
  %v281 = vxor.u32 %v280, 2147483648
  %v282 = vmul.f32 %v281, 1.442695
  %v283 = vpow.pop %v282
  %v284 = vadd.f32 %v283, 1.0
  %v285 = vrcp.pop %v284
  %v286 = vmul.f32 1.0, %v285
  %v287 = vadd.f32 %v68, %v236
  %v288 = vxor.u32 %v287, 2147483648
  %v289 = vmul.f32 %v288, 1.442695
  %v290 = vpow.pop %v289
  %v291 = vadd.f32 %v290, 1.0
  %v292 = vrcp.pop %v291
  %v293 = vmul.f32 1.0, %v292
  %v294 = vadd.f32 %v275, %v64
  %v295 = vmul.f32 %v286, %v294
  %v296 = vadd.f32 %v69, %v295
  %v297 = vtanh.pop %v296
  %v298 = vsub.f32 %v66, %v297
  %v299 = vmul.f32 %v293, %v298
  %v300 = vadd.f32 %v297, %v299
  %v301 = vld [vmem:[%s1] sm:$0xff]
  %v302 = vsub.f32 %v300, %v66
  %304 = vset.pattern.permute.xlu0 0
  %305 = vperm.xlu0 %304, %v301
  %v306 = vpop.permute.xlu0 %305
  %v308 = vmul.f32 %v306, %v302
  %v309 = vadd.f32 %v66, %v308
  %310 = vst [vmem:[#allocation2] sm:$0xff] %v309
  %v311 = vld [vmem:[#allocation2] sm:$0xff]
  %s312 = scalar_lea.vmem %s0, 24
  %v313 = vld [vmem:[%s312] sm:$0xff]
  %v314 = vld [vmem:[%s312 + $0x8] sm:$0xff]
  %v315 = vld [vmem:[%s312 + $0x10] sm:$0xff]
  %v316 = vpack.c.bf16 %v311, %v311
  %317 = vmatprep.subr.bf16.mxu0 %v152
  %318 = vmatpush1.bf16.msra.mxu0 %v151
  %319 = vmatprep.subr.bf16.mxu0 %v155
  %320 = vmatpush1.bf16.msra.mxu0 %v154
  %321 = vmatprep.subr.bf16.mxu0 %v158
  %322 = vmatpush1.bf16.msra.mxu0 %v157
  %323 = vmatprep.subr.bf16.mxu0 %v161
  %324 = vmatpush1.bf16.msra.mxu0 %v160
  %325 = vmatprep.subr.bf16.mxu0 %v164
  %326 = vmatpush1.bf16.msra.mxu0 %v163
  %327 = vmatprep.subr.bf16.mxu0 %v167
  %328 = vmatpush1.bf16.msra.mxu0 %v166
  %329 = vmatprep.subr.bf16.mxu0 %v170
  %330 = vmatpush1.bf16.msra.mxu0 %v169
  %331 = vmatprep.subr.bf16.mxu0 %v173
  %332 = vmatpush1.bf16.msra.mxu0 %v172
  %333 = vmatprep.subr.bf16.mxu0 0
  %334 = vmatpush1.bf16.msra.mxu0 0
  %335 = vmatprep.subr.bf16.mxu0 0
  %336 = vmatpush1.bf16.msra.mxu0 0
  %337 = vmatprep.subr.bf16.mxu0 0
  %338 = vmatpush1.bf16.msra.mxu0 0
  %339 = vmatprep.subr.bf16.mxu0 0
  %340 = vmatpush1.bf16.msra.mxu0 0
  %341 = vmatprep.subr.bf16.mxu0 0
  %342 = vmatpush1.bf16.msra.mxu0 0
  %343 = vmatprep.subr.bf16.mxu0 0
  %344 = vmatpush1.bf16.msra.mxu0 0
  %345 = vmatprep.subr.bf16.mxu0 0
  %346 = vmatpush1.bf16.msra.mxu0 0
  %347 = vmatprep.subr.bf16.mxu0 0
  %348 = vmatpush1.bf16.msra.mxu0 0
  %349 = vmatprep.mubr.bf16.mxu0 0
  %350 = vmatmul.mubr.bf16.gmra.mrb[0].mxu0 %v316
  %v351 = vpop.f32.mrb[0].mxu0
  %v352 = vadd.f32 0.0, %v351
  %v353 = vpop.f32.mrb[0].mxu0
  %v354 = vadd.f32 0.0, %v353
  %v355 = vpop.f32.mrb[0].mxu0
  %v356 = vpop.f32.mrb[0].mxu0
  %357 = vdwg.mxu0
  %358 = vmatprep.subr.bf16.mxu0 0
  %359 = vmatpush1.bf16.msra.mxu0 %v153
  %360 = vmatprep.subr.bf16.mxu0 0
  %361 = vmatpush1.bf16.msra.mxu0 %v156
  %362 = vmatprep.subr.bf16.mxu0 0
  %363 = vmatpush1.bf16.msra.mxu0 %v159
  %364 = vmatprep.subr.bf16.mxu0 0
  %365 = vmatpush1.bf16.msra.mxu0 %v162
  %366 = vmatprep.subr.bf16.mxu0 0
  %367 = vmatpush1.bf16.msra.mxu0 %v165
  %368 = vmatprep.subr.bf16.mxu0 0
  %369 = vmatpush1.bf16.msra.mxu0 %v168
  %370 = vmatprep.subr.bf16.mxu0 0
  %371 = vmatpush1.bf16.msra.mxu0 %v171
  %372 = vmatprep.subr.bf16.mxu0 0
  %373 = vmatpush1.bf16.msra.mxu0 %v174
  %374 = vmatprep.subr.bf16.mxu0 0
  %375 = vmatpush1.bf16.msra.mxu0 0
  %376 = vmatprep.subr.bf16.mxu0 0
  %377 = vmatpush1.bf16.msra.mxu0 0
  %378 = vmatprep.subr.bf16.mxu0 0
  %379 = vmatpush1.bf16.msra.mxu0 0
  %380 = vmatprep.subr.bf16.mxu0 0
  %381 = vmatpush1.bf16.msra.mxu0 0
  %382 = vmatprep.subr.bf16.mxu0 0
  %383 = vmatpush1.bf16.msra.mxu0 0
  %384 = vmatprep.subr.bf16.mxu0 0
  %385 = vmatpush1.bf16.msra.mxu0 0
  %386 = vmatprep.subr.bf16.mxu0 0
  %387 = vmatpush1.bf16.msra.mxu0 0
  %388 = vmatprep.subr.bf16.mxu0 0
  %389 = vmatpush1.bf16.msra.mxu0 0
  %390 = vmatprep.mubr.bf16.mxu0 0
  %391 = vmatmul.mubr.bf16.gmra.mrb[0].mxu0 %v316
  %v392 = vpop.f32.mrb[0].mxu0
  %v393 = vadd.f32 0.0, %v392
  %v394 = vpop.f32.mrb[0].mxu0
  %v395 = vpop.f32.mrb[0].mxu0
  %v396 = vpop.f32.mrb[0].mxu0
  %397 = vdwg.mxu0
  %v398 = vadd.f32 %v313, %v352
  %v399 = vxor.u32 %v398, 2147483648
  %v400 = vmul.f32 %v399, 1.442695
  %v401 = vpow.pop %v400
  %v402 = vadd.f32 %v401, 1.0
  %v403 = vrcp.pop %v402
  %v404 = vmul.f32 1.0, %v403
  %v405 = vadd.f32 %v314, %v354
  %v406 = vxor.u32 %v405, 2147483648
  %v407 = vmul.f32 %v406, 1.442695
  %v408 = vpow.pop %v407
  %v409 = vadd.f32 %v408, 1.0
  %v410 = vrcp.pop %v409
  %v411 = vmul.f32 1.0, %v410
  %v412 = vadd.f32 %v393, %v64
  %v413 = vmul.f32 %v404, %v412
  %v414 = vadd.f32 %v315, %v413
  %v415 = vtanh.pop %v414
  %v416 = vsub.f32 %v311, %v415
  %v417 = vmul.f32 %v411, %v416
  %v418 = vadd.f32 %v415, %v417
  %s419 = scalar_lea.vmem %s1, 8
  %v420 = vld [vmem:[%s419] sm:$0xff]
  %v421 = vsub.f32 %v418, %v311
  %423 = vset.pattern.permute.xlu0 0
  %424 = vperm.xlu0 %423, %v420
  %v425 = vpop.permute.xlu0 %424
  %v427 = vmul.f32 %v425, %v421
  %v428 = vadd.f32 %v311, %v427
  %429 = vst [vmem:[#allocation2] sm:$0xff] %v428
  %v430 = vld [vmem:[#allocation2] sm:$0xff]
  %s431 = scalar_lea.vmem %s0, 48
  %v432 = vld [vmem:[%s431] sm:$0xff]
  %v433 = vld [vmem:[%s431 + $0x8] sm:$0xff]
  %v434 = vld [vmem:[%s431 + $0x10] sm:$0xff]
  %v435 = vpack.c.bf16 %v430, %v430
  %436 = vmatprep.subr.bf16.mxu0 %v152
  %437 = vmatpush1.bf16.msra.mxu0 %v151
  %438 = vmatprep.subr.bf16.mxu0 %v155
  %439 = vmatpush1.bf16.msra.mxu0 %v154
  %440 = vmatprep.subr.bf16.mxu0 %v158
  %441 = vmatpush1.bf16.msra.mxu0 %v157
  %442 = vmatprep.subr.bf16.mxu0 %v161
  %443 = vmatpush1.bf16.msra.mxu0 %v160
  %444 = vmatprep.subr.bf16.mxu0 %v164
  %445 = vmatpush1.bf16.msra.mxu0 %v163
  %446 = vmatprep.subr.bf16.mxu0 %v167
  %447 = vmatpush1.bf16.msra.mxu0 %v166
  %448 = vmatprep.subr.bf16.mxu0 %v170
  %449 = vmatpush1.bf16.msra.mxu0 %v169
  %450 = vmatprep.subr.bf16.mxu0 %v173
  %451 = vmatpush1.bf16.msra.mxu0 %v172
  %452 = vmatprep.subr.bf16.mxu0 0
  %453 = vmatpush1.bf16.msra.mxu0 0
  %454 = vmatprep.subr.bf16.mxu0 0
  %455 = vmatpush1.bf16.msra.mxu0 0
  %456 = vmatprep.subr.bf16.mxu0 0
  %457 = vmatpush1.bf16.msra.mxu0 0
  %458 = vmatprep.subr.bf16.mxu0 0
  %459 = vmatpush1.bf16.msra.mxu0 0
  %460 = vmatprep.subr.bf16.mxu0 0
  %461 = vmatpush1.bf16.msra.mxu0 0
  %462 = vmatprep.subr.bf16.mxu0 0
  %463 = vmatpush1.bf16.msra.mxu0 0
  %464 = vmatprep.subr.bf16.mxu0 0
  %465 = vmatpush1.bf16.msra.mxu0 0
  %466 = vmatprep.subr.bf16.mxu0 0
  %467 = vmatpush1.bf16.msra.mxu0 0
  %468 = vmatprep.mubr.bf16.mxu0 0
  %469 = vmatmul.mubr.bf16.gmra.mrb[0].mxu0 %v435
  %v470 = vpop.f32.mrb[0].mxu0
  %v471 = vadd.f32 0.0, %v470
  %v472 = vpop.f32.mrb[0].mxu0
  %v473 = vadd.f32 0.0, %v472
  %v474 = vpop.f32.mrb[0].mxu0
  %v475 = vpop.f32.mrb[0].mxu0
  %476 = vdwg.mxu0
  %477 = vmatprep.subr.bf16.mxu0 0
  %478 = vmatpush1.bf16.msra.mxu0 %v153
  %479 = vmatprep.subr.bf16.mxu0 0
  %480 = vmatpush1.bf16.msra.mxu0 %v156
  %481 = vmatprep.subr.bf16.mxu0 0
  %482 = vmatpush1.bf16.msra.mxu0 %v159
  %483 = vmatprep.subr.bf16.mxu0 0
  %484 = vmatpush1.bf16.msra.mxu0 %v162
  %485 = vmatprep.subr.bf16.mxu0 0
  %486 = vmatpush1.bf16.msra.mxu0 %v165
  %487 = vmatprep.subr.bf16.mxu0 0
  %488 = vmatpush1.bf16.msra.mxu0 %v168
  %489 = vmatprep.subr.bf16.mxu0 0
  %490 = vmatpush1.bf16.msra.mxu0 %v171
  %491 = vmatprep.subr.bf16.mxu0 0
  %492 = vmatpush1.bf16.msra.mxu0 %v174
  %493 = vmatprep.subr.bf16.mxu0 0
  %494 = vmatpush1.bf16.msra.mxu0 0
  %495 = vmatprep.subr.bf16.mxu0 0
  %496 = vmatpush1.bf16.msra.mxu0 0
  %497 = vmatprep.subr.bf16.mxu0 0
  %498 = vmatpush1.bf16.msra.mxu0 0
  %499 = vmatprep.subr.bf16.mxu0 0
  %500 = vmatpush1.bf16.msra.mxu0 0
  %501 = vmatprep.subr.bf16.mxu0 0
  %502 = vmatpush1.bf16.msra.mxu0 0
  %503 = vmatprep.subr.bf16.mxu0 0
  %504 = vmatpush1.bf16.msra.mxu0 0
  %505 = vmatprep.subr.bf16.mxu0 0
  %506 = vmatpush1.bf16.msra.mxu0 0
  %507 = vmatprep.subr.bf16.mxu0 0
  %508 = vmatpush1.bf16.msra.mxu0 0
  %509 = vmatprep.mubr.bf16.mxu0 0
  %510 = vmatmul.mubr.bf16.gmra.mrb[0].mxu0 %v435
  %v511 = vpop.f32.mrb[0].mxu0
  %v512 = vadd.f32 0.0, %v511
  %v513 = vpop.f32.mrb[0].mxu0
  %v514 = vpop.f32.mrb[0].mxu0
  %v515 = vpop.f32.mrb[0].mxu0
  %516 = vdwg.mxu0
  %v517 = vadd.f32 %v432, %v471
  %v518 = vxor.u32 %v517, 2147483648
  %v519 = vmul.f32 %v518, 1.442695
  %v520 = vpow.pop %v519
  %v521 = vadd.f32 %v520, 1.0
  %v522 = vrcp.pop %v521
  %v523 = vmul.f32 1.0, %v522
  %v524 = vadd.f32 %v433, %v473
  %v525 = vxor.u32 %v524, 2147483648
  %v526 = vmul.f32 %v525, 1.442695
  %v527 = vpow.pop %v526
  %v528 = vadd.f32 %v527, 1.0
  %v529 = vrcp.pop %v528
  %v530 = vmul.f32 1.0, %v529
  %v531 = vadd.f32 %v512, %v64
  %v532 = vmul.f32 %v523, %v531
  %v533 = vadd.f32 %v434, %v532
  %v534 = vtanh.pop %v533
  %v535 = vsub.f32 %v430, %v534
  %v536 = vmul.f32 %v530, %v535
  %v537 = vadd.f32 %v534, %v536
  %s538 = scalar_lea.vmem %s1, 16
  %v539 = vld [vmem:[%s538] sm:$0xff]
  %v540 = vsub.f32 %v537, %v430
  %542 = vset.pattern.permute.xlu0 0
  %543 = vperm.xlu0 %542, %v539
  %v544 = vpop.permute.xlu0 %543
  %v546 = vmul.f32 %v544, %v540
  %v547 = vadd.f32 %v430, %v546
  %548 = vst [vmem:[#allocation2] sm:$0xff] %v547
  %v549 = vld [vmem:[#allocation2] sm:$0xff]
  %s550 = scalar_lea.vmem %s0, 72
  %v551 = vld [vmem:[%s550] sm:$0xff]
  %v552 = vld [vmem:[%s550 + $0x8] sm:$0xff]
  %v553 = vld [vmem:[%s550 + $0x10] sm:$0xff]
  %v554 = vpack.c.bf16 %v549, %v549
  %555 = vmatprep.subr.bf16.mxu0 %v152
  %556 = vmatpush1.bf16.msra.mxu0 %v151
  %557 = vmatprep.subr.bf16.mxu0 %v155
  %558 = vmatpush1.bf16.msra.mxu0 %v154
  %559 = vmatprep.subr.bf16.mxu0 %v158
  %560 = vmatpush1.bf16.msra.mxu0 %v157
  %561 = vmatprep.subr.bf16.mxu0 %v161
  %562 = vmatpush1.bf16.msra.mxu0 %v160
  %563 = vmatprep.subr.bf16.mxu0 %v164
  %564 = vmatpush1.bf16.msra.mxu0 %v163
  %565 = vmatprep.subr.bf16.mxu0 %v167
  %566 = vmatpush1.bf16.msra.mxu0 %v166
  %567 = vmatprep.subr.bf16.mxu0 %v170
  %568 = vmatpush1.bf16.msra.mxu0 %v169
  %569 = vmatprep.subr.bf16.mxu0 %v173
  %570 = vmatpush1.bf16.msra.mxu0 %v172
  %571 = vmatprep.subr.bf16.mxu0 0
  %572 = vmatpush1.bf16.msra.mxu0 0
  %573 = vmatprep.subr.bf16.mxu0 0
  %574 = vmatpush1.bf16.msra.mxu0 0
  %575 = vmatprep.subr.bf16.mxu0 0
  %576 = vmatpush1.bf16.msra.mxu0 0
  %577 = vmatprep.subr.bf16.mxu0 0
  %578 = vmatpush1.bf16.msra.mxu0 0
  %579 = vmatprep.subr.bf16.mxu0 0
  %580 = vmatpush1.bf16.msra.mxu0 0
  %581 = vmatprep.subr.bf16.mxu0 0
  %582 = vmatpush1.bf16.msra.mxu0 0
  %583 = vmatprep.subr.bf16.mxu0 0
  %584 = vmatpush1.bf16.msra.mxu0 0
  %585 = vmatprep.subr.bf16.mxu0 0
  %586 = vmatpush1.bf16.msra.mxu0 0
  %587 = vmatprep.mubr.bf16.mxu0 0
  %588 = vmatmul.mubr.bf16.gmra.mrb[0].mxu0 %v554
  %v589 = vpop.f32.mrb[0].mxu0
  %v590 = vadd.f32 0.0, %v589
  %v591 = vpop.f32.mrb[0].mxu0
  %v592 = vadd.f32 0.0, %v591
  %v593 = vpop.f32.mrb[0].mxu0
  %v594 = vpop.f32.mrb[0].mxu0
  %595 = vdwg.mxu0
  %596 = vmatprep.subr.bf16.mxu0 0
  %597 = vmatpush1.bf16.msra.mxu0 %v153
  %598 = vmatprep.subr.bf16.mxu0 0
  %599 = vmatpush1.bf16.msra.mxu0 %v156
  %600 = vmatprep.subr.bf16.mxu0 0
  %601 = vmatpush1.bf16.msra.mxu0 %v159
  %602 = vmatprep.subr.bf16.mxu0 0
  %603 = vmatpush1.bf16.msra.mxu0 %v162
  %604 = vmatprep.subr.bf16.mxu0 0
  %605 = vmatpush1.bf16.msra.mxu0 %v165
  %606 = vmatprep.subr.bf16.mxu0 0
  %607 = vmatpush1.bf16.msra.mxu0 %v168
  %608 = vmatprep.subr.bf16.mxu0 0
  %609 = vmatpush1.bf16.msra.mxu0 %v171
  %610 = vmatprep.subr.bf16.mxu0 0
  %611 = vmatpush1.bf16.msra.mxu0 %v174
  %612 = vmatprep.subr.bf16.mxu0 0
  %613 = vmatpush1.bf16.msra.mxu0 0
  %614 = vmatprep.subr.bf16.mxu0 0
  %615 = vmatpush1.bf16.msra.mxu0 0
  %616 = vmatprep.subr.bf16.mxu0 0
  %617 = vmatpush1.bf16.msra.mxu0 0
  %618 = vmatprep.subr.bf16.mxu0 0
  %619 = vmatpush1.bf16.msra.mxu0 0
  %620 = vmatprep.subr.bf16.mxu0 0
  %621 = vmatpush1.bf16.msra.mxu0 0
  %622 = vmatprep.subr.bf16.mxu0 0
  %623 = vmatpush1.bf16.msra.mxu0 0
  %624 = vmatprep.subr.bf16.mxu0 0
  %625 = vmatpush1.bf16.msra.mxu0 0
  %626 = vmatprep.subr.bf16.mxu0 0
  %627 = vmatpush1.bf16.msra.mxu0 0
  %628 = vmatprep.mubr.bf16.mxu0 0
  %629 = vmatmul.mubr.bf16.gmra.mrb[0].mxu0 %v554
  %v630 = vpop.f32.mrb[0].mxu0
  %v631 = vadd.f32 0.0, %v630
  %v632 = vpop.f32.mrb[0].mxu0
  %v633 = vpop.f32.mrb[0].mxu0
  %v634 = vpop.f32.mrb[0].mxu0
  %635 = vdwg.mxu0
  %v636 = vadd.f32 %v551, %v590
  %v637 = vxor.u32 %v636, 2147483648
  %v638 = vmul.f32 %v637, 1.442695
  %v639 = vpow.pop %v638
  %v640 = vadd.f32 %v639, 1.0
  %v641 = vrcp.pop %v640
  %v642 = vmul.f32 1.0, %v641
  %v643 = vadd.f32 %v552, %v592
  %v644 = vxor.u32 %v643, 2147483648
  %v645 = vmul.f32 %v644, 1.442695
  %v646 = vpow.pop %v645
  %v647 = vadd.f32 %v646, 1.0
  %v648 = vrcp.pop %v647
  %v649 = vmul.f32 1.0, %v648
  %v650 = vadd.f32 %v631, %v64
  %v651 = vmul.f32 %v642, %v650
  %v652 = vadd.f32 %v553, %v651
  %v653 = vtanh.pop %v652
  %v654 = vsub.f32 %v549, %v653
  %v655 = vmul.f32 %v649, %v654
  %v656 = vadd.f32 %v653, %v655
  %s657 = scalar_lea.vmem %s1, 24
  %v658 = vld [vmem:[%s657] sm:$0xff]
  %v659 = vsub.f32 %v656, %v549
  %661 = vset.pattern.permute.xlu0 0
  %662 = vperm.xlu0 %661, %v658
  %v663 = vpop.permute.xlu0 %662
  %v665 = vmul.f32 %v663, %v659
  %v666 = vadd.f32 %v549, %v665
  %667 = vst [vmem:[#allocation2] sm:$0xff] %v666
  %v668 = vld [vmem:[#allocation2] sm:$0xff]
  %s669 = scalar_lea.vmem %s0, 96
  %v670 = vld [vmem:[%s669] sm:$0xff]
  %v671 = vld [vmem:[%s669 + $0x8] sm:$0xff]
  %v672 = vld [vmem:[%s669 + $0x10] sm:$0xff]
  %v673 = vpack.c.bf16 %v668, %v668
  %674 = vmatprep.subr.bf16.mxu0 %v152
  %675 = vmatpush1.bf16.msra.mxu0 %v151
  %676 = vmatprep.subr.bf16.mxu0 %v155
  %677 = vmatpush1.bf16.msra.mxu0 %v154
  %678 = vmatprep.subr.bf16.mxu0 %v158
  %679 = vmatpush1.bf16.msra.mxu0 %v157
  %680 = vmatprep.subr.bf16.mxu0 %v161
  %681 = vmatpush1.bf16.msra.mxu0 %v160
  %682 = vmatprep.subr.bf16.mxu0 %v164
  %683 = vmatpush1.bf16.msra.mxu0 %v163
  %684 = vmatprep.subr.bf16.mxu0 %v167
  %685 = vmatpush1.bf16.msra.mxu0 %v166
  %686 = vmatprep.subr.bf16.mxu0 %v170
  %687 = vmatpush1.bf16.msra.mxu0 %v169
  %688 = vmatprep.subr.bf16.mxu0 %v173
  %689 = vmatpush1.bf16.msra.mxu0 %v172
  %690 = vmatprep.subr.bf16.mxu0 0
  %691 = vmatpush1.bf16.msra.mxu0 0
  %692 = vmatprep.subr.bf16.mxu0 0
  %693 = vmatpush1.bf16.msra.mxu0 0
  %694 = vmatprep.subr.bf16.mxu0 0
  %695 = vmatpush1.bf16.msra.mxu0 0
  %696 = vmatprep.subr.bf16.mxu0 0
  %697 = vmatpush1.bf16.msra.mxu0 0
  %698 = vmatprep.subr.bf16.mxu0 0
  %699 = vmatpush1.bf16.msra.mxu0 0
  %700 = vmatprep.subr.bf16.mxu0 0
  %701 = vmatpush1.bf16.msra.mxu0 0
  %702 = vmatprep.subr.bf16.mxu0 0
  %703 = vmatpush1.bf16.msra.mxu0 0
  %704 = vmatprep.subr.bf16.mxu0 0
  %705 = vmatpush1.bf16.msra.mxu0 0
  %706 = vmatprep.mubr.bf16.mxu0 0
  %707 = vmatmul.mubr.bf16.gmra.mrb[0].mxu0 %v673
  %v708 = vpop.f32.mrb[0].mxu0
  %v709 = vadd.f32 0.0, %v708
  %v710 = vpop.f32.mrb[0].mxu0
  %v711 = vadd.f32 0.0, %v710
  %v712 = vpop.f32.mrb[0].mxu0
  %v713 = vpop.f32.mrb[0].mxu0
  %714 = vdwg.mxu0
  %715 = vmatprep.subr.bf16.mxu0 0
  %716 = vmatpush1.bf16.msra.mxu0 %v153
  %717 = vmatprep.subr.bf16.mxu0 0
  %718 = vmatpush1.bf16.msra.mxu0 %v156
  %719 = vmatprep.subr.bf16.mxu0 0
  %720 = vmatpush1.bf16.msra.mxu0 %v159
  %721 = vmatprep.subr.bf16.mxu0 0
  %722 = vmatpush1.bf16.msra.mxu0 %v162
  %723 = vmatprep.subr.bf16.mxu0 0
  %724 = vmatpush1.bf16.msra.mxu0 %v165
  %725 = vmatprep.subr.bf16.mxu0 0
  %726 = vmatpush1.bf16.msra.mxu0 %v168
  %727 = vmatprep.subr.bf16.mxu0 0
  %728 = vmatpush1.bf16.msra.mxu0 %v171
  %729 = vmatprep.subr.bf16.mxu0 0
  %730 = vmatpush1.bf16.msra.mxu0 %v174
  %731 = vmatprep.subr.bf16.mxu0 0
  %732 = vmatpush1.bf16.msra.mxu0 0
  %733 = vmatprep.subr.bf16.mxu0 0
  %734 = vmatpush1.bf16.msra.mxu0 0
  %735 = vmatprep.subr.bf16.mxu0 0
  %736 = vmatpush1.bf16.msra.mxu0 0
  %737 = vmatprep.subr.bf16.mxu0 0
  %738 = vmatpush1.bf16.msra.mxu0 0
  %739 = vmatprep.subr.bf16.mxu0 0
  %740 = vmatpush1.bf16.msra.mxu0 0
  %741 = vmatprep.subr.bf16.mxu0 0
  %742 = vmatpush1.bf16.msra.mxu0 0
  %743 = vmatprep.subr.bf16.mxu0 0
  %744 = vmatpush1.bf16.msra.mxu0 0
  %745 = vmatprep.subr.bf16.mxu0 0
  %746 = vmatpush1.bf16.msra.mxu0 0
  %747 = vmatprep.mubr.bf16.mxu0 0
  %748 = vmatmul.mubr.bf16.gmra.mrb[0].mxu0 %v673
  %v749 = vpop.f32.mrb[0].mxu0
  %v750 = vadd.f32 0.0, %v749
  %v751 = vpop.f32.mrb[0].mxu0
  %v752 = vpop.f32.mrb[0].mxu0
  %v753 = vpop.f32.mrb[0].mxu0
  %754 = vdwg.mxu0
  %v755 = vadd.f32 %v670, %v709
  %v756 = vxor.u32 %v755, 2147483648
  %v757 = vmul.f32 %v756, 1.442695
  %v758 = vpow.pop %v757
  %v759 = vadd.f32 %v758, 1.0
  %v760 = vrcp.pop %v759
  %v761 = vmul.f32 1.0, %v760
  %v762 = vadd.f32 %v671, %v711
  %v763 = vxor.u32 %v762, 2147483648
  %v764 = vmul.f32 %v763, 1.442695
  %v765 = vpow.pop %v764
  %v766 = vadd.f32 %v765, 1.0
  %v767 = vrcp.pop %v766
  %v768 = vmul.f32 1.0, %v767
  %v769 = vadd.f32 %v750, %v64
  %v770 = vmul.f32 %v761, %v769
  %v771 = vadd.f32 %v672, %v770
  %v772 = vtanh.pop %v771
  %v773 = vsub.f32 %v668, %v772
  %v774 = vmul.f32 %v768, %v773
  %v775 = vadd.f32 %v772, %v774
  %s776 = scalar_lea.vmem %s1, 32
  %v777 = vld [vmem:[%s776] sm:$0xff]
  %v778 = vsub.f32 %v775, %v668
  %780 = vset.pattern.permute.xlu0 0
  %781 = vperm.xlu0 %780, %v777
  %v782 = vpop.permute.xlu0 %781
  %v784 = vmul.f32 %v782, %v778
  %v785 = vadd.f32 %v668, %v784
  %786 = vst [vmem:[#allocation2] sm:$0xff] %v785
  %v787 = vld [vmem:[#allocation2] sm:$0xff]
  %s788 = scalar_lea.vmem %s0, 120
  %v789 = vld [vmem:[%s788] sm:$0xff]
  %v790 = vld [vmem:[%s788 + $0x8] sm:$0xff]
  %v791 = vld [vmem:[%s788 + $0x10] sm:$0xff]
  %v792 = vpack.c.bf16 %v787, %v787
  %793 = vmatprep.subr.bf16.mxu0 %v152
  %794 = vmatpush1.bf16.msra.mxu0 %v151
  %795 = vmatprep.subr.bf16.mxu0 %v155
  %796 = vmatpush1.bf16.msra.mxu0 %v154
  %797 = vmatprep.subr.bf16.mxu0 %v158
  %798 = vmatpush1.bf16.msra.mxu0 %v157
  %799 = vmatprep.subr.bf16.mxu0 %v161
  %800 = vmatpush1.bf16.msra.mxu0 %v160
  %801 = vmatprep.subr.bf16.mxu0 %v164
  %802 = vmatpush1.bf16.msra.mxu0 %v163
  %803 = vmatprep.subr.bf16.mxu0 %v167
  %804 = vmatpush1.bf16.msra.mxu0 %v166
  %805 = vmatprep.subr.bf16.mxu0 %v170
  %806 = vmatpush1.bf16.msra.mxu0 %v169
  %807 = vmatprep.subr.bf16.mxu0 %v173
  %808 = vmatpush1.bf16.msra.mxu0 %v172
  %809 = vmatprep.subr.bf16.mxu0 0
  %810 = vmatpush1.bf16.msra.mxu0 0
  %811 = vmatprep.subr.bf16.mxu0 0
  %812 = vmatpush1.bf16.msra.mxu0 0
  %813 = vmatprep.subr.bf16.mxu0 0
  %814 = vmatpush1.bf16.msra.mxu0 0
  %815 = vmatprep.subr.bf16.mxu0 0
  %816 = vmatpush1.bf16.msra.mxu0 0
  %817 = vmatprep.subr.bf16.mxu0 0
  %818 = vmatpush1.bf16.msra.mxu0 0
  %819 = vmatprep.subr.bf16.mxu0 0
  %820 = vmatpush1.bf16.msra.mxu0 0
  %821 = vmatprep.subr.bf16.mxu0 0
  %822 = vmatpush1.bf16.msra.mxu0 0
  %823 = vmatprep.subr.bf16.mxu0 0
  %824 = vmatpush1.bf16.msra.mxu0 0
  %825 = vmatprep.mubr.bf16.mxu0 0
  %826 = vmatmul.mubr.bf16.gmra.mrb[0].mxu0 %v792
  %v827 = vpop.f32.mrb[0].mxu0
  %v828 = vadd.f32 0.0, %v827
  %v829 = vpop.f32.mrb[0].mxu0
  %v830 = vadd.f32 0.0, %v829
  %v831 = vpop.f32.mrb[0].mxu0
  %v832 = vpop.f32.mrb[0].mxu0
  %833 = vdwg.mxu0
  %834 = vmatprep.subr.bf16.mxu0 0
  %835 = vmatpush1.bf16.msra.mxu0 %v153
  %836 = vmatprep.subr.bf16.mxu0 0
  %837 = vmatpush1.bf16.msra.mxu0 %v156
  %838 = vmatprep.subr.bf16.mxu0 0
  %839 = vmatpush1.bf16.msra.mxu0 %v159
  %840 = vmatprep.subr.bf16.mxu0 0
  %841 = vmatpush1.bf16.msra.mxu0 %v162
  %842 = vmatprep.subr.bf16.mxu0 0
  %843 = vmatpush1.bf16.msra.mxu0 %v165
  %844 = vmatprep.subr.bf16.mxu0 0
  %845 = vmatpush1.bf16.msra.mxu0 %v168
  %846 = vmatprep.subr.bf16.mxu0 0
  %847 = vmatpush1.bf16.msra.mxu0 %v171
  %848 = vmatprep.subr.bf16.mxu0 0
  %849 = vmatpush1.bf16.msra.mxu0 %v174
  %850 = vmatprep.subr.bf16.mxu0 0
  %851 = vmatpush1.bf16.msra.mxu0 0
  %852 = vmatprep.subr.bf16.mxu0 0
  %853 = vmatpush1.bf16.msra.mxu0 0
  %854 = vmatprep.subr.bf16.mxu0 0
  %855 = vmatpush1.bf16.msra.mxu0 0
  %856 = vmatprep.subr.bf16.mxu0 0
  %857 = vmatpush1.bf16.msra.mxu0 0
  %858 = vmatprep.subr.bf16.mxu0 0
  %859 = vmatpush1.bf16.msra.mxu0 0
  %860 = vmatprep.subr.bf16.mxu0 0
  %861 = vmatpush1.bf16.msra.mxu0 0
  %862 = vmatprep.subr.bf16.mxu0 0
  %863 = vmatpush1.bf16.msra.mxu0 0
  %864 = vmatprep.subr.bf16.mxu0 0
  %865 = vmatpush1.bf16.msra.mxu0 0
  %866 = vmatprep.mubr.bf16.mxu0 0
  %867 = vmatmul.mubr.bf16.gmra.mrb[0].mxu0 %v792
  %v868 = vpop.f32.mrb[0].mxu0
  %v869 = vadd.f32 0.0, %v868
  %v870 = vpop.f32.mrb[0].mxu0
  %v871 = vpop.f32.mrb[0].mxu0
  %v872 = vpop.f32.mrb[0].mxu0
  %873 = vdwg.mxu0
  %v874 = vadd.f32 %v789, %v828
  %v875 = vxor.u32 %v874, 2147483648
  %v876 = vmul.f32 %v875, 1.442695
  %v877 = vpow.pop %v876
  %v878 = vadd.f32 %v877, 1.0
  %v879 = vrcp.pop %v878
  %v880 = vmul.f32 1.0, %v879
  %v881 = vadd.f32 %v790, %v830
  %v882 = vxor.u32 %v881, 2147483648
  %v883 = vmul.f32 %v882, 1.442695
  %v884 = vpow.pop %v883
  %v885 = vadd.f32 %v884, 1.0
  %v886 = vrcp.pop %v885
  %v887 = vmul.f32 1.0, %v886
  %v888 = vadd.f32 %v869, %v64
  %v889 = vmul.f32 %v880, %v888
  %v890 = vadd.f32 %v791, %v889
  %v891 = vtanh.pop %v890
  %v892 = vsub.f32 %v787, %v891
  %v893 = vmul.f32 %v887, %v892
  %v894 = vadd.f32 %v891, %v893
  %s895 = scalar_lea.vmem %s1, 40
  %v896 = vld [vmem:[%s895] sm:$0xff]
  %v897 = vsub.f32 %v894, %v787
  %899 = vset.pattern.permute.xlu0 0
  %900 = vperm.xlu0 %899, %v896
  %v901 = vpop.permute.xlu0 %900
  %v903 = vmul.f32 %v901, %v897
  %v904 = vadd.f32 %v787, %v903
  %905 = vst [vmem:[#allocation2] sm:$0xff] %v904
  %v906 = vld [vmem:[#allocation2] sm:$0xff]
  %s907 = scalar_lea.vmem %s0, 144
  %v908 = vld [vmem:[%s907] sm:$0xff]
  %v909 = vld [vmem:[%s907 + $0x8] sm:$0xff]
  %v910 = vld [vmem:[%s907 + $0x10] sm:$0xff]
  %v911 = vpack.c.bf16 %v906, %v906
  %912 = vmatprep.subr.bf16.mxu0 %v152
  %913 = vmatpush1.bf16.msra.mxu0 %v151
  %914 = vmatprep.subr.bf16.mxu0 %v155
  %915 = vmatpush1.bf16.msra.mxu0 %v154
  %916 = vmatprep.subr.bf16.mxu0 %v158
  %917 = vmatpush1.bf16.msra.mxu0 %v157
  %918 = vmatprep.subr.bf16.mxu0 %v161
  %919 = vmatpush1.bf16.msra.mxu0 %v160
  %920 = vmatprep.subr.bf16.mxu0 %v164
  %921 = vmatpush1.bf16.msra.mxu0 %v163
  %922 = vmatprep.subr.bf16.mxu0 %v167
  %923 = vmatpush1.bf16.msra.mxu0 %v166
  %924 = vmatprep.subr.bf16.mxu0 %v170
  %925 = vmatpush1.bf16.msra.mxu0 %v169
  %926 = vmatprep.subr.bf16.mxu0 %v173
  %927 = vmatpush1.bf16.msra.mxu0 %v172
  %928 = vmatprep.subr.bf16.mxu0 0
  %929 = vmatpush1.bf16.msra.mxu0 0
  %930 = vmatprep.subr.bf16.mxu0 0
  %931 = vmatpush1.bf16.msra.mxu0 0
  %932 = vmatprep.subr.bf16.mxu0 0
  %933 = vmatpush1.bf16.msra.mxu0 0
  %934 = vmatprep.subr.bf16.mxu0 0
  %935 = vmatpush1.bf16.msra.mxu0 0
  %936 = vmatprep.subr.bf16.mxu0 0
  %937 = vmatpush1.bf16.msra.mxu0 0
  %938 = vmatprep.subr.bf16.mxu0 0
  %939 = vmatpush1.bf16.msra.mxu0 0
  %940 = vmatprep.subr.bf16.mxu0 0
  %941 = vmatpush1.bf16.msra.mxu0 0
  %942 = vmatprep.subr.bf16.mxu0 0
  %943 = vmatpush1.bf16.msra.mxu0 0
  %944 = vmatprep.mubr.bf16.mxu0 0
  %945 = vmatmul.mubr.bf16.gmra.mrb[0].mxu0 %v911
  %v946 = vpop.f32.mrb[0].mxu0
  %v947 = vadd.f32 0.0, %v946
  %v948 = vpop.f32.mrb[0].mxu0
  %v949 = vadd.f32 0.0, %v948
  %v950 = vpop.f32.mrb[0].mxu0
  %v951 = vpop.f32.mrb[0].mxu0
  %952 = vdwg.mxu0
  %953 = vmatprep.subr.bf16.mxu0 0
  %954 = vmatpush1.bf16.msra.mxu0 %v153
  %955 = vmatprep.subr.bf16.mxu0 0
  %956 = vmatpush1.bf16.msra.mxu0 %v156
  %957 = vmatprep.subr.bf16.mxu0 0
  %958 = vmatpush1.bf16.msra.mxu0 %v159
  %959 = vmatprep.subr.bf16.mxu0 0
  %960 = vmatpush1.bf16.msra.mxu0 %v162
  %961 = vmatprep.subr.bf16.mxu0 0
  %962 = vmatpush1.bf16.msra.mxu0 %v165
  %963 = vmatprep.subr.bf16.mxu0 0
  %964 = vmatpush1.bf16.msra.mxu0 %v168
  %965 = vmatprep.subr.bf16.mxu0 0
  %966 = vmatpush1.bf16.msra.mxu0 %v171
  %967 = vmatprep.subr.bf16.mxu0 0
  %968 = vmatpush1.bf16.msra.mxu0 %v174
  %969 = vmatprep.subr.bf16.mxu0 0
  %970 = vmatpush1.bf16.msra.mxu0 0
  %971 = vmatprep.subr.bf16.mxu0 0
  %972 = vmatpush1.bf16.msra.mxu0 0
  %973 = vmatprep.subr.bf16.mxu0 0
  %974 = vmatpush1.bf16.msra.mxu0 0
  %975 = vmatprep.subr.bf16.mxu0 0
  %976 = vmatpush1.bf16.msra.mxu0 0
  %977 = vmatprep.subr.bf16.mxu0 0
  %978 = vmatpush1.bf16.msra.mxu0 0
  %979 = vmatprep.subr.bf16.mxu0 0
  %980 = vmatpush1.bf16.msra.mxu0 0
  %981 = vmatprep.subr.bf16.mxu0 0
  %982 = vmatpush1.bf16.msra.mxu0 0
  %983 = vmatprep.subr.bf16.mxu0 0
  %984 = vmatpush1.bf16.msra.mxu0 0
  %985 = vmatprep.mubr.bf16.mxu0 0
  %986 = vmatmul.mubr.bf16.gmra.mrb[0].mxu0 %v911
  %v987 = vpop.f32.mrb[0].mxu0
  %v988 = vadd.f32 0.0, %v987
  %v989 = vpop.f32.mrb[0].mxu0
  %v990 = vpop.f32.mrb[0].mxu0
  %v991 = vpop.f32.mrb[0].mxu0
  %992 = vdwg.mxu0
  %v993 = vadd.f32 %v908, %v947
  %v994 = vxor.u32 %v993, 2147483648
  %v995 = vmul.f32 %v994, 1.442695
  %v996 = vpow.pop %v995
  %v997 = vadd.f32 %v996, 1.0
  %v998 = vrcp.pop %v997
  %v999 = vmul.f32 1.0, %v998
  %v1000 = vadd.f32 %v909, %v949
  %v1001 = vxor.u32 %v1000, 2147483648
  %v1002 = vmul.f32 %v1001, 1.442695
  %v1003 = vpow.pop %v1002
  %v1004 = vadd.f32 %v1003, 1.0
  %v1005 = vrcp.pop %v1004
  %v1006 = vmul.f32 1.0, %v1005
  %v1007 = vadd.f32 %v988, %v64
  %v1008 = vmul.f32 %v999, %v1007
  %v1009 = vadd.f32 %v910, %v1008
  %v1010 = vtanh.pop %v1009
  %v1011 = vsub.f32 %v906, %v1010
  %v1012 = vmul.f32 %v1006, %v1011
  %v1013 = vadd.f32 %v1010, %v1012
  %s1014 = scalar_lea.vmem %s1, 48
  %v1015 = vld [vmem:[%s1014] sm:$0xff]
  %v1016 = vsub.f32 %v1013, %v906
  %1018 = vset.pattern.permute.xlu0 0
  %1019 = vperm.xlu0 %1018, %v1015
  %v1020 = vpop.permute.xlu0 %1019
  %v1022 = vmul.f32 %v1020, %v1016
  %v1023 = vadd.f32 %v906, %v1022
  %1024 = vst [vmem:[#allocation2] sm:$0xff] %v1023
  %v1025 = vld [vmem:[#allocation2] sm:$0xff]
  %s1026 = scalar_lea.vmem %s0, 168
  %v1027 = vld [vmem:[%s1026] sm:$0xff]
  %v1028 = vld [vmem:[%s1026 + $0x8] sm:$0xff]
  %v1029 = vld [vmem:[%s1026 + $0x10] sm:$0xff]
  %v1030 = vpack.c.bf16 %v1025, %v1025
  %1031 = vmatprep.subr.bf16.mxu0 %v152
  %1032 = vmatpush1.bf16.msra.mxu0 %v151
  %1033 = vmatprep.subr.bf16.mxu0 %v155
  %1034 = vmatpush1.bf16.msra.mxu0 %v154
  %1035 = vmatprep.subr.bf16.mxu0 %v158
  %1036 = vmatpush1.bf16.msra.mxu0 %v157
  %1037 = vmatprep.subr.bf16.mxu0 %v161
  %1038 = vmatpush1.bf16.msra.mxu0 %v160
  %1039 = vmatprep.subr.bf16.mxu0 %v164
  %1040 = vmatpush1.bf16.msra.mxu0 %v163
  %1041 = vmatprep.subr.bf16.mxu0 %v167
  %1042 = vmatpush1.bf16.msra.mxu0 %v166
  %1043 = vmatprep.subr.bf16.mxu0 %v170
  %1044 = vmatpush1.bf16.msra.mxu0 %v169
  %1045 = vmatprep.subr.bf16.mxu0 %v173
  %1046 = vmatpush1.bf16.msra.mxu0 %v172
  %1047 = vmatprep.subr.bf16.mxu0 0
  %1048 = vmatpush1.bf16.msra.mxu0 0
  %1049 = vmatprep.subr.bf16.mxu0 0
  %1050 = vmatpush1.bf16.msra.mxu0 0
  %1051 = vmatprep.subr.bf16.mxu0 0
  %1052 = vmatpush1.bf16.msra.mxu0 0
  %1053 = vmatprep.subr.bf16.mxu0 0
  %1054 = vmatpush1.bf16.msra.mxu0 0
  %1055 = vmatprep.subr.bf16.mxu0 0
  %1056 = vmatpush1.bf16.msra.mxu0 0
  %1057 = vmatprep.subr.bf16.mxu0 0
  %1058 = vmatpush1.bf16.msra.mxu0 0
  %1059 = vmatprep.subr.bf16.mxu0 0
  %1060 = vmatpush1.bf16.msra.mxu0 0
  %1061 = vmatprep.subr.bf16.mxu0 0
  %1062 = vmatpush1.bf16.msra.mxu0 0
  %1063 = vmatprep.mubr.bf16.mxu0 0
  %1064 = vmatmul.mubr.bf16.gmra.mrb[0].mxu0 %v1030
  %v1065 = vpop.f32.mrb[0].mxu0
  %v1066 = vadd.f32 0.0, %v1065
  %v1067 = vpop.f32.mrb[0].mxu0
  %v1068 = vadd.f32 0.0, %v1067
  %v1069 = vpop.f32.mrb[0].mxu0
  %v1070 = vpop.f32.mrb[0].mxu0
  %1071 = vdwg.mxu0
  %1072 = vmatprep.subr.bf16.mxu0 0
  %1073 = vmatpush1.bf16.msra.mxu0 %v153
  %1074 = vmatprep.subr.bf16.mxu0 0
  %1075 = vmatpush1.bf16.msra.mxu0 %v156
  %1076 = vmatprep.subr.bf16.mxu0 0
  %1077 = vmatpush1.bf16.msra.mxu0 %v159
  %1078 = vmatprep.subr.bf16.mxu0 0
  %1079 = vmatpush1.bf16.msra.mxu0 %v162
  %1080 = vmatprep.subr.bf16.mxu0 0
  %1081 = vmatpush1.bf16.msra.mxu0 %v165
  %1082 = vmatprep.subr.bf16.mxu0 0
  %1083 = vmatpush1.bf16.msra.mxu0 %v168
  %1084 = vmatprep.subr.bf16.mxu0 0
  %1085 = vmatpush1.bf16.msra.mxu0 %v171
  %1086 = vmatprep.subr.bf16.mxu0 0
  %1087 = vmatpush1.bf16.msra.mxu0 %v174
  %1088 = vmatprep.subr.bf16.mxu0 0
  %1089 = vmatpush1.bf16.msra.mxu0 0
  %1090 = vmatprep.subr.bf16.mxu0 0
  %1091 = vmatpush1.bf16.msra.mxu0 0
  %1092 = vmatprep.subr.bf16.mxu0 0
  %1093 = vmatpush1.bf16.msra.mxu0 0
  %1094 = vmatprep.subr.bf16.mxu0 0
  %1095 = vmatpush1.bf16.msra.mxu0 0
  %1096 = vmatprep.subr.bf16.mxu0 0
  %1097 = vmatpush1.bf16.msra.mxu0 0
  %1098 = vmatprep.subr.bf16.mxu0 0
  %1099 = vmatpush1.bf16.msra.mxu0 0
  %1100 = vmatprep.subr.bf16.mxu0 0
  %1101 = vmatpush1.bf16.msra.mxu0 0
  %1102 = vmatprep.subr.bf16.mxu0 0
  %1103 = vmatpush1.bf16.msra.mxu0 0
  %1104 = vmatprep.mubr.bf16.mxu0 0
  %1105 = vmatmul.mubr.bf16.gmra.mrb[0].mxu0 %v1030
  %v1106 = vpop.f32.mrb[0].mxu0
  %v1107 = vadd.f32 0.0, %v1106
  %v1108 = vpop.f32.mrb[0].mxu0
  %v1109 = vpop.f32.mrb[0].mxu0
  %v1110 = vpop.f32.mrb[0].mxu0
  %1111 = vdwg.mxu0
  %v1112 = vadd.f32 %v1027, %v1066
  %v1113 = vxor.u32 %v1112, 2147483648
  %v1114 = vmul.f32 %v1113, 1.442695
  %v1115 = vpow.pop %v1114
  %v1116 = vadd.f32 %v1115, 1.0
  %v1117 = vrcp.pop %v1116
  %v1118 = vmul.f32 1.0, %v1117
  %v1119 = vadd.f32 %v1028, %v1068
  %v1120 = vxor.u32 %v1119, 2147483648
  %v1121 = vmul.f32 %v1120, 1.442695
  %v1122 = vpow.pop %v1121
  %v1123 = vadd.f32 %v1122, 1.0
  %v1124 = vrcp.pop %v1123
  %v1125 = vmul.f32 1.0, %v1124
  %v1126 = vadd.f32 %v1107, %v64
  %v1127 = vmul.f32 %v1118, %v1126
  %v1128 = vadd.f32 %v1029, %v1127
  %v1129 = vtanh.pop %v1128
  %v1130 = vsub.f32 %v1025, %v1129
  %v1131 = vmul.f32 %v1125, %v1130
  %v1132 = vadd.f32 %v1129, %v1131
  %s1133 = scalar_lea.vmem %s1, 56
  %v1134 = vld [vmem:[%s1133] sm:$0xff]
  %v1135 = vsub.f32 %v1132, %v1025
  %1137 = vset.pattern.permute.xlu0 0
  %1138 = vperm.xlu0 %1137, %v1134
  %v1139 = vpop.permute.xlu0 %1138
  %v1141 = vmul.f32 %v1139, %v1135
  %v1142 = vadd.f32 %v1025, %v1141
  %1143 = vst [vmem:[#allocation2] sm:$0xff] %v1142
  %v1144 = vld [vmem:[#allocation2] sm:$0xff]
  %1145 = vst [vmem:[%s5] sm:$0xff] %v1144
  // Predicated region
  $region26: #{gru_with_padding.7} parent=0 // pred_check
    _
  $region27: #{gru_with_padding.7} parent=0 // pred_check_branch
    %1147 = sbr.rel (0) target = $region29
  $region28: #{gru_with_padding.7} parent=0 // pred_region
    _
  $region29: #{gru_with_padding.7} parent=0 // pred_fallthru
    _
  // Predicated region
  $region30: #{gru_with_padding.7} parent=0 // pred_check
    _
  $region31: #{gru_with_padding.7} parent=0 // pred_check_branch
    %1149 = sbr.rel (0) target = $region33
  $region32: #{gru_with_padding.7} parent=0 // pred_region
    _
  $region33: #{gru_with_padding.7} parent=0 // pred_fallthru
    _

// kernel: gru_with_padding.5
$region0: #{gru_with_padding.5}
  #allocation0 [shape = 'u32[]', space=smem, size = 0x4, offset = 0x4, fixed_abs, tag = 'smem constant byte address 0x4 - core index']
  #allocation1 [shape = 'u32[144,128]{1,0:T(1,128)}', space=vmem, size = 0x12000, scoped, tag = 'internal scratch']
  #allocation2 [shape = 'f32[8,128]{1,0:T(8,128)}', space=vmem, size = 0x1000, scoped, tag = 'scratch operand']
  %s0 = inlined_call_operand.vmem [shape: f32[8,8,384], index: 0, kind: input, shape index: {}]
  %s1 = inlined_call_operand.vmem [shape: f32[8,8,1], index: 1, kind: input, shape index: {}]
  %s2 = inlined_call_operand.vmem [shape: f32[8,128], index: 2, kind: input, shape index: {}]
  %s3 = inlined_call_operand.vmem [shape: bf16[128,384], index: 3, kind: input, shape index: {}]
  %s4 = inlined_call_operand.vmem [shape: f32[1,128], index: 4, kind: input, shape index: {}]
  %s5 = inlined_call_operand.vmem [shape: bf16[8,8,128], index: 5, kind: output, shape index: {}]
  %s6 = sld [smem:[#allocation0]]
  $region34: #{gru_with_padding.5} parent=0
    _
  %s8 = ssub.s32 1, %s6
  %s9 = scalar_select 0, %s8, %s6
  // Predicated region
  $region2: #{gru_with_padding.5} parent=0 // pred_check
    _
  $region3: #{gru_with_padding.5} parent=0 // pred_check_branch
    %11 = sbr.rel (0) target = $region5
  $region4: #{gru_with_padding.5} parent=0 // pred_region
    _
  $region5: #{gru_with_padding.5} parent=0 // pred_fallthru
    _
  // Predicated region
  $region6: #{gru_with_padding.5} parent=0 // pred_check
    _
  $region7: #{gru_with_padding.5} parent=0 // pred_check_branch
    %13 = sbr.rel (0) target = $region9
  $region8: #{gru_with_padding.5} parent=0 // pred_region
    _
  $region9: #{gru_with_padding.5} parent=0 // pred_fallthru
    _
  // Predicated region
  $region10: #{gru_with_padding.5} parent=0 // pred_check
    _
  $region11: #{gru_with_padding.5} parent=0 // pred_check_branch
    %15 = sbr.rel (0) target = $region13
  $region12: #{gru_with_padding.5} parent=0 // pred_region
    _
  $region13: #{gru_with_padding.5} parent=0 // pred_fallthru
    _
  // Predicated region
  $region14: #{gru_with_padding.5} parent=0 // pred_check
    _
  $region15: #{gru_with_padding.5} parent=0 // pred_check_branch
    %17 = sbr.rel (0) target = $region17
  $region16: #{gru_with_padding.5} parent=0 // pred_region
    _
  $region17: #{gru_with_padding.5} parent=0 // pred_fallthru
    _
  // Predicated region
  $region18: #{gru_with_padding.5} parent=0 // pred_check
    _
  $region19: #{gru_with_padding.5} parent=0 // pred_check_branch
    %19 = sbr.rel (0) target = $region21
  $region20: #{gru_with_padding.5} parent=0 // pred_region
    _
  $region21: #{gru_with_padding.5} parent=0 // pred_fallthru
    _
  %p21 = scmp.eq.s32.totalorder 0, 0
  // Predicated region
  $region22: #{gru_with_padding.5} parent=0 // pred_check
    %p22 = pneg %p21
  $region23: #{gru_with_padding.5} parent=0 // pred_check_branch
    %24 = sbr.rel (%p22) target = $region25
  $region24: #{gru_with_padding.5} parent=0 // pred_region
    %v25 = vld [vmem:[%s2] sm:$0xff]
    %26 = vst [vmem:[#allocation2] sm:$0xff] %v25
  $region25: #{gru_with_padding.5} parent=0 // pred_fallthru
    _
  %v27 = vld [vmem:[%s3] sm:$0xff]
  %v28 = vld [vmem:[%s3 + $0x8] sm:$0xf]
  %v29 = vld [vmem:[%s3 + $0xc] sm:$0xff]
  %v30 = vld [vmem:[%s3 + $0x14] sm:$0xf]
  %v31 = vld [vmem:[%s3 + $0x18] sm:$0xff]
  %v32 = vld [vmem:[%s3 + $0x20] sm:$0xf]
  %v33 = vld [vmem:[%s3 + $0x24] sm:$0xff]
  %v34 = vld [vmem:[%s3 + $0x2c] sm:$0xf]
  %v35 = vld [vmem:[%s3 + $0x30] sm:$0xff]
  %v36 = vld [vmem:[%s3 + $0x38] sm:$0xf]
  %v37 = vld [vmem:[%s3 + $0x3c] sm:$0xff]
  %v38 = vld [vmem:[%s3 + $0x44] sm:$0xf]
  %v39 = vld [vmem:[%s3 + $0x48] sm:$0xff]
  %v40 = vld [vmem:[%s3 + $0x50] sm:$0xf]
  %v41 = vld [vmem:[%s3 + $0x54] sm:$0xff]
  %v42 = vld [vmem:[%s3 + $0x5c] sm:$0xf]
  %v43 = vld [vmem:[%s3 + $0x60] sm:$0xff]
  %v44 = vld [vmem:[%s3 + $0x68] sm:$0xf]
  %v45 = vld [vmem:[%s3 + $0x6c] sm:$0xff]
  %v46 = vld [vmem:[%s3 + $0x74] sm:$0xf]
  %v47 = vld [vmem:[%s3 + $0x78] sm:$0xff]
  %v48 = vld [vmem:[%s3 + $0x80] sm:$0xf]
  %v49 = vld [vmem:[%s3 + $0x84] sm:$0xff]
  %v50 = vld [vmem:[%s3 + $0x8c] sm:$0xf]
  %v51 = vld [vmem:[%s3 + $0x90] sm:$0xff]
  %v52 = vld [vmem:[%s3 + $0x98] sm:$0xf]
  %v53 = vld [vmem:[%s3 + $0x9c] sm:$0xff]
  %v54 = vld [vmem:[%s3 + $0xa4] sm:$0xf]
  %v55 = vld [vmem:[%s3 + $0xa8] sm:$0xff]
  %v56 = vld [vmem:[%s3 + $0xb0] sm:$0xf]
  %v57 = vld [vmem:[%s3 + $0xb4] sm:$0xff]
  %v58 = vld [vmem:[%s3 + $0xbc] sm:$0xf]
  %v59 = vld [vmem:[%s4] sm:$0x1]
  %v61 = vlaneseq
  %v62 = vshrl.u32 %v61, 7
  %v63 = vsub.s32 0, %v62
  %v64 = vrot.slane %v59, %v63
  %v66 = vld [vmem:[#allocation2] sm:$0xff]
  %v67 = vld [vmem:[%s0] sm:$0xff]
  %v68 = vld [vmem:[%s0 + $0x8] sm:$0xff]
  %v69 = vld [vmem:[%s0 + $0x10] sm:$0xff]
  %v70 = vpack.c.bf16 %v66, %v66
  %v103 = vunpack.c.l.b16 %v27
  %v104 = vunpack.c.h.b16 %v27
  %v105 = vunpack.c.l.b16 %v28
  %v106 = vunpack.c.l.b16 %v29
  %v107 = vunpack.c.h.b16 %v29
  %v108 = vunpack.c.l.b16 %v30
  %v109 = vunpack.c.l.b16 %v31
  %v110 = vunpack.c.h.b16 %v31
  %v111 = vunpack.c.l.b16 %v32
  %v112 = vunpack.c.l.b16 %v33
  %v113 = vunpack.c.h.b16 %v33
  %v114 = vunpack.c.l.b16 %v34
  %v115 = vunpack.c.l.b16 %v35
  %v116 = vunpack.c.h.b16 %v35
  %v117 = vunpack.c.l.b16 %v36
  %v118 = vunpack.c.l.b16 %v37
  %v119 = vunpack.c.h.b16 %v37
  %v120 = vunpack.c.l.b16 %v38
  %v121 = vunpack.c.l.b16 %v39
  %v122 = vunpack.c.h.b16 %v39
  %v123 = vunpack.c.l.b16 %v40
  %v124 = vunpack.c.l.b16 %v41
  %v125 = vunpack.c.h.b16 %v41
  %v126 = vunpack.c.l.b16 %v42
  %v127 = vunpack.c.l.b16 %v43
  %v128 = vunpack.c.h.b16 %v43
  %v129 = vunpack.c.l.b16 %v44
  %v130 = vunpack.c.l.b16 %v45
  %v131 = vunpack.c.h.b16 %v45
  %v132 = vunpack.c.l.b16 %v46
  %v133 = vunpack.c.l.b16 %v47
  %v134 = vunpack.c.h.b16 %v47
  %v135 = vunpack.c.l.b16 %v48
  %v136 = vunpack.c.l.b16 %v49
  %v137 = vunpack.c.h.b16 %v49
  %v138 = vunpack.c.l.b16 %v50
  %v139 = vunpack.c.l.b16 %v51
  %v140 = vunpack.c.h.b16 %v51
  %v141 = vunpack.c.l.b16 %v52
  %v142 = vunpack.c.l.b16 %v53
  %v143 = vunpack.c.h.b16 %v53
  %v144 = vunpack.c.l.b16 %v54
  %v145 = vunpack.c.l.b16 %v55
  %v146 = vunpack.c.h.b16 %v55
  %v147 = vunpack.c.l.b16 %v56
  %v148 = vunpack.c.l.b16 %v57
  %v149 = vunpack.c.h.b16 %v57
  %v150 = vunpack.c.l.b16 %v58
  %v151 = vpack.c.b16 %v106, %v103
  %v152 = vpack.c.b16 %v107, %v104
  %v153 = vpack.c.b16 %v108, %v105
  %v154 = vpack.c.b16 %v112, %v109
  %v155 = vpack.c.b16 %v113, %v110
  %v156 = vpack.c.b16 %v114, %v111
  %v157 = vpack.c.b16 %v118, %v115
  %v158 = vpack.c.b16 %v119, %v116
  %v159 = vpack.c.b16 %v120, %v117
  %v160 = vpack.c.b16 %v124, %v121
  %v161 = vpack.c.b16 %v125, %v122
  %v162 = vpack.c.b16 %v126, %v123
  %v163 = vpack.c.b16 %v130, %v127
  %v164 = vpack.c.b16 %v131, %v128
  %v165 = vpack.c.b16 %v132, %v129
  %v166 = vpack.c.b16 %v136, %v133
  %v167 = vpack.c.b16 %v137, %v134
  %v168 = vpack.c.b16 %v138, %v135
  %v169 = vpack.c.b16 %v142, %v139
  %v170 = vpack.c.b16 %v143, %v140
  %v171 = vpack.c.b16 %v144, %v141
  %v172 = vpack.c.b16 %v148, %v145
  %v173 = vpack.c.b16 %v149, %v146
  %v174 = vpack.c.b16 %v150, %v147
  %199 = vmatprep.subr.bf16.mxu0 %v152
  %200 = vmatpush1.bf16.msra.mxu0 %v151
  %201 = vmatprep.subr.bf16.mxu0 %v155
  %202 = vmatpush1.bf16.msra.mxu0 %v154
  %203 = vmatprep.subr.bf16.mxu0 %v158
  %204 = vmatpush1.bf16.msra.mxu0 %v157
  %205 = vmatprep.subr.bf16.mxu0 %v161
  %206 = vmatpush1.bf16.msra.mxu0 %v160
  %207 = vmatprep.subr.bf16.mxu0 %v164
  %208 = vmatpush1.bf16.msra.mxu0 %v163
  %209 = vmatprep.subr.bf16.mxu0 %v167
  %210 = vmatpush1.bf16.msra.mxu0 %v166
  %211 = vmatprep.subr.bf16.mxu0 %v170
  %212 = vmatpush1.bf16.msra.mxu0 %v169
  %213 = vmatprep.subr.bf16.mxu0 %v173
  %214 = vmatpush1.bf16.msra.mxu0 %v172
  %215 = vmatprep.subr.bf16.mxu0 0
  %216 = vmatpush1.bf16.msra.mxu0 0
  %217 = vmatprep.subr.bf16.mxu0 0
  %218 = vmatpush1.bf16.msra.mxu0 0
  %219 = vmatprep.subr.bf16.mxu0 0
  %220 = vmatpush1.bf16.msra.mxu0 0
  %221 = vmatprep.subr.bf16.mxu0 0
  %222 = vmatpush1.bf16.msra.mxu0 0
  %223 = vmatprep.subr.bf16.mxu0 0
  %224 = vmatpush1.bf16.msra.mxu0 0
  %225 = vmatprep.subr.bf16.mxu0 0
  %226 = vmatpush1.bf16.msra.mxu0 0
  %227 = vmatprep.subr.bf16.mxu0 0
  %228 = vmatpush1.bf16.msra.mxu0 0
  %229 = vmatprep.subr.bf16.mxu0 0
  %230 = vmatpush1.bf16.msra.mxu0 0
  %231 = vmatprep.mubr.bf16.mxu0 0
  %232 = vmatmul.mubr.bf16.gmra.mrb[0].mxu0 %v70
  %v233 = vpop.f32.mrb[0].mxu0
  %v234 = vadd.f32 0.0, %v233
  %v235 = vpop.f32.mrb[0].mxu0
  %v236 = vadd.f32 0.0, %v235
  %v237 = vpop.f32.mrb[0].mxu0
  %v238 = vpop.f32.mrb[0].mxu0
  %239 = vdwg.mxu0
  %240 = vmatprep.subr.bf16.mxu0 0
  %241 = vmatpush1.bf16.msra.mxu0 %v153
  %242 = vmatprep.subr.bf16.mxu0 0
  %243 = vmatpush1.bf16.msra.mxu0 %v156
  %244 = vmatprep.subr.bf16.mxu0 0
  %245 = vmatpush1.bf16.msra.mxu0 %v159
  %246 = vmatprep.subr.bf16.mxu0 0
  %247 = vmatpush1.bf16.msra.mxu0 %v162
  %248 = vmatprep.subr.bf16.mxu0 0
  %249 = vmatpush1.bf16.msra.mxu0 %v165
  %250 = vmatprep.subr.bf16.mxu0 0
  %251 = vmatpush1.bf16.msra.mxu0 %v168
  %252 = vmatprep.subr.bf16.mxu0 0
  %253 = vmatpush1.bf16.msra.mxu0 %v171
  %254 = vmatprep.subr.bf16.mxu0 0
  %255 = vmatpush1.bf16.msra.mxu0 %v174
  %256 = vmatprep.subr.bf16.mxu0 0
  %257 = vmatpush1.bf16.msra.mxu0 0
  %258 = vmatprep.subr.bf16.mxu0 0
  %259 = vmatpush1.bf16.msra.mxu0 0
  %260 = vmatprep.subr.bf16.mxu0 0
  %261 = vmatpush1.bf16.msra.mxu0 0
  %262 = vmatprep.subr.bf16.mxu0 0
  %263 = vmatpush1.bf16.msra.mxu0 0
  %264 = vmatprep.subr.bf16.mxu0 0
  %265 = vmatpush1.bf16.msra.mxu0 0
  %266 = vmatprep.subr.bf16.mxu0 0
  %267 = vmatpush1.bf16.msra.mxu0 0
  %268 = vmatprep.subr.bf16.mxu0 0
  %269 = vmatpush1.bf16.msra.mxu0 0
  %270 = vmatprep.subr.bf16.mxu0 0
  %271 = vmatpush1.bf16.msra.mxu0 0
  %272 = vmatprep.mubr.bf16.mxu0 0
  %273 = vmatmul.mubr.bf16.gmra.mrb[0].mxu0 %v70
  %v274 = vpop.f32.mrb[0].mxu0
  %v275 = vadd.f32 0.0, %v274
  %v276 = vpop.f32.mrb[0].mxu0
  %v277 = vpop.f32.mrb[0].mxu0
  %v278 = vpop.f32.mrb[0].mxu0
  %279 = vdwg.mxu0
  %v280 = vadd.f32 %v67, %v234
  %v281 = vxor.u32 %v280, 2147483648
  %v282 = vmul.f32 %v281, 1.442695
  %v283 = vpow.pop %v282
  %v284 = vadd.f32 %v283, 1.0
  %v285 = vrcp.pop %v284
  %v286 = vmul.f32 1.0, %v285
  %v287 = vadd.f32 %v68, %v236
  %v288 = vxor.u32 %v287, 2147483648
  %v289 = vmul.f32 %v288, 1.442695
  %v290 = vpow.pop %v289
  %v291 = vadd.f32 %v290, 1.0
  %v292 = vrcp.pop %v291
  %v293 = vmul.f32 1.0, %v292
  %v294 = vadd.f32 %v275, %v64
  %v295 = vmul.f32 %v286, %v294
  %v296 = vadd.f32 %v69, %v295
  %v297 = vtanh.pop %v296
  %v298 = vsub.f32 %v66, %v297
  %v299 = vmul.f32 %v293, %v298
  %v300 = vadd.f32 %v297, %v299
  %v301 = vld [vmem:[%s1] sm:$0xff]
  %v302 = vsub.f32 %v300, %v66
  %304 = vset.pattern.permute.xlu0 0
  %305 = vperm.xlu0 %304, %v301
  %v306 = vpop.permute.xlu0 %305
  %v308 = vmul.f32 %v306, %v302
  %v309 = vadd.f32 %v66, %v308
  %310 = vst [vmem:[#allocation2] sm:$0xff] %v309
  %v311 = vpack.c.bf16 %v309, %v309
  %312 = vst [vmem:[%s5] sm:$0xf] %v311
  %v313 = vld [vmem:[#allocation2] sm:$0xff]
  %s314 = scalar_lea.vmem %s0, 24
  %v315 = vld [vmem:[%s314] sm:$0xff]
  %v316 = vld [vmem:[%s314 + $0x8] sm:$0xff]
  %v317 = vld [vmem:[%s314 + $0x10] sm:$0xff]
  %v318 = vpack.c.bf16 %v313, %v313
  %319 = vmatprep.subr.bf16.mxu0 %v152
  %320 = vmatpush1.bf16.msra.mxu0 %v151
  %321 = vmatprep.subr.bf16.mxu0 %v155
  %322 = vmatpush1.bf16.msra.mxu0 %v154
  %323 = vmatprep.subr.bf16.mxu0 %v158
  %324 = vmatpush1.bf16.msra.mxu0 %v157
  %325 = vmatprep.subr.bf16.mxu0 %v161
  %326 = vmatpush1.bf16.msra.mxu0 %v160
  %327 = vmatprep.subr.bf16.mxu0 %v164
  %328 = vmatpush1.bf16.msra.mxu0 %v163
  %329 = vmatprep.subr.bf16.mxu0 %v167
  %330 = vmatpush1.bf16.msra.mxu0 %v166
  %331 = vmatprep.subr.bf16.mxu0 %v170
  %332 = vmatpush1.bf16.msra.mxu0 %v169
  %333 = vmatprep.subr.bf16.mxu0 %v173
  %334 = vmatpush1.bf16.msra.mxu0 %v172
  %335 = vmatprep.subr.bf16.mxu0 0
  %336 = vmatpush1.bf16.msra.mxu0 0
  %337 = vmatprep.subr.bf16.mxu0 0
  %338 = vmatpush1.bf16.msra.mxu0 0
  %339 = vmatprep.subr.bf16.mxu0 0
  %340 = vmatpush1.bf16.msra.mxu0 0
  %341 = vmatprep.subr.bf16.mxu0 0
  %342 = vmatpush1.bf16.msra.mxu0 0
  %343 = vmatprep.subr.bf16.mxu0 0
  %344 = vmatpush1.bf16.msra.mxu0 0
  %345 = vmatprep.subr.bf16.mxu0 0
  %346 = vmatpush1.bf16.msra.mxu0 0
  %347 = vmatprep.subr.bf16.mxu0 0
  %348 = vmatpush1.bf16.msra.mxu0 0
  %349 = vmatprep.subr.bf16.mxu0 0
  %350 = vmatpush1.bf16.msra.mxu0 0
  %351 = vmatprep.mubr.bf16.mxu0 0
  %352 = vmatmul.mubr.bf16.gmra.mrb[0].mxu0 %v318
  %v353 = vpop.f32.mrb[0].mxu0
  %v354 = vadd.f32 0.0, %v353
  %v355 = vpop.f32.mrb[0].mxu0
  %v356 = vadd.f32 0.0, %v355
  %v357 = vpop.f32.mrb[0].mxu0
  %v358 = vpop.f32.mrb[0].mxu0
  %359 = vdwg.mxu0
  %360 = vmatprep.subr.bf16.mxu0 0
  %361 = vmatpush1.bf16.msra.mxu0 %v153
  %362 = vmatprep.subr.bf16.mxu0 0
  %363 = vmatpush1.bf16.msra.mxu0 %v156
  %364 = vmatprep.subr.bf16.mxu0 0
  %365 = vmatpush1.bf16.msra.mxu0 %v159
  %366 = vmatprep.subr.bf16.mxu0 0
  %367 = vmatpush1.bf16.msra.mxu0 %v162
  %368 = vmatprep.subr.bf16.mxu0 0
  %369 = vmatpush1.bf16.msra.mxu0 %v165
  %370 = vmatprep.subr.bf16.mxu0 0
  %371 = vmatpush1.bf16.msra.mxu0 %v168
  %372 = vmatprep.subr.bf16.mxu0 0
  %373 = vmatpush1.bf16.msra.mxu0 %v171
  %374 = vmatprep.subr.bf16.mxu0 0
  %375 = vmatpush1.bf16.msra.mxu0 %v174
  %376 = vmatprep.subr.bf16.mxu0 0
  %377 = vmatpush1.bf16.msra.mxu0 0
  %378 = vmatprep.subr.bf16.mxu0 0
  %379 = vmatpush1.bf16.msra.mxu0 0
  %380 = vmatprep.subr.bf16.mxu0 0
  %381 = vmatpush1.bf16.msra.mxu0 0
  %382 = vmatprep.subr.bf16.mxu0 0
  %383 = vmatpush1.bf16.msra.mxu0 0
  %384 = vmatprep.subr.bf16.mxu0 0
  %385 = vmatpush1.bf16.msra.mxu0 0
  %386 = vmatprep.subr.bf16.mxu0 0
  %387 = vmatpush1.bf16.msra.mxu0 0
  %388 = vmatprep.subr.bf16.mxu0 0
  %389 = vmatpush1.bf16.msra.mxu0 0
  %390 = vmatprep.subr.bf16.mxu0 0
  %391 = vmatpush1.bf16.msra.mxu0 0
  %392 = vmatprep.mubr.bf16.mxu0 0
  %393 = vmatmul.mubr.bf16.gmra.mrb[0].mxu0 %v318
  %v394 = vpop.f32.mrb[0].mxu0
  %v395 = vadd.f32 0.0, %v394
  %v396 = vpop.f32.mrb[0].mxu0
  %v397 = vpop.f32.mrb[0].mxu0
  %v398 = vpop.f32.mrb[0].mxu0
  %399 = vdwg.mxu0
  %v400 = vadd.f32 %v315, %v354
  %v401 = vxor.u32 %v400, 2147483648
  %v402 = vmul.f32 %v401, 1.442695
  %v403 = vpow.pop %v402
  %v404 = vadd.f32 %v403, 1.0
  %v405 = vrcp.pop %v404
  %v406 = vmul.f32 1.0, %v405
  %v407 = vadd.f32 %v316, %v356
  %v408 = vxor.u32 %v407, 2147483648
  %v409 = vmul.f32 %v408, 1.442695
  %v410 = vpow.pop %v409
  %v411 = vadd.f32 %v410, 1.0
  %v412 = vrcp.pop %v411
  %v413 = vmul.f32 1.0, %v412
  %v414 = vadd.f32 %v395, %v64
  %v415 = vmul.f32 %v406, %v414
  %v416 = vadd.f32 %v317, %v415
  %v417 = vtanh.pop %v416
  %v418 = vsub.f32 %v313, %v417
  %v419 = vmul.f32 %v413, %v418
  %v420 = vadd.f32 %v417, %v419
  %s421 = scalar_lea.vmem %s1, 8
  %v422 = vld [vmem:[%s421] sm:$0xff]
  %v423 = vsub.f32 %v420, %v313
  %425 = vset.pattern.permute.xlu0 0
  %426 = vperm.xlu0 %425, %v422
  %v427 = vpop.permute.xlu0 %426
  %v429 = vmul.f32 %v427, %v423
  %v430 = vadd.f32 %v313, %v429
  %431 = vst [vmem:[#allocation2] sm:$0xff] %v430
  %v432 = vpack.c.bf16 %v430, %v430
  %s433 = scalar_lea.vmem %s5, 4
  %434 = vst [vmem:[%s433] sm:$0xf] %v432
  %v435 = vld [vmem:[#allocation2] sm:$0xff]
  %s436 = scalar_lea.vmem %s0, 48
  %v437 = vld [vmem:[%s436] sm:$0xff]
  %v438 = vld [vmem:[%s436 + $0x8] sm:$0xff]
  %v439 = vld [vmem:[%s436 + $0x10] sm:$0xff]
  %v440 = vpack.c.bf16 %v435, %v435
  %441 = vmatprep.subr.bf16.mxu0 %v152
  %442 = vmatpush1.bf16.msra.mxu0 %v151
  %443 = vmatprep.subr.bf16.mxu0 %v155
  %444 = vmatpush1.bf16.msra.mxu0 %v154
  %445 = vmatprep.subr.bf16.mxu0 %v158
  %446 = vmatpush1.bf16.msra.mxu0 %v157
  %447 = vmatprep.subr.bf16.mxu0 %v161
  %448 = vmatpush1.bf16.msra.mxu0 %v160
  %449 = vmatprep.subr.bf16.mxu0 %v164
  %450 = vmatpush1.bf16.msra.mxu0 %v163
  %451 = vmatprep.subr.bf16.mxu0 %v167
  %452 = vmatpush1.bf16.msra.mxu0 %v166
  %453 = vmatprep.subr.bf16.mxu0 %v170
  %454 = vmatpush1.bf16.msra.mxu0 %v169
  %455 = vmatprep.subr.bf16.mxu0 %v173
  %456 = vmatpush1.bf16.msra.mxu0 %v172
  %457 = vmatprep.subr.bf16.mxu0 0
  %458 = vmatpush1.bf16.msra.mxu0 0
  %459 = vmatprep.subr.bf16.mxu0 0
  %460 = vmatpush1.bf16.msra.mxu0 0
  %461 = vmatprep.subr.bf16.mxu0 0
  %462 = vmatpush1.bf16.msra.mxu0 0
  %463 = vmatprep.subr.bf16.mxu0 0
  %464 = vmatpush1.bf16.msra.mxu0 0
  %465 = vmatprep.subr.bf16.mxu0 0
  %466 = vmatpush1.bf16.msra.mxu0 0
  %467 = vmatprep.subr.bf16.mxu0 0
  %468 = vmatpush1.bf16.msra.mxu0 0
  %469 = vmatprep.subr.bf16.mxu0 0
  %470 = vmatpush1.bf16.msra.mxu0 0
  %471 = vmatprep.subr.bf16.mxu0 0
  %472 = vmatpush1.bf16.msra.mxu0 0
  %473 = vmatprep.mubr.bf16.mxu0 0
  %474 = vmatmul.mubr.bf16.gmra.mrb[0].mxu0 %v440
  %v475 = vpop.f32.mrb[0].mxu0
  %v476 = vadd.f32 0.0, %v475
  %v477 = vpop.f32.mrb[0].mxu0
  %v478 = vadd.f32 0.0, %v477
  %v479 = vpop.f32.mrb[0].mxu0
  %v480 = vpop.f32.mrb[0].mxu0
  %481 = vdwg.mxu0
  %482 = vmatprep.subr.bf16.mxu0 0
  %483 = vmatpush1.bf16.msra.mxu0 %v153
  %484 = vmatprep.subr.bf16.mxu0 0
  %485 = vmatpush1.bf16.msra.mxu0 %v156
  %486 = vmatprep.subr.bf16.mxu0 0
  %487 = vmatpush1.bf16.msra.mxu0 %v159
  %488 = vmatprep.subr.bf16.mxu0 0
  %489 = vmatpush1.bf16.msra.mxu0 %v162
  %490 = vmatprep.subr.bf16.mxu0 0
  %491 = vmatpush1.bf16.msra.mxu0 %v165
  %492 = vmatprep.subr.bf16.mxu0 0
  %493 = vmatpush1.bf16.msra.mxu0 %v168
  %494 = vmatprep.subr.bf16.mxu0 0
  %495 = vmatpush1.bf16.msra.mxu0 %v171
  %496 = vmatprep.subr.bf16.mxu0 0
  %497 = vmatpush1.bf16.msra.mxu0 %v174
  %498 = vmatprep.subr.bf16.mxu0 0
  %499 = vmatpush1.bf16.msra.mxu0 0
  %500 = vmatprep.subr.bf16.mxu0 0
  %501 = vmatpush1.bf16.msra.mxu0 0
  %502 = vmatprep.subr.bf16.mxu0 0
  %503 = vmatpush1.bf16.msra.mxu0 0
  %504 = vmatprep.subr.bf16.mxu0 0
  %505 = vmatpush1.bf16.msra.mxu0 0
  %506 = vmatprep.subr.bf16.mxu0 0
  %507 = vmatpush1.bf16.msra.mxu0 0
  %508 = vmatprep.subr.bf16.mxu0 0
  %509 = vmatpush1.bf16.msra.mxu0 0
  %510 = vmatprep.subr.bf16.mxu0 0
  %511 = vmatpush1.bf16.msra.mxu0 0
  %512 = vmatprep.subr.bf16.mxu0 0
  %513 = vmatpush1.bf16.msra.mxu0 0
  %514 = vmatprep.mubr.bf16.mxu0 0
  %515 = vmatmul.mubr.bf16.gmra.mrb[0].mxu0 %v440
  %v516 = vpop.f32.mrb[0].mxu0
  %v517 = vadd.f32 0.0, %v516
  %v518 = vpop.f32.mrb[0].mxu0
  %v519 = vpop.f32.mrb[0].mxu0
  %v520 = vpop.f32.mrb[0].mxu0
  %521 = vdwg.mxu0
  %v522 = vadd.f32 %v437, %v476
  %v523 = vxor.u32 %v522, 2147483648
  %v524 = vmul.f32 %v523, 1.442695
  %v525 = vpow.pop %v524
  %v526 = vadd.f32 %v525, 1.0
  %v527 = vrcp.pop %v526
  %v528 = vmul.f32 1.0, %v527
  %v529 = vadd.f32 %v438, %v478
  %v530 = vxor.u32 %v529, 2147483648
  %v531 = vmul.f32 %v530, 1.442695
  %v532 = vpow.pop %v531
  %v533 = vadd.f32 %v532, 1.0
  %v534 = vrcp.pop %v533
  %v535 = vmul.f32 1.0, %v534
  %v536 = vadd.f32 %v517, %v64
  %v537 = vmul.f32 %v528, %v536
  %v538 = vadd.f32 %v439, %v537
  %v539 = vtanh.pop %v538
  %v540 = vsub.f32 %v435, %v539
  %v541 = vmul.f32 %v535, %v540
  %v542 = vadd.f32 %v539, %v541
  %s543 = scalar_lea.vmem %s1, 16
  %v544 = vld [vmem:[%s543] sm:$0xff]
  %v545 = vsub.f32 %v542, %v435
  %547 = vset.pattern.permute.xlu0 0
  %548 = vperm.xlu0 %547, %v544
  %v549 = vpop.permute.xlu0 %548
  %v551 = vmul.f32 %v549, %v545
  %v552 = vadd.f32 %v435, %v551
  %553 = vst [vmem:[#allocation2] sm:$0xff] %v552
  %v554 = vpack.c.bf16 %v552, %v552
  %s555 = scalar_lea.vmem %s5, 8
  %556 = vst [vmem:[%s555] sm:$0xf] %v554
  %v557 = vld [vmem:[#allocation2] sm:$0xff]
  %s558 = scalar_lea.vmem %s0, 72
  %v559 = vld [vmem:[%s558] sm:$0xff]
  %v560 = vld [vmem:[%s558 + $0x8] sm:$0xff]
  %v561 = vld [vmem:[%s558 + $0x10] sm:$0xff]
  %v562 = vpack.c.bf16 %v557, %v557
  %563 = vmatprep.subr.bf16.mxu0 %v152
  %564 = vmatpush1.bf16.msra.mxu0 %v151
  %565 = vmatprep.subr.bf16.mxu0 %v155
  %566 = vmatpush1.bf16.msra.mxu0 %v154
  %567 = vmatprep.subr.bf16.mxu0 %v158
  %568 = vmatpush1.bf16.msra.mxu0 %v157
  %569 = vmatprep.subr.bf16.mxu0 %v161
  %570 = vmatpush1.bf16.msra.mxu0 %v160
  %571 = vmatprep.subr.bf16.mxu0 %v164
  %572 = vmatpush1.bf16.msra.mxu0 %v163
  %573 = vmatprep.subr.bf16.mxu0 %v167
  %574 = vmatpush1.bf16.msra.mxu0 %v166
  %575 = vmatprep.subr.bf16.mxu0 %v170
  %576 = vmatpush1.bf16.msra.mxu0 %v169
  %577 = vmatprep.subr.bf16.mxu0 %v173
  %578 = vmatpush1.bf16.msra.mxu0 %v172
  %579 = vmatprep.subr.bf16.mxu0 0
  %580 = vmatpush1.bf16.msra.mxu0 0
  %581 = vmatprep.subr.bf16.mxu0 0
  %582 = vmatpush1.bf16.msra.mxu0 0
  %583 = vmatprep.subr.bf16.mxu0 0
  %584 = vmatpush1.bf16.msra.mxu0 0
  %585 = vmatprep.subr.bf16.mxu0 0
  %586 = vmatpush1.bf16.msra.mxu0 0
  %587 = vmatprep.subr.bf16.mxu0 0
  %588 = vmatpush1.bf16.msra.mxu0 0
  %589 = vmatprep.subr.bf16.mxu0 0
  %590 = vmatpush1.bf16.msra.mxu0 0
  %591 = vmatprep.subr.bf16.mxu0 0
  %592 = vmatpush1.bf16.msra.mxu0 0
  %593 = vmatprep.subr.bf16.mxu0 0
  %594 = vmatpush1.bf16.msra.mxu0 0
  %595 = vmatprep.mubr.bf16.mxu0 0
  %596 = vmatmul.mubr.bf16.gmra.mrb[0].mxu0 %v562
  %v597 = vpop.f32.mrb[0].mxu0
  %v598 = vadd.f32 0.0, %v597
  %v599 = vpop.f32.mrb[0].mxu0
  %v600 = vadd.f32 0.0, %v599
  %v601 = vpop.f32.mrb[0].mxu0
  %v602 = vpop.f32.mrb[0].mxu0
  %603 = vdwg.mxu0
  %604 = vmatprep.subr.bf16.mxu0 0
  %605 = vmatpush1.bf16.msra.mxu0 %v153
  %606 = vmatprep.subr.bf16.mxu0 0
  %607 = vmatpush1.bf16.msra.mxu0 %v156
  %608 = vmatprep.subr.bf16.mxu0 0
  %609 = vmatpush1.bf16.msra.mxu0 %v159
  %610 = vmatprep.subr.bf16.mxu0 0
  %611 = vmatpush1.bf16.msra.mxu0 %v162
  %612 = vmatprep.subr.bf16.mxu0 0
  %613 = vmatpush1.bf16.msra.mxu0 %v165
  %614 = vmatprep.subr.bf16.mxu0 0
  %615 = vmatpush1.bf16.msra.mxu0 %v168
  %616 = vmatprep.subr.bf16.mxu0 0
  %617 = vmatpush1.bf16.msra.mxu0 %v171
  %618 = vmatprep.subr.bf16.mxu0 0
  %619 = vmatpush1.bf16.msra.mxu0 %v174
  %620 = vmatprep.subr.bf16.mxu0 0
  %621 = vmatpush1.bf16.msra.mxu0 0
  %622 = vmatprep.subr.bf16.mxu0 0
  %623 = vmatpush1.bf16.msra.mxu0 0
  %624 = vmatprep.subr.bf16.mxu0 0
  %625 = vmatpush1.bf16.msra.mxu0 0
  %626 = vmatprep.subr.bf16.mxu0 0
  %627 = vmatpush1.bf16.msra.mxu0 0
  %628 = vmatprep.subr.bf16.mxu0 0
  %629 = vmatpush1.bf16.msra.mxu0 0
  %630 = vmatprep.subr.bf16.mxu0 0
  %631 = vmatpush1.bf16.msra.mxu0 0
  %632 = vmatprep.subr.bf16.mxu0 0
  %633 = vmatpush1.bf16.msra.mxu0 0
  %634 = vmatprep.subr.bf16.mxu0 0
  %635 = vmatpush1.bf16.msra.mxu0 0
  %636 = vmatprep.mubr.bf16.mxu0 0
  %637 = vmatmul.mubr.bf16.gmra.mrb[0].mxu0 %v562
  %v638 = vpop.f32.mrb[0].mxu0
  %v639 = vadd.f32 0.0, %v638
  %v640 = vpop.f32.mrb[0].mxu0
  %v641 = vpop.f32.mrb[0].mxu0
  %v642 = vpop.f32.mrb[0].mxu0
  %643 = vdwg.mxu0
  %v644 = vadd.f32 %v559, %v598
  %v645 = vxor.u32 %v644, 2147483648
  %v646 = vmul.f32 %v645, 1.442695
  %v647 = vpow.pop %v646
  %v648 = vadd.f32 %v647, 1.0
  %v649 = vrcp.pop %v648
  %v650 = vmul.f32 1.0, %v649
  %v651 = vadd.f32 %v560, %v600
  %v652 = vxor.u32 %v651, 2147483648
  %v653 = vmul.f32 %v652, 1.442695
  %v654 = vpow.pop %v653
  %v655 = vadd.f32 %v654, 1.0
  %v656 = vrcp.pop %v655
  %v657 = vmul.f32 1.0, %v656
  %v658 = vadd.f32 %v639, %v64
  %v659 = vmul.f32 %v650, %v658
  %v660 = vadd.f32 %v561, %v659
  %v661 = vtanh.pop %v660
  %v662 = vsub.f32 %v557, %v661
  %v663 = vmul.f32 %v657, %v662
  %v664 = vadd.f32 %v661, %v663
  %s665 = scalar_lea.vmem %s1, 24
  %v666 = vld [vmem:[%s665] sm:$0xff]
  %v667 = vsub.f32 %v664, %v557
  %669 = vset.pattern.permute.xlu0 0
  %670 = vperm.xlu0 %669, %v666
  %v671 = vpop.permute.xlu0 %670
  %v673 = vmul.f32 %v671, %v667
  %v674 = vadd.f32 %v557, %v673
  %675 = vst [vmem:[#allocation2] sm:$0xff] %v674
  %v676 = vpack.c.bf16 %v674, %v674
  %s677 = scalar_lea.vmem %s5, 12
  %678 = vst [vmem:[%s677] sm:$0xf] %v676
  %v679 = vld [vmem:[#allocation2] sm:$0xff]
  %s680 = scalar_lea.vmem %s0, 96
  %v681 = vld [vmem:[%s680] sm:$0xff]
  %v682 = vld [vmem:[%s680 + $0x8] sm:$0xff]
  %v683 = vld [vmem:[%s680 + $0x10] sm:$0xff]
  %v684 = vpack.c.bf16 %v679, %v679
  %685 = vmatprep.subr.bf16.mxu0 %v152
  %686 = vmatpush1.bf16.msra.mxu0 %v151
  %687 = vmatprep.subr.bf16.mxu0 %v155
  %688 = vmatpush1.bf16.msra.mxu0 %v154
  %689 = vmatprep.subr.bf16.mxu0 %v158
  %690 = vmatpush1.bf16.msra.mxu0 %v157
  %691 = vmatprep.subr.bf16.mxu0 %v161
  %692 = vmatpush1.bf16.msra.mxu0 %v160
  %693 = vmatprep.subr.bf16.mxu0 %v164
  %694 = vmatpush1.bf16.msra.mxu0 %v163
  %695 = vmatprep.subr.bf16.mxu0 %v167
  %696 = vmatpush1.bf16.msra.mxu0 %v166
  %697 = vmatprep.subr.bf16.mxu0 %v170
  %698 = vmatpush1.bf16.msra.mxu0 %v169
  %699 = vmatprep.subr.bf16.mxu0 %v173
  %700 = vmatpush1.bf16.msra.mxu0 %v172
  %701 = vmatprep.subr.bf16.mxu0 0
  %702 = vmatpush1.bf16.msra.mxu0 0
  %703 = vmatprep.subr.bf16.mxu0 0
  %704 = vmatpush1.bf16.msra.mxu0 0
  %705 = vmatprep.subr.bf16.mxu0 0
  %706 = vmatpush1.bf16.msra.mxu0 0
  %707 = vmatprep.subr.bf16.mxu0 0
  %708 = vmatpush1.bf16.msra.mxu0 0
  %709 = vmatprep.subr.bf16.mxu0 0
  %710 = vmatpush1.bf16.msra.mxu0 0
  %711 = vmatprep.subr.bf16.mxu0 0
  %712 = vmatpush1.bf16.msra.mxu0 0
  %713 = vmatprep.subr.bf16.mxu0 0
  %714 = vmatpush1.bf16.msra.mxu0 0
  %715 = vmatprep.subr.bf16.mxu0 0
  %716 = vmatpush1.bf16.msra.mxu0 0
  %717 = vmatprep.mubr.bf16.mxu0 0
  %718 = vmatmul.mubr.bf16.gmra.mrb[0].mxu0 %v684
  %v719 = vpop.f32.mrb[0].mxu0
  %v720 = vadd.f32 0.0, %v719
  %v721 = vpop.f32.mrb[0].mxu0
  %v722 = vadd.f32 0.0, %v721
  %v723 = vpop.f32.mrb[0].mxu0
  %v724 = vpop.f32.mrb[0].mxu0
  %725 = vdwg.mxu0
  %726 = vmatprep.subr.bf16.mxu0 0
  %727 = vmatpush1.bf16.msra.mxu0 %v153
  %728 = vmatprep.subr.bf16.mxu0 0
  %729 = vmatpush1.bf16.msra.mxu0 %v156
  %730 = vmatprep.subr.bf16.mxu0 0
  %731 = vmatpush1.bf16.msra.mxu0 %v159
  %732 = vmatprep.subr.bf16.mxu0 0
  %733 = vmatpush1.bf16.msra.mxu0 %v162
  %734 = vmatprep.subr.bf16.mxu0 0
  %735 = vmatpush1.bf16.msra.mxu0 %v165
  %736 = vmatprep.subr.bf16.mxu0 0
  %737 = vmatpush1.bf16.msra.mxu0 %v168
  %738 = vmatprep.subr.bf16.mxu0 0
  %739 = vmatpush1.bf16.msra.mxu0 %v171
  %740 = vmatprep.subr.bf16.mxu0 0
  %741 = vmatpush1.bf16.msra.mxu0 %v174
  %742 = vmatprep.subr.bf16.mxu0 0
  %743 = vmatpush1.bf16.msra.mxu0 0
  %744 = vmatprep.subr.bf16.mxu0 0
  %745 = vmatpush1.bf16.msra.mxu0 0
  %746 = vmatprep.subr.bf16.mxu0 0
  %747 = vmatpush1.bf16.msra.mxu0 0
  %748 = vmatprep.subr.bf16.mxu0 0
  %749 = vmatpush1.bf16.msra.mxu0 0
  %750 = vmatprep.subr.bf16.mxu0 0
  %751 = vmatpush1.bf16.msra.mxu0 0
  %752 = vmatprep.subr.bf16.mxu0 0
  %753 = vmatpush1.bf16.msra.mxu0 0
  %754 = vmatprep.subr.bf16.mxu0 0
  %755 = vmatpush1.bf16.msra.mxu0 0
  %756 = vmatprep.subr.bf16.mxu0 0
  %757 = vmatpush1.bf16.msra.mxu0 0
  %758 = vmatprep.mubr.bf16.mxu0 0
  %759 = vmatmul.mubr.bf16.gmra.mrb[0].mxu0 %v684
  %v760 = vpop.f32.mrb[0].mxu0
  %v761 = vadd.f32 0.0, %v760
  %v762 = vpop.f32.mrb[0].mxu0
  %v763 = vpop.f32.mrb[0].mxu0
  %v764 = vpop.f32.mrb[0].mxu0
  %765 = vdwg.mxu0
  %v766 = vadd.f32 %v681, %v720
  %v767 = vxor.u32 %v766, 2147483648
  %v768 = vmul.f32 %v767, 1.442695
  %v769 = vpow.pop %v768
  %v770 = vadd.f32 %v769, 1.0
  %v771 = vrcp.pop %v770
  %v772 = vmul.f32 1.0, %v771
  %v773 = vadd.f32 %v682, %v722
  %v774 = vxor.u32 %v773, 2147483648
  %v775 = vmul.f32 %v774, 1.442695
  %v776 = vpow.pop %v775
  %v777 = vadd.f32 %v776, 1.0
  %v778 = vrcp.pop %v777
  %v779 = vmul.f32 1.0, %v778
  %v780 = vadd.f32 %v761, %v64
  %v781 = vmul.f32 %v772, %v780
  %v782 = vadd.f32 %v683, %v781
  %v783 = vtanh.pop %v782
  %v784 = vsub.f32 %v679, %v783
  %v785 = vmul.f32 %v779, %v784
  %v786 = vadd.f32 %v783, %v785
  %s787 = scalar_lea.vmem %s1, 32
  %v788 = vld [vmem:[%s787] sm:$0xff]
  %v789 = vsub.f32 %v786, %v679
  %791 = vset.pattern.permute.xlu0 0
  %792 = vperm.xlu0 %791, %v788
  %v793 = vpop.permute.xlu0 %792
  %v795 = vmul.f32 %v793, %v789
  %v796 = vadd.f32 %v679, %v795
  %797 = vst [vmem:[#allocation2] sm:$0xff] %v796
  %v798 = vpack.c.bf16 %v796, %v796
  %s799 = scalar_lea.vmem %s5, 16
  %800 = vst [vmem:[%s799] sm:$0xf] %v798
  %v801 = vld [vmem:[#allocation2] sm:$0xff]
  %s802 = scalar_lea.vmem %s0, 120
  %v803 = vld [vmem:[%s802] sm:$0xff]
  %v804 = vld [vmem:[%s802 + $0x8] sm:$0xff]
  %v805 = vld [vmem:[%s802 + $0x10] sm:$0xff]
  %v806 = vpack.c.bf16 %v801, %v801
  %807 = vmatprep.subr.bf16.mxu0 %v152
  %808 = vmatpush1.bf16.msra.mxu0 %v151
  %809 = vmatprep.subr.bf16.mxu0 %v155
  %810 = vmatpush1.bf16.msra.mxu0 %v154
  %811 = vmatprep.subr.bf16.mxu0 %v158
  %812 = vmatpush1.bf16.msra.mxu0 %v157
  %813 = vmatprep.subr.bf16.mxu0 %v161
  %814 = vmatpush1.bf16.msra.mxu0 %v160
  %815 = vmatprep.subr.bf16.mxu0 %v164
  %816 = vmatpush1.bf16.msra.mxu0 %v163
  %817 = vmatprep.subr.bf16.mxu0 %v167
  %818 = vmatpush1.bf16.msra.mxu0 %v166
  %819 = vmatprep.subr.bf16.mxu0 %v170
  %820 = vmatpush1.bf16.msra.mxu0 %v169
  %821 = vmatprep.subr.bf16.mxu0 %v173
  %822 = vmatpush1.bf16.msra.mxu0 %v172
  %823 = vmatprep.subr.bf16.mxu0 0
  %824 = vmatpush1.bf16.msra.mxu0 0
  %825 = vmatprep.subr.bf16.mxu0 0
  %826 = vmatpush1.bf16.msra.mxu0 0
  %827 = vmatprep.subr.bf16.mxu0 0
  %828 = vmatpush1.bf16.msra.mxu0 0
  %829 = vmatprep.subr.bf16.mxu0 0
  %830 = vmatpush1.bf16.msra.mxu0 0
  %831 = vmatprep.subr.bf16.mxu0 0
  %832 = vmatpush1.bf16.msra.mxu0 0
  %833 = vmatprep.subr.bf16.mxu0 0
  %834 = vmatpush1.bf16.msra.mxu0 0
  %835 = vmatprep.subr.bf16.mxu0 0
  %836 = vmatpush1.bf16.msra.mxu0 0
  %837 = vmatprep.subr.bf16.mxu0 0
  %838 = vmatpush1.bf16.msra.mxu0 0
  %839 = vmatprep.mubr.bf16.mxu0 0
  %840 = vmatmul.mubr.bf16.gmra.mrb[0].mxu0 %v806
  %v841 = vpop.f32.mrb[0].mxu0
  %v842 = vadd.f32 0.0, %v841
  %v843 = vpop.f32.mrb[0].mxu0
  %v844 = vadd.f32 0.0, %v843
  %v845 = vpop.f32.mrb[0].mxu0
  %v846 = vpop.f32.mrb[0].mxu0
  %847 = vdwg.mxu0
  %848 = vmatprep.subr.bf16.mxu0 0
  %849 = vmatpush1.bf16.msra.mxu0 %v153
  %850 = vmatprep.subr.bf16.mxu0 0
  %851 = vmatpush1.bf16.msra.mxu0 %v156
  %852 = vmatprep.subr.bf16.mxu0 0
  %853 = vmatpush1.bf16.msra.mxu0 %v159
  %854 = vmatprep.subr.bf16.mxu0 0
  %855 = vmatpush1.bf16.msra.mxu0 %v162
  %856 = vmatprep.subr.bf16.mxu0 0
  %857 = vmatpush1.bf16.msra.mxu0 %v165
  %858 = vmatprep.subr.bf16.mxu0 0
  %859 = vmatpush1.bf16.msra.mxu0 %v168
  %860 = vmatprep.subr.bf16.mxu0 0
  %861 = vmatpush1.bf16.msra.mxu0 %v171
  %862 = vmatprep.subr.bf16.mxu0 0
  %863 = vmatpush1.bf16.msra.mxu0 %v174
  %864 = vmatprep.subr.bf16.mxu0 0
  %865 = vmatpush1.bf16.msra.mxu0 0
  %866 = vmatprep.subr.bf16.mxu0 0
  %867 = vmatpush1.bf16.msra.mxu0 0
  %868 = vmatprep.subr.bf16.mxu0 0
  %869 = vmatpush1.bf16.msra.mxu0 0
  %870 = vmatprep.subr.bf16.mxu0 0
  %871 = vmatpush1.bf16.msra.mxu0 0
  %872 = vmatprep.subr.bf16.mxu0 0
  %873 = vmatpush1.bf16.msra.mxu0 0
  %874 = vmatprep.subr.bf16.mxu0 0
  %875 = vmatpush1.bf16.msra.mxu0 0
  %876 = vmatprep.subr.bf16.mxu0 0
  %877 = vmatpush1.bf16.msra.mxu0 0
  %878 = vmatprep.subr.bf16.mxu0 0
  %879 = vmatpush1.bf16.msra.mxu0 0
  %880 = vmatprep.mubr.bf16.mxu0 0
  %881 = vmatmul.mubr.bf16.gmra.mrb[0].mxu0 %v806
  %v882 = vpop.f32.mrb[0].mxu0
  %v883 = vadd.f32 0.0, %v882
  %v884 = vpop.f32.mrb[0].mxu0
  %v885 = vpop.f32.mrb[0].mxu0
  %v886 = vpop.f32.mrb[0].mxu0
  %887 = vdwg.mxu0
  %v888 = vadd.f32 %v803, %v842
  %v889 = vxor.u32 %v888, 2147483648
  %v890 = vmul.f32 %v889, 1.442695
  %v891 = vpow.pop %v890
  %v892 = vadd.f32 %v891, 1.0
  %v893 = vrcp.pop %v892
  %v894 = vmul.f32 1.0, %v893
  %v895 = vadd.f32 %v804, %v844
  %v896 = vxor.u32 %v895, 2147483648
  %v897 = vmul.f32 %v896, 1.442695
  %v898 = vpow.pop %v897
  %v899 = vadd.f32 %v898, 1.0
  %v900 = vrcp.pop %v899
  %v901 = vmul.f32 1.0, %v900
  %v902 = vadd.f32 %v883, %v64
  %v903 = vmul.f32 %v894, %v902
  %v904 = vadd.f32 %v805, %v903
  %v905 = vtanh.pop %v904
  %v906 = vsub.f32 %v801, %v905
  %v907 = vmul.f32 %v901, %v906
  %v908 = vadd.f32 %v905, %v907
  %s909 = scalar_lea.vmem %s1, 40
  %v910 = vld [vmem:[%s909] sm:$0xff]
  %v911 = vsub.f32 %v908, %v801
  %913 = vset.pattern.permute.xlu0 0
  %914 = vperm.xlu0 %913, %v910
  %v915 = vpop.permute.xlu0 %914
  %v917 = vmul.f32 %v915, %v911
  %v918 = vadd.f32 %v801, %v917
  %919 = vst [vmem:[#allocation2] sm:$0xff] %v918
  %v920 = vpack.c.bf16 %v918, %v918
  %s921 = scalar_lea.vmem %s5, 20
  %922 = vst [vmem:[%s921] sm:$0xf] %v920
  %v923 = vld [vmem:[#allocation2] sm:$0xff]
  %s924 = scalar_lea.vmem %s0, 144
  %v925 = vld [vmem:[%s924] sm:$0xff]
  %v926 = vld [vmem:[%s924 + $0x8] sm:$0xff]
  %v927 = vld [vmem:[%s924 + $0x10] sm:$0xff]
  %v928 = vpack.c.bf16 %v923, %v923
  %929 = vmatprep.subr.bf16.mxu0 %v152
  %930 = vmatpush1.bf16.msra.mxu0 %v151
  %931 = vmatprep.subr.bf16.mxu0 %v155
  %932 = vmatpush1.bf16.msra.mxu0 %v154
  %933 = vmatprep.subr.bf16.mxu0 %v158
  %934 = vmatpush1.bf16.msra.mxu0 %v157
  %935 = vmatprep.subr.bf16.mxu0 %v161
  %936 = vmatpush1.bf16.msra.mxu0 %v160
  %937 = vmatprep.subr.bf16.mxu0 %v164
  %938 = vmatpush1.bf16.msra.mxu0 %v163
  %939 = vmatprep.subr.bf16.mxu0 %v167
  %940 = vmatpush1.bf16.msra.mxu0 %v166
  %941 = vmatprep.subr.bf16.mxu0 %v170
  %942 = vmatpush1.bf16.msra.mxu0 %v169
  %943 = vmatprep.subr.bf16.mxu0 %v173
  %944 = vmatpush1.bf16.msra.mxu0 %v172
  %945 = vmatprep.subr.bf16.mxu0 0
  %946 = vmatpush1.bf16.msra.mxu0 0
  %947 = vmatprep.subr.bf16.mxu0 0
  %948 = vmatpush1.bf16.msra.mxu0 0
  %949 = vmatprep.subr.bf16.mxu0 0
  %950 = vmatpush1.bf16.msra.mxu0 0
  %951 = vmatprep.subr.bf16.mxu0 0
  %952 = vmatpush1.bf16.msra.mxu0 0
  %953 = vmatprep.subr.bf16.mxu0 0
  %954 = vmatpush1.bf16.msra.mxu0 0
  %955 = vmatprep.subr.bf16.mxu0 0
  %956 = vmatpush1.bf16.msra.mxu0 0
  %957 = vmatprep.subr.bf16.mxu0 0
  %958 = vmatpush1.bf16.msra.mxu0 0
  %959 = vmatprep.subr.bf16.mxu0 0
  %960 = vmatpush1.bf16.msra.mxu0 0
  %961 = vmatprep.mubr.bf16.mxu0 0
  %962 = vmatmul.mubr.bf16.gmra.mrb[0].mxu0 %v928
  %v963 = vpop.f32.mrb[0].mxu0
  %v964 = vadd.f32 0.0, %v963
  %v965 = vpop.f32.mrb[0].mxu0
  %v966 = vadd.f32 0.0, %v965
  %v967 = vpop.f32.mrb[0].mxu0
  %v968 = vpop.f32.mrb[0].mxu0
  %969 = vdwg.mxu0
  %970 = vmatprep.subr.bf16.mxu0 0
  %971 = vmatpush1.bf16.msra.mxu0 %v153
  %972 = vmatprep.subr.bf16.mxu0 0
  %973 = vmatpush1.bf16.msra.mxu0 %v156
  %974 = vmatprep.subr.bf16.mxu0 0
  %975 = vmatpush1.bf16.msra.mxu0 %v159
  %976 = vmatprep.subr.bf16.mxu0 0
  %977 = vmatpush1.bf16.msra.mxu0 %v162
  %978 = vmatprep.subr.bf16.mxu0 0
  %979 = vmatpush1.bf16.msra.mxu0 %v165
  %980 = vmatprep.subr.bf16.mxu0 0
  %981 = vmatpush1.bf16.msra.mxu0 %v168
  %982 = vmatprep.subr.bf16.mxu0 0
  %983 = vmatpush1.bf16.msra.mxu0 %v171
  %984 = vmatprep.subr.bf16.mxu0 0
  %985 = vmatpush1.bf16.msra.mxu0 %v174
  %986 = vmatprep.subr.bf16.mxu0 0
  %987 = vmatpush1.bf16.msra.mxu0 0
  %988 = vmatprep.subr.bf16.mxu0 0
  %989 = vmatpush1.bf16.msra.mxu0 0
  %990 = vmatprep.subr.bf16.mxu0 0
  %991 = vmatpush1.bf16.msra.mxu0 0
  %992 = vmatprep.subr.bf16.mxu0 0
  %993 = vmatpush1.bf16.msra.mxu0 0
  %994 = vmatprep.subr.bf16.mxu0 0
  %995 = vmatpush1.bf16.msra.mxu0 0
  %996 = vmatprep.subr.bf16.mxu0 0
  %997 = vmatpush1.bf16.msra.mxu0 0
  %998 = vmatprep.subr.bf16.mxu0 0
  %999 = vmatpush1.bf16.msra.mxu0 0
  %1000 = vmatprep.subr.bf16.mxu0 0
  %1001 = vmatpush1.bf16.msra.mxu0 0
  %1002 = vmatprep.mubr.bf16.mxu0 0
  %1003 = vmatmul.mubr.bf16.gmra.mrb[0].mxu0 %v928
  %v1004 = vpop.f32.mrb[0].mxu0
  %v1005 = vadd.f32 0.0, %v1004
  %v1006 = vpop.f32.mrb[0].mxu0
  %v1007 = vpop.f32.mrb[0].mxu0
  %v1008 = vpop.f32.mrb[0].mxu0
  %1009 = vdwg.mxu0
  %v1010 = vadd.f32 %v925, %v964
  %v1011 = vxor.u32 %v1010, 2147483648
  %v1012 = vmul.f32 %v1011, 1.442695
  %v1013 = vpow.pop %v1012
  %v1014 = vadd.f32 %v1013, 1.0
  %v1015 = vrcp.pop %v1014
  %v1016 = vmul.f32 1.0, %v1015
  %v1017 = vadd.f32 %v926, %v966
  %v1018 = vxor.u32 %v1017, 2147483648
  %v1019 = vmul.f32 %v1018, 1.442695
  %v1020 = vpow.pop %v1019
  %v1021 = vadd.f32 %v1020, 1.0
  %v1022 = vrcp.pop %v1021
  %v1023 = vmul.f32 1.0, %v1022
  %v1024 = vadd.f32 %v1005, %v64
  %v1025 = vmul.f32 %v1016, %v1024
  %v1026 = vadd.f32 %v927, %v1025
  %v1027 = vtanh.pop %v1026
  %v1028 = vsub.f32 %v923, %v1027
  %v1029 = vmul.f32 %v1023, %v1028
  %v1030 = vadd.f32 %v1027, %v1029
  %s1031 = scalar_lea.vmem %s1, 48
  %v1032 = vld [vmem:[%s1031] sm:$0xff]
  %v1033 = vsub.f32 %v1030, %v923
  %1035 = vset.pattern.permute.xlu0 0
  %1036 = vperm.xlu0 %1035, %v1032
  %v1037 = vpop.permute.xlu0 %1036
  %v1039 = vmul.f32 %v1037, %v1033
  %v1040 = vadd.f32 %v923, %v1039
  %1041 = vst [vmem:[#allocation2] sm:$0xff] %v1040
  %v1042 = vpack.c.bf16 %v1040, %v1040
  %s1043 = scalar_lea.vmem %s5, 24
  %1044 = vst [vmem:[%s1043] sm:$0xf] %v1042
  %v1045 = vld [vmem:[#allocation2] sm:$0xff]
  %s1046 = scalar_lea.vmem %s0, 168
  %v1047 = vld [vmem:[%s1046] sm:$0xff]
  %v1048 = vld [vmem:[%s1046 + $0x8] sm:$0xff]
  %v1049 = vld [vmem:[%s1046 + $0x10] sm:$0xff]
  %v1050 = vpack.c.bf16 %v1045, %v1045
  %1051 = vmatprep.subr.bf16.mxu0 %v152
  %1052 = vmatpush1.bf16.msra.mxu0 %v151
  %1053 = vmatprep.subr.bf16.mxu0 %v155
  %1054 = vmatpush1.bf16.msra.mxu0 %v154
  %1055 = vmatprep.subr.bf16.mxu0 %v158
  %1056 = vmatpush1.bf16.msra.mxu0 %v157
  %1057 = vmatprep.subr.bf16.mxu0 %v161
  %1058 = vmatpush1.bf16.msra.mxu0 %v160
  %1059 = vmatprep.subr.bf16.mxu0 %v164
  %1060 = vmatpush1.bf16.msra.mxu0 %v163
  %1061 = vmatprep.subr.bf16.mxu0 %v167
  %1062 = vmatpush1.bf16.msra.mxu0 %v166
  %1063 = vmatprep.subr.bf16.mxu0 %v170
  %1064 = vmatpush1.bf16.msra.mxu0 %v169
  %1065 = vmatprep.subr.bf16.mxu0 %v173
  %1066 = vmatpush1.bf16.msra.mxu0 %v172
  %1067 = vmatprep.subr.bf16.mxu0 0
  %1068 = vmatpush1.bf16.msra.mxu0 0
  %1069 = vmatprep.subr.bf16.mxu0 0
  %1070 = vmatpush1.bf16.msra.mxu0 0
  %1071 = vmatprep.subr.bf16.mxu0 0
  %1072 = vmatpush1.bf16.msra.mxu0 0
  %1073 = vmatprep.subr.bf16.mxu0 0
  %1074 = vmatpush1.bf16.msra.mxu0 0
  %1075 = vmatprep.subr.bf16.mxu0 0
  %1076 = vmatpush1.bf16.msra.mxu0 0
  %1077 = vmatprep.subr.bf16.mxu0 0
  %1078 = vmatpush1.bf16.msra.mxu0 0
  %1079 = vmatprep.subr.bf16.mxu0 0
  %1080 = vmatpush1.bf16.msra.mxu0 0
  %1081 = vmatprep.subr.bf16.mxu0 0
  %1082 = vmatpush1.bf16.msra.mxu0 0
  %1083 = vmatprep.mubr.bf16.mxu0 0
  %1084 = vmatmul.mubr.bf16.gmra.mrb[0].mxu0 %v1050
  %v1085 = vpop.f32.mrb[0].mxu0
  %v1086 = vadd.f32 0.0, %v1085
  %v1087 = vpop.f32.mrb[0].mxu0
  %v1088 = vadd.f32 0.0, %v1087
  %v1089 = vpop.f32.mrb[0].mxu0
  %v1090 = vpop.f32.mrb[0].mxu0
  %1091 = vdwg.mxu0
  %1092 = vmatprep.subr.bf16.mxu0 0
  %1093 = vmatpush1.bf16.msra.mxu0 %v153
  %1094 = vmatprep.subr.bf16.mxu0 0
  %1095 = vmatpush1.bf16.msra.mxu0 %v156
  %1096 = vmatprep.subr.bf16.mxu0 0
  %1097 = vmatpush1.bf16.msra.mxu0 %v159
  %1098 = vmatprep.subr.bf16.mxu0 0
  %1099 = vmatpush1.bf16.msra.mxu0 %v162
  %1100 = vmatprep.subr.bf16.mxu0 0
  %1101 = vmatpush1.bf16.msra.mxu0 %v165
  %1102 = vmatprep.subr.bf16.mxu0 0
  %1103 = vmatpush1.bf16.msra.mxu0 %v168
  %1104 = vmatprep.subr.bf16.mxu0 0
  %1105 = vmatpush1.bf16.msra.mxu0 %v171
  %1106 = vmatprep.subr.bf16.mxu0 0
  %1107 = vmatpush1.bf16.msra.mxu0 %v174
  %1108 = vmatprep.subr.bf16.mxu0 0
  %1109 = vmatpush1.bf16.msra.mxu0 0
  %1110 = vmatprep.subr.bf16.mxu0 0
  %1111 = vmatpush1.bf16.msra.mxu0 0
  %1112 = vmatprep.subr.bf16.mxu0 0
  %1113 = vmatpush1.bf16.msra.mxu0 0
  %1114 = vmatprep.subr.bf16.mxu0 0
  %1115 = vmatpush1.bf16.msra.mxu0 0
  %1116 = vmatprep.subr.bf16.mxu0 0
  %1117 = vmatpush1.bf16.msra.mxu0 0
  %1118 = vmatprep.subr.bf16.mxu0 0
  %1119 = vmatpush1.bf16.msra.mxu0 0
  %1120 = vmatprep.subr.bf16.mxu0 0
  %1121 = vmatpush1.bf16.msra.mxu0 0
  %1122 = vmatprep.subr.bf16.mxu0 0
  %1123 = vmatpush1.bf16.msra.mxu0 0
  %1124 = vmatprep.mubr.bf16.mxu0 0
  %1125 = vmatmul.mubr.bf16.gmra.mrb[0].mxu0 %v1050
  %v1126 = vpop.f32.mrb[0].mxu0
  %v1127 = vadd.f32 0.0, %v1126
  %v1128 = vpop.f32.mrb[0].mxu0
  %v1129 = vpop.f32.mrb[0].mxu0
  %v1130 = vpop.f32.mrb[0].mxu0
  %1131 = vdwg.mxu0
  %v1132 = vadd.f32 %v1047, %v1086
  %v1133 = vxor.u32 %v1132, 2147483648
  %v1134 = vmul.f32 %v1133, 1.442695
  %v1135 = vpow.pop %v1134
  %v1136 = vadd.f32 %v1135, 1.0
  %v1137 = vrcp.pop %v1136
  %v1138 = vmul.f32 1.0, %v1137
  %v1139 = vadd.f32 %v1048, %v1088
  %v1140 = vxor.u32 %v1139, 2147483648
  %v1141 = vmul.f32 %v1140, 1.442695
  %v1142 = vpow.pop %v1141
  %v1143 = vadd.f32 %v1142, 1.0
  %v1144 = vrcp.pop %v1143
  %v1145 = vmul.f32 1.0, %v1144
  %v1146 = vadd.f32 %v1127, %v64
  %v1147 = vmul.f32 %v1138, %v1146
  %v1148 = vadd.f32 %v1049, %v1147
  %v1149 = vtanh.pop %v1148
  %v1150 = vsub.f32 %v1045, %v1149
  %v1151 = vmul.f32 %v1145, %v1150
  %v1152 = vadd.f32 %v1149, %v1151
  %s1153 = scalar_lea.vmem %s1, 56
  %v1154 = vld [vmem:[%s1153] sm:$0xff]
  %v1155 = vsub.f32 %v1152, %v1045
  %1157 = vset.pattern.permute.xlu0 0
  %1158 = vperm.xlu0 %1157, %v1154
  %v1159 = vpop.permute.xlu0 %1158
  %v1161 = vmul.f32 %v1159, %v1155
  %v1162 = vadd.f32 %v1045, %v1161
  %1163 = vst [vmem:[#allocation2] sm:$0xff] %v1162
  %v1164 = vpack.c.bf16 %v1162, %v1162
  %s1165 = scalar_lea.vmem %s5, 28
  %1166 = vst [vmem:[%s1165] sm:$0xf] %v1164
  // Predicated region
  $region26: #{gru_with_padding.5} parent=0 // pred_check
    _
  $region27: #{gru_with_padding.5} parent=0 // pred_check_branch
    %1168 = sbr.rel (0) target = $region29
  $region28: #{gru_with_padding.5} parent=0 // pred_region
    _
  $region29: #{gru_with_padding.5} parent=0 // pred_fallthru
    _
  // Predicated region
  $region30: #{gru_with_padding.5} parent=0 // pred_check
    _
  $region31: #{gru_with_padding.5} parent=0 // pred_check_branch
    %1170 = sbr.rel (0) target = $region33
  $region32: #{gru_with_padding.5} parent=0 // pred_region
    _
  $region33: #{gru_with_padding.5} parent=0 // pred_fallthru
    _

</llo_original>
